<compile_context>
chip_gen: v7x
topology: tpu7x:2x2x1
jax: 0.10.0
libtpu: 0.0.40
codegen_flags: <defaults>
</compile_context>

<pallas_src>
import jax
import jax.numpy as jnp
from jax.experimental import pallas as pl
from jax.experimental.pallas import tpu as pltpu


# ----------------------------------------------------------------------------
# Shared forward math — used both inside the Pallas kernel (on values read from
# refs, mxu_dtype=bf16) and by the pure-JAX reference (mxu_dtype=f32).
# ----------------------------------------------------------------------------
def _dot(a, b, mxu_dtype):
    # bf16 operands on the MXU, f32 accumulation. Element-wise math stays f32.
    return jnp.dot(a.astype(mxu_dtype), b.astype(mxu_dtype),
                   preferred_element_type=jnp.float32)


def _conv3(x, w, b, dilation, mxu_dtype, pre_relu=False):
    """k=3 / stride-1 / 'same'-padded 1D conv as ONE wide matmul.

    x: (T, Cin) f32, w: (3*Cin, Cout) tap-major flattened weight, b: (1, Cout).
    """
    T, C = x.shape
    d = dilation
    if pre_relu:
        x = jnp.maximum(x, 0.0)                 # relu(0)==0 -> zero halo valid
    z = jnp.zeros((d, C), jnp.float32)
    x_m = jnp.concatenate([z, x[:T - d, :]], axis=0)   # tap 0 -> x[t - d]
    x_p = jnp.concatenate([x[d:, :], z], axis=0)       # tap 2 -> x[t + d]
    xcat = jnp.concatenate([x_m, x, x_p], axis=-1)     # (T, 3*Cin) im2col rows
    return _dot(xcat, w, mxu_dtype) + b.astype(jnp.float32)


def _conv1x1(x, w, b, mxu_dtype):
    return _dot(x, w, mxu_dtype) + b.astype(jnp.float32)


def _res_block(x, p, dilation, use_gate, mxu_dtype):
    """Pre-activation residual conv block (HoMiBlock1D layer, reconstructed)."""
    h = _conv3(x, p["w1"], p["b1"], dilation, mxu_dtype, pre_relu=True)
    h = jnp.maximum(h, 0.0)
    h = _conv1x1(h, p["w2"], p["b2"], mxu_dtype)
    if use_gate:
        g = jax.nn.sigmoid(_conv1x1(x, p["wg"], p["bg"], mxu_dtype))
        h = h * g
    return x + h


def _base_encoder(x, p, dilation, use_gate, mxu_dtype):
    h = _conv3(x, p["conv_in"]["w"], p["conv_in"]["b"], 1, mxu_dtype)
    for layer in p["down_block"]:
        h = _res_block(h, layer, dilation, use_gate, mxu_dtype)
    for layer in p["mid_block"]:
        h = _res_block(h, layer, dilation, use_gate, mxu_dtype)
    # conv_norm_out is Identity (norm_type=None); conv_act = relu is fused as
    # the pre-activation of conv_out.
    h = _conv3(h, p["conv_out"]["w"], p["conv_out"]["b"], 1, mxu_dtype,
               pre_relu=True)
    return h


def _forward_one(xb, xh, p, dilation, use_gate, out_gate, mxu_dtype):
    """Full HoMiEncoder forward for ONE batch element, channels-last."""
    hb = _base_encoder(xb, p["body"], dilation, use_gate, mxu_dtype)
    hh = _base_encoder(xh, p["hand"], dilation, use_gate, mxu_dtype)
    h = jnp.concatenate([hb, hh], axis=-1)      # (T, 2*out_channels)
    for layer in p["out"]:
        h = _res_block(h, layer, dilation, out_gate, mxu_dtype)
    return h


# ----------------------------------------------------------------------------
# Fused Pallas kernel wrapper
# ----------------------------------------------------------------------------
def homi_encoder_fwd(params, x_nct, *, body_dim, dilation=1, use_gate=False,
                     out_gate=True, mxu_dtype=jnp.bfloat16):
    """x_nct: (B, C_in, T) (PyTorch NCT) -> (B, 2*out_channels, T).

    Single fused pallas_call over grid=(B,): each grid step runs the whole
    encoder for one batch element with activations resident in VMEM/vregs.
    """
    B, _, T = x_nct.shape
    x = jnp.transpose(x_nct, (0, 2, 1))          # (B, T, C) channels-last
    body = x[..., :body_dim]
    hand = x[..., body_dim:]
    Cb = body.shape[-1]
    Ch = hand.shape[-1]
    c_final = 2 * params["body"]["conv_out"]["w"].shape[-1]

    leaves, treedef = jax.tree_util.tree_flatten(params)
    n_leaves = len(leaves)

    def kernel(body_ref, hand_ref, *rest):
        w_refs = rest[:n_leaves]
        o_ref = rest[n_leaves]
        p = jax.tree_util.tree_unflatten(treedef, list(w_refs))
        p = jax.tree_util.tree_map(lambda r: r[...], p)   # weights -> values
        xb = body_ref[...].astype(jnp.float32)
        xh = hand_ref[...].astype(jnp.float32)
        h = _forward_one(xb, xh, p, dilation, use_gate, out_gate, mxu_dtype)
        o_ref[...] = h.astype(o_ref.dtype)

    # Constant-index full-array BlockSpecs: weights are fetched from HBM once
    # and stay resident across grid steps (block index never changes).
    weight_specs = [
        pl.BlockSpec(leaf.shape, lambda i, nd=leaf.ndim: (0,) * nd)
        for leaf in leaves
    ]

    y = pl.pallas_call(
        kernel,
        grid=(B,),
        in_specs=[
            pl.BlockSpec((None, T, Cb), lambda i: (i, 0, 0)),
            pl.BlockSpec((None, T, Ch), lambda i: (i, 0, 0)),
        ] + weight_specs,
        out_specs=pl.BlockSpec((None, T, c_final), lambda i: (i, 0, 0)),
        out_shape=jax.ShapeDtypeStruct((B, T, c_final), x.dtype),
        compiler_params=pltpu.CompilerParams(
            dimension_semantics=("parallel",)),
    )(body, hand, *leaves)

    return jnp.transpose(y, (0, 2, 1))           # back to (B, C_out, T)


def homi_encoder_ref(params, x_nct, *, body_dim, dilation=1, use_gate=False,
                     out_gate=True):
    """Pure-JAX f32 reference (same math, no bf16 MXU cast, no Pallas)."""
    x = jnp.transpose(x_nct, (0, 2, 1)).astype(jnp.float32)
    body = x[..., :body_dim]
    hand = x[..., body_dim:]
    fwd = lambda b, h: _forward_one(b, h, params, dilation, use_gate, out_gate,
                                    jnp.float32)
    y = jax.vmap(fwd)(body, hand)
    return jnp.transpose(y, (0, 2, 1))


# ----------------------------------------------------------------------------
# Parameter construction (deterministic, synthetic)
# ----------------------------------------------------------------------------
def _init_conv3(key, cin, cout, scale=0.1):
    kw, kb = jax.random.split(key)
    w = jax.random.normal(kw, (3, cin, cout), jnp.float32) * scale
    return {
        "w": w.reshape(3 * cin, cout),            # tap-major flattened
        "b": jax.random.normal(kb, (1, cout), jnp.float32) * scale,
    }


def _init_conv1x1(key, cin, cout, scale=0.1):
    kw, kb = jax.random.split(key)
    return {
        "w": jax.random.normal(kw, (cin, cout), jnp.float32) * scale,
        "b": jax.random.normal(kb, (1, cout), jnp.float32) * scale,
    }


def _init_resblock(key, c, use_gate, scale=0.1):
    k1, k2, k3 = jax.random.split(key, 3)
    c1 = _init_conv3(k1, c, c, scale)
    c2 = _init_conv1x1(k2, c, c, scale)
    p = {"w1": c1["w"], "b1": c1["b"], "w2": c2["w"], "b2": c2["b"]}
    if use_gate:
        cg = _init_conv1x1(k3, c, c, scale)
        p["wg"] = cg["w"]
        p["bg"] = cg["b"]
    return p


def init_base_encoder(key, in_ch, out_ch, block_out_channels, layers_per_block,
                      layers_mid_block, use_gate):
    assert len(block_out_channels) == 1, (
        "single down block (no downsample), matching the module default")
    c = block_out_channels[0]
    keys = jax.random.split(key, 4)
    return {
        "conv_in": _init_conv3(keys[0], in_ch, c),
        "down_block": [
            _init_resblock(jax.random.fold_in(keys[1], i), c, use_gate)
            for i in range(layers_per_block)
        ],
        "mid_block": [
            _init_resblock(jax.random.fold_in(keys[2], i), c, use_gate)
            for i in range(layers_mid_block)
        ],
        "conv_out": _init_conv3(keys[3], c, out_ch),
    }


def init_homi_encoder(key, in_channels, body_in_channels, out_channels,
                      block_out_channels, layers_per_block, layers_mid_block,
                      use_gate, out_gate):
    hand_in = in_channels - body_in_channels
    kb, kh, ko = jax.random.split(key, 3)
    return {
        "body": init_base_encoder(kb, body_in_channels, out_channels,
                                  block_out_channels, layers_per_block,
                                  layers_mid_block, use_gate),
        "hand": init_base_encoder(kh, hand_in, out_channels,
                                  block_out_channels, layers_per_block,
                                  layers_mid_block, use_gate),
        "out": [
            _init_resblock(jax.random.fold_in(ko, i), out_channels * 2,
                           out_gate)
            for i in range(layers_mid_block)
        ],
    }


# ----------------------------------------------------------------------------
# Main
# ----------------------------------------------------------------------------
if __name__ == "__main__":
    # Small config consistent with the module's constructor arguments.
    # out_channels=64 -> concatenated output width 128 (lane-dense stores).
    B, T = 2, 16
    in_channels = 24
    body_in_channels = 16
    out_channels = 64
    block_out_channels = (32,)
    layers_per_block = 2
    layers_mid_block = 1
    use_gate = False
    out_gate = True

    key = jax.random.PRNGKey(0)
    kp, kx = jax.random.split(key)

    params = init_homi_encoder(kp, in_channels, body_in_channels, out_channels,
                               block_out_channels, layers_per_block,
                               layers_mid_block, use_gate, out_gate)

    x = jax.random.normal(kx, (B, in_channels, T), jnp.float32)  # NCT

    y = homi_encoder_fwd(params, x, body_dim=body_in_channels, dilation=1,
                         use_gate=use_gate, out_gate=out_gate)
    y = jax.block_until_ready(y)

    y_ref = homi_encoder_ref(params, x, body_dim=body_in_channels, dilation=1,
                             use_gate=use_gate, out_gate=out_gate)

    assert y.shape == (B, 2 * out_channels, T), y.shape
    assert bool(jnp.all(jnp.isfinite(y)))
    # bf16 MXU operands vs f32 reference -> small numerical difference only.
    assert bool(jnp.allclose(y, y_ref, atol=5e-2, rtol=5e-2)), (
        float(jnp.max(jnp.abs(y - y_ref))))
    print("KERNEL_OK")
</pallas_src>

<mosaic_0001>
module attributes {stable_mosaic.version = 11 : i64} {
  func.func @kernel(%arg0: i32, %arg1: memref<1x16x16xf32, #tpu.memory_space<vmem>>, %arg2: memref<1x16x8xf32, #tpu.memory_space<vmem>>, %arg3: memref<1x32xf32, #tpu.memory_space<vmem>>, %arg4: memref<48x32xf32, #tpu.memory_space<vmem>>, %arg5: memref<1x64xf32, #tpu.memory_space<vmem>>, %arg6: memref<96x64xf32, #tpu.memory_space<vmem>>, %arg7: memref<1x32xf32, #tpu.memory_space<vmem>>, %arg8: memref<1x32xf32, #tpu.memory_space<vmem>>, %arg9: memref<96x32xf32, #tpu.memory_space<vmem>>, %arg10: memref<32x32xf32, #tpu.memory_space<vmem>>, %arg11: memref<1x32xf32, #tpu.memory_space<vmem>>, %arg12: memref<1x32xf32, #tpu.memory_space<vmem>>, %arg13: memref<96x32xf32, #tpu.memory_space<vmem>>, %arg14: memref<32x32xf32, #tpu.memory_space<vmem>>, %arg15: memref<1x32xf32, #tpu.memory_space<vmem>>, %arg16: memref<1x32xf32, #tpu.memory_space<vmem>>, %arg17: memref<96x32xf32, #tpu.memory_space<vmem>>, %arg18: memref<32x32xf32, #tpu.memory_space<vmem>>, %arg19: memref<1x32xf32, #tpu.memory_space<vmem>>, %arg20: memref<24x32xf32, #tpu.memory_space<vmem>>, %arg21: memref<1x64xf32, #tpu.memory_space<vmem>>, %arg22: memref<96x64xf32, #tpu.memory_space<vmem>>, %arg23: memref<1x32xf32, #tpu.memory_space<vmem>>, %arg24: memref<1x32xf32, #tpu.memory_space<vmem>>, %arg25: memref<96x32xf32, #tpu.memory_space<vmem>>, %arg26: memref<32x32xf32, #tpu.memory_space<vmem>>, %arg27: memref<1x32xf32, #tpu.memory_space<vmem>>, %arg28: memref<1x32xf32, #tpu.memory_space<vmem>>, %arg29: memref<96x32xf32, #tpu.memory_space<vmem>>, %arg30: memref<32x32xf32, #tpu.memory_space<vmem>>, %arg31: memref<1x32xf32, #tpu.memory_space<vmem>>, %arg32: memref<1x32xf32, #tpu.memory_space<vmem>>, %arg33: memref<96x32xf32, #tpu.memory_space<vmem>>, %arg34: memref<32x32xf32, #tpu.memory_space<vmem>>, %arg35: memref<1x128xf32, #tpu.memory_space<vmem>>, %arg36: memref<1x128xf32, #tpu.memory_space<vmem>>, %arg37: memref<1x128xf32, #tpu.memory_space<vmem>>, %arg38: memref<384x128xf32, #tpu.memory_space<vmem>>, %arg39: memref<128x128xf32, #tpu.memory_space<vmem>>, %arg40: memref<128x128xf32, #tpu.memory_space<vmem>>, %arg41: memref<1x16x128xf32, #tpu.memory_space<vmem>>) attributes {dimension_semantics = [#tpu.dimension_semantics<parallel>], iteration_bounds = array<i64: 2>, scalar_prefetch = 0 : i64, scratch_operands = 0 : i64, tpu.core_type = #tpu.core_type<tc>, window_params = [{transform_indices = @transform_0, window_bounds = array<i64: 1, 16, 16>}, {transform_indices = @transform_1, window_bounds = array<i64: 1, 16, 8>}, {pipeline_mode = #tpu.pipeline_mode<synchronous>, transform_indices = @transform_2, window_bounds = array<i64: 1, 32>}, {pipeline_mode = #tpu.pipeline_mode<synchronous>, transform_indices = @transform_3, window_bounds = array<i64: 48, 32>}, {pipeline_mode = #tpu.pipeline_mode<synchronous>, transform_indices = @transform_4, window_bounds = array<i64: 1, 64>}, {pipeline_mode = #tpu.pipeline_mode<synchronous>, transform_indices = @transform_5, window_bounds = array<i64: 96, 64>}, {pipeline_mode = #tpu.pipeline_mode<synchronous>, transform_indices = @transform_6, window_bounds = array<i64: 1, 32>}, {pipeline_mode = #tpu.pipeline_mode<synchronous>, transform_indices = @transform_7, window_bounds = array<i64: 1, 32>}, {pipeline_mode = #tpu.pipeline_mode<synchronous>, transform_indices = @transform_8, window_bounds = array<i64: 96, 32>}, {pipeline_mode = #tpu.pipeline_mode<synchronous>, transform_indices = @transform_9, window_bounds = array<i64: 32, 32>}, {pipeline_mode = #tpu.pipeline_mode<synchronous>, transform_indices = @transform_10, window_bounds = array<i64: 1, 32>}, {pipeline_mode = #tpu.pipeline_mode<synchronous>, transform_indices = @transform_11, window_bounds = array<i64: 1, 32>}, {pipeline_mode = #tpu.pipeline_mode<synchronous>, transform_indices = @transform_12, window_bounds = array<i64: 96, 32>}, {pipeline_mode = #tpu.pipeline_mode<synchronous>, transform_indices = @transform_13, window_bounds = array<i64: 32, 32>}, {pipeline_mode = #tpu.pipeline_mode<synchronous>, transform_indices = @transform_14, window_bounds = array<i64: 1, 32>}, {pipeline_mode = #tpu.pipeline_mode<synchronous>, transform_indices = @transform_15, window_bounds = array<i64: 1, 32>}, {pipeline_mode = #tpu.pipeline_mode<synchronous>, transform_indices = @transform_16, window_bounds = array<i64: 96, 32>}, {pipeline_mode = #tpu.pipeline_mode<synchronous>, transform_indices = @transform_17, window_bounds = array<i64: 32, 32>}, {pipeline_mode = #tpu.pipeline_mode<synchronous>, transform_indices = @transform_18, window_bounds = array<i64: 1, 32>}, {pipeline_mode = #tpu.pipeline_mode<synchronous>, transform_indices = @transform_19, window_bounds = array<i64: 24, 32>}, {pipeline_mode = #tpu.pipeline_mode<synchronous>, transform_indices = @transform_20, window_bounds = array<i64: 1, 64>}, {pipeline_mode = #tpu.pipeline_mode<synchronous>, transform_indices = @transform_21, window_bounds = array<i64: 96, 64>}, {pipeline_mode = #tpu.pipeline_mode<synchronous>, transform_indices = @transform_22, window_bounds = array<i64: 1, 32>}, {pipeline_mode = #tpu.pipeline_mode<synchronous>, transform_indices = @transform_23, window_bounds = array<i64: 1, 32>}, {pipeline_mode = #tpu.pipeline_mode<synchronous>, transform_indices = @transform_24, window_bounds = array<i64: 96, 32>}, {pipeline_mode = #tpu.pipeline_mode<synchronous>, transform_indices = @transform_25, window_bounds = array<i64: 32, 32>}, {pipeline_mode = #tpu.pipeline_mode<synchronous>, transform_indices = @transform_26, window_bounds = array<i64: 1, 32>}, {pipeline_mode = #tpu.pipeline_mode<synchronous>, transform_indices = @transform_27, window_bounds = array<i64: 1, 32>}, {pipeline_mode = #tpu.pipeline_mode<synchronous>, transform_indices = @transform_28, window_bounds = array<i64: 96, 32>}, {pipeline_mode = #tpu.pipeline_mode<synchronous>, transform_indices = @transform_29, window_bounds = array<i64: 32, 32>}, {pipeline_mode = #tpu.pipeline_mode<synchronous>, transform_indices = @transform_30, window_bounds = array<i64: 1, 32>}, {pipeline_mode = #tpu.pipeline_mode<synchronous>, transform_indices = @transform_31, window_bounds = array<i64: 1, 32>}, {pipeline_mode = #tpu.pipeline_mode<synchronous>, transform_indices = @transform_32, window_bounds = array<i64: 96, 32>}, {pipeline_mode = #tpu.pipeline_mode<synchronous>, transform_indices = @transform_33, window_bounds = array<i64: 32, 32>}, {pipeline_mode = #tpu.pipeline_mode<synchronous>, transform_indices = @transform_34, window_bounds = array<i64: 1, 128>}, {pipeline_mode = #tpu.pipeline_mode<synchronous>, transform_indices = @transform_35, window_bounds = array<i64: 1, 128>}, {pipeline_mode = #tpu.pipeline_mode<synchronous>, transform_indices = @transform_36, window_bounds = array<i64: 1, 128>}, {pipeline_mode = #tpu.pipeline_mode<synchronous>, transform_indices = @transform_37, window_bounds = array<i64: 384, 128>}, {pipeline_mode = #tpu.pipeline_mode<synchronous>, transform_indices = @transform_38, window_bounds = array<i64: 128, 128>}, {pipeline_mode = #tpu.pipeline_mode<synchronous>, transform_indices = @transform_39, window_bounds = array<i64: 128, 128>}, {transform_indices = @transform_40, window_bounds = array<i64: 1, 16, 128>}]} {
    %c0 = arith.constant 0 : index
    %c0_0 = arith.constant 0 : index
    %0 = vector.load %arg3[%c0, %c0_0] : memref<1x32xf32, #tpu.memory_space<vmem>>, vector<1x32xf32>
    %c0_1 = arith.constant 0 : index
    %c0_2 = arith.constant 0 : index
    %1 = vector.load %arg4[%c0_1, %c0_2] : memref<48x32xf32, #tpu.memory_space<vmem>>, vector<48x32xf32>
    %c0_3 = arith.constant 0 : index
    %c0_4 = arith.constant 0 : index
    %2 = vector.load %arg5[%c0_3, %c0_4] : memref<1x64xf32, #tpu.memory_space<vmem>>, vector<1x64xf32>
    %c0_5 = arith.constant 0 : index
    %c0_6 = arith.constant 0 : index
    %3 = vector.load %arg6[%c0_5, %c0_6] : memref<96x64xf32, #tpu.memory_space<vmem>>, vector<96x64xf32>
    %c0_7 = arith.constant 0 : index
    %c0_8 = arith.constant 0 : index
    %4 = vector.load %arg7[%c0_7, %c0_8] : memref<1x32xf32, #tpu.memory_space<vmem>>, vector<1x32xf32>
    %c0_9 = arith.constant 0 : index
    %c0_10 = arith.constant 0 : index
    %5 = vector.load %arg8[%c0_9, %c0_10] : memref<1x32xf32, #tpu.memory_space<vmem>>, vector<1x32xf32>
    %c0_11 = arith.constant 0 : index
    %c0_12 = arith.constant 0 : index
    %6 = vector.load %arg9[%c0_11, %c0_12] : memref<96x32xf32, #tpu.memory_space<vmem>>, vector<96x32xf32>
    %c0_13 = arith.constant 0 : index
    %c0_14 = arith.constant 0 : index
    %7 = vector.load %arg10[%c0_13, %c0_14] : memref<32x32xf32, #tpu.memory_space<vmem>>, vector<32x32xf32>
    %c0_15 = arith.constant 0 : index
    %c0_16 = arith.constant 0 : index
    %8 = vector.load %arg11[%c0_15, %c0_16] : memref<1x32xf32, #tpu.memory_space<vmem>>, vector<1x32xf32>
    %c0_17 = arith.constant 0 : index
    %c0_18 = arith.constant 0 : index
    %9 = vector.load %arg12[%c0_17, %c0_18] : memref<1x32xf32, #tpu.memory_space<vmem>>, vector<1x32xf32>
    %c0_19 = arith.constant 0 : index
    %c0_20 = arith.constant 0 : index
    %10 = vector.load %arg13[%c0_19, %c0_20] : memref<96x32xf32, #tpu.memory_space<vmem>>, vector<96x32xf32>
    %c0_21 = arith.constant 0 : index
    %c0_22 = arith.constant 0 : index
    %11 = vector.load %arg14[%c0_21, %c0_22] : memref<32x32xf32, #tpu.memory_space<vmem>>, vector<32x32xf32>
    %c0_23 = arith.constant 0 : index
    %c0_24 = arith.constant 0 : index
    %12 = vector.load %arg15[%c0_23, %c0_24] : memref<1x32xf32, #tpu.memory_space<vmem>>, vector<1x32xf32>
    %c0_25 = arith.constant 0 : index
    %c0_26 = arith.constant 0 : index
    %13 = vector.load %arg16[%c0_25, %c0_26] : memref<1x32xf32, #tpu.memory_space<vmem>>, vector<1x32xf32>
    %c0_27 = arith.constant 0 : index
    %c0_28 = arith.constant 0 : index
    %14 = vector.load %arg17[%c0_27, %c0_28] : memref<96x32xf32, #tpu.memory_space<vmem>>, vector<96x32xf32>
    %c0_29 = arith.constant 0 : index
    %c0_30 = arith.constant 0 : index
    %15 = vector.load %arg18[%c0_29, %c0_30] : memref<32x32xf32, #tpu.memory_space<vmem>>, vector<32x32xf32>
    %c0_31 = arith.constant 0 : index
    %c0_32 = arith.constant 0 : index
    %16 = vector.load %arg19[%c0_31, %c0_32] : memref<1x32xf32, #tpu.memory_space<vmem>>, vector<1x32xf32>
    %c0_33 = arith.constant 0 : index
    %c0_34 = arith.constant 0 : index
    %17 = vector.load %arg20[%c0_33, %c0_34] : memref<24x32xf32, #tpu.memory_space<vmem>>, vector<24x32xf32>
    %c0_35 = arith.constant 0 : index
    %c0_36 = arith.constant 0 : index
    %18 = vector.load %arg21[%c0_35, %c0_36] : memref<1x64xf32, #tpu.memory_space<vmem>>, vector<1x64xf32>
    %c0_37 = arith.constant 0 : index
    %c0_38 = arith.constant 0 : index
    %19 = vector.load %arg22[%c0_37, %c0_38] : memref<96x64xf32, #tpu.memory_space<vmem>>, vector<96x64xf32>
    %c0_39 = arith.constant 0 : index
    %c0_40 = arith.constant 0 : index
    %20 = vector.load %arg23[%c0_39, %c0_40] : memref<1x32xf32, #tpu.memory_space<vmem>>, vector<1x32xf32>
    %c0_41 = arith.constant 0 : index
    %c0_42 = arith.constant 0 : index
    %21 = vector.load %arg24[%c0_41, %c0_42] : memref<1x32xf32, #tpu.memory_space<vmem>>, vector<1x32xf32>
    %c0_43 = arith.constant 0 : index
    %c0_44 = arith.constant 0 : index
    %22 = vector.load %arg25[%c0_43, %c0_44] : memref<96x32xf32, #tpu.memory_space<vmem>>, vector<96x32xf32>
    %c0_45 = arith.constant 0 : index
    %c0_46 = arith.constant 0 : index
    %23 = vector.load %arg26[%c0_45, %c0_46] : memref<32x32xf32, #tpu.memory_space<vmem>>, vector<32x32xf32>
    %c0_47 = arith.constant 0 : index
    %c0_48 = arith.constant 0 : index
    %24 = vector.load %arg27[%c0_47, %c0_48] : memref<1x32xf32, #tpu.memory_space<vmem>>, vector<1x32xf32>
    %c0_49 = arith.constant 0 : index
    %c0_50 = arith.constant 0 : index
    %25 = vector.load %arg28[%c0_49, %c0_50] : memref<1x32xf32, #tpu.memory_space<vmem>>, vector<1x32xf32>
    %c0_51 = arith.constant 0 : index
    %c0_52 = arith.constant 0 : index
    %26 = vector.load %arg29[%c0_51, %c0_52] : memref<96x32xf32, #tpu.memory_space<vmem>>, vector<96x32xf32>
    %c0_53 = arith.constant 0 : index
    %c0_54 = arith.constant 0 : index
    %27 = vector.load %arg30[%c0_53, %c0_54] : memref<32x32xf32, #tpu.memory_space<vmem>>, vector<32x32xf32>
    %c0_55 = arith.constant 0 : index
    %c0_56 = arith.constant 0 : index
    %28 = vector.load %arg31[%c0_55, %c0_56] : memref<1x32xf32, #tpu.memory_space<vmem>>, vector<1x32xf32>
    %c0_57 = arith.constant 0 : index
    %c0_58 = arith.constant 0 : index
    %29 = vector.load %arg32[%c0_57, %c0_58] : memref<1x32xf32, #tpu.memory_space<vmem>>, vector<1x32xf32>
    %c0_59 = arith.constant 0 : index
    %c0_60 = arith.constant 0 : index
    %30 = vector.load %arg33[%c0_59, %c0_60] : memref<96x32xf32, #tpu.memory_space<vmem>>, vector<96x32xf32>
    %c0_61 = arith.constant 0 : index
    %c0_62 = arith.constant 0 : index
    %31 = vector.load %arg34[%c0_61, %c0_62] : memref<32x32xf32, #tpu.memory_space<vmem>>, vector<32x32xf32>
    %c0_63 = arith.constant 0 : index
    %c0_64 = arith.constant 0 : index
    %32 = vector.load %arg35[%c0_63, %c0_64] : memref<1x128xf32, #tpu.memory_space<vmem>>, vector<1x128xf32>
    %c0_65 = arith.constant 0 : index
    %c0_66 = arith.constant 0 : index
    %33 = vector.load %arg36[%c0_65, %c0_66] : memref<1x128xf32, #tpu.memory_space<vmem>>, vector<1x128xf32>
    %c0_67 = arith.constant 0 : index
    %c0_68 = arith.constant 0 : index
    %34 = vector.load %arg37[%c0_67, %c0_68] : memref<1x128xf32, #tpu.memory_space<vmem>>, vector<1x128xf32>
    %c0_69 = arith.constant 0 : index
    %c0_70 = arith.constant 0 : index
    %35 = vector.load %arg38[%c0_69, %c0_70] : memref<384x128xf32, #tpu.memory_space<vmem>>, vector<384x128xf32>
    %c0_71 = arith.constant 0 : index
    %c0_72 = arith.constant 0 : index
    %36 = vector.load %arg39[%c0_71, %c0_72] : memref<128x128xf32, #tpu.memory_space<vmem>>, vector<128x128xf32>
    %c0_73 = arith.constant 0 : index
    %c0_74 = arith.constant 0 : index
    %37 = vector.load %arg40[%c0_73, %c0_74] : memref<128x128xf32, #tpu.memory_space<vmem>>, vector<128x128xf32>
    %c0_75 = arith.constant 0 : index
    %c0_76 = arith.constant 0 : index
    %c0_77 = arith.constant 0 : index
    %38 = vector.load %arg1[%c0_75, %c0_76, %c0_77] : memref<1x16x16xf32, #tpu.memory_space<vmem>>, vector<1x16x16xf32>
    %39 = vector.shape_cast %38 : vector<1x16x16xf32> to vector<16x16xf32>
    %c0_78 = arith.constant 0 : index
    %c0_79 = arith.constant 0 : index
    %c0_80 = arith.constant 0 : index
    %40 = vector.load %arg2[%c0_78, %c0_79, %c0_80] : memref<1x16x8xf32, #tpu.memory_space<vmem>>, vector<1x16x8xf32>
    %41 = vector.shape_cast %40 : vector<1x16x8xf32> to vector<16x8xf32>
    %cst = arith.constant 0.000000e+00 : f32
    %42 = vector.broadcast %cst : f32 to vector<1x16xf32>
    %43 = vector.extract_strided_slice %39 {offsets = [0, 0], sizes = [15, 16], strides = [1, 1]} : vector<16x16xf32> to vector<15x16xf32>
    %44 = tpu.concatenate %42, %43 in 0 : vector<1x16xf32>, vector<15x16xf32> -> vector<16x16xf32>
    %45 = vector.extract_strided_slice %39 {offsets = [1, 0], sizes = [15, 16], strides = [1, 1]} : vector<16x16xf32> to vector<15x16xf32>
    %46 = tpu.concatenate %45, %42 in 0 : vector<15x16xf32>, vector<1x16xf32> -> vector<16x16xf32>
    %47 = tpu.concatenate %44, %39, %46 in 1 : vector<16x16xf32>, vector<16x16xf32>, vector<16x16xf32> -> vector<16x48xf32>
    %48 = arith.truncf %47 : vector<16x48xf32> to vector<16x48xbf16>
    %49 = arith.truncf %1 : vector<48x32xf32> to vector<48x32xbf16>
    %cst_81 = arith.constant dense<0.000000e+00> : vector<16x32xf32>
    %50 = tpu.matmul %48, %49, %cst_81 {dimension_numbers = #tpu.dot_dimension_numbers<[1], [0], [0], [1], [0, 0, 1, 1], [], []>} : vector<16x48xbf16>, vector<48x32xbf16>, vector<16x32xf32> -> vector<16x32xf32>
    %51 = vector.broadcast %0 : vector<1x32xf32> to vector<16x32xf32>
    %52 = arith.addf %50, %51 : vector<16x32xf32>
    %cst_82 = arith.constant 0.000000e+00 : f32
    %53 = vector.broadcast %cst_82 : f32 to vector<16x32xf32>
    %54 = arith.maximumf %52, %53 : vector<16x32xf32>
    %cst_83 = arith.constant 0.000000e+00 : f32
    %55 = vector.broadcast %cst_83 : f32 to vector<1x32xf32>
    %56 = vector.extract_strided_slice %54 {offsets = [0, 0], sizes = [15, 32], strides = [1, 1]} : vector<16x32xf32> to vector<15x32xf32>
    %57 = tpu.concatenate %55, %56 in 0 : vector<1x32xf32>, vector<15x32xf32> -> vector<16x32xf32>
    %58 = vector.extract_strided_slice %54 {offsets = [1, 0], sizes = [15, 32], strides = [1, 1]} : vector<16x32xf32> to vector<15x32xf32>
    %59 = tpu.concatenate %58, %55 in 0 : vector<15x32xf32>, vector<1x32xf32> -> vector<16x32xf32>
    %60 = tpu.concatenate %57, %54, %59 in 1 : vector<16x32xf32>, vector<16x32xf32>, vector<16x32xf32> -> vector<16x96xf32>
    %61 = arith.truncf %60 : vector<16x96xf32> to vector<16x96xbf16>
    %62 = arith.truncf %6 : vector<96x32xf32> to vector<96x32xbf16>
    %cst_84 = arith.constant dense<0.000000e+00> : vector<16x32xf32>
    %63 = tpu.matmul %61, %62, %cst_84 {dimension_numbers = #tpu.dot_dimension_numbers<[1], [0], [0], [1], [0, 0, 1, 1], [], []>} : vector<16x96xbf16>, vector<96x32xbf16>, vector<16x32xf32> -> vector<16x32xf32>
    %64 = vector.broadcast %4 : vector<1x32xf32> to vector<16x32xf32>
    %65 = arith.addf %63, %64 : vector<16x32xf32>
    %cst_85 = arith.constant 0.000000e+00 : f32
    %66 = vector.broadcast %cst_85 : f32 to vector<16x32xf32>
    %67 = arith.maximumf %65, %66 : vector<16x32xf32>
    %68 = arith.truncf %67 : vector<16x32xf32> to vector<16x32xbf16>
    %69 = arith.truncf %7 : vector<32x32xf32> to vector<32x32xbf16>
    %cst_86 = arith.constant dense<0.000000e+00> : vector<16x32xf32>
    %70 = tpu.matmul %68, %69, %cst_86 {dimension_numbers = #tpu.dot_dimension_numbers<[1], [0], [0], [1], [0, 0, 1, 1], [], []>} : vector<16x32xbf16>, vector<32x32xbf16>, vector<16x32xf32> -> vector<16x32xf32>
    %71 = vector.broadcast %5 : vector<1x32xf32> to vector<16x32xf32>
    %72 = arith.addf %70, %71 : vector<16x32xf32>
    %73 = arith.addf %52, %72 : vector<16x32xf32>
    %cst_87 = arith.constant 0.000000e+00 : f32
    %74 = vector.broadcast %cst_87 : f32 to vector<16x32xf32>
    %75 = arith.maximumf %73, %74 : vector<16x32xf32>
    %cst_88 = arith.constant 0.000000e+00 : f32
    %76 = vector.broadcast %cst_88 : f32 to vector<1x32xf32>
    %77 = vector.extract_strided_slice %75 {offsets = [0, 0], sizes = [15, 32], strides = [1, 1]} : vector<16x32xf32> to vector<15x32xf32>
    %78 = tpu.concatenate %76, %77 in 0 : vector<1x32xf32>, vector<15x32xf32> -> vector<16x32xf32>
    %79 = vector.extract_strided_slice %75 {offsets = [1, 0], sizes = [15, 32], strides = [1, 1]} : vector<16x32xf32> to vector<15x32xf32>
    %80 = tpu.concatenate %79, %76 in 0 : vector<15x32xf32>, vector<1x32xf32> -> vector<16x32xf32>
    %81 = tpu.concatenate %78, %75, %80 in 1 : vector<16x32xf32>, vector<16x32xf32>, vector<16x32xf32> -> vector<16x96xf32>
    %82 = arith.truncf %81 : vector<16x96xf32> to vector<16x96xbf16>
    %83 = arith.truncf %10 : vector<96x32xf32> to vector<96x32xbf16>
    %cst_89 = arith.constant dense<0.000000e+00> : vector<16x32xf32>
    %84 = tpu.matmul %82, %83, %cst_89 {dimension_numbers = #tpu.dot_dimension_numbers<[1], [0], [0], [1], [0, 0, 1, 1], [], []>} : vector<16x96xbf16>, vector<96x32xbf16>, vector<16x32xf32> -> vector<16x32xf32>
    %85 = vector.broadcast %8 : vector<1x32xf32> to vector<16x32xf32>
    %86 = arith.addf %84, %85 : vector<16x32xf32>
    %cst_90 = arith.constant 0.000000e+00 : f32
    %87 = vector.broadcast %cst_90 : f32 to vector<16x32xf32>
    %88 = arith.maximumf %86, %87 : vector<16x32xf32>
    %89 = arith.truncf %88 : vector<16x32xf32> to vector<16x32xbf16>
    %90 = arith.truncf %11 : vector<32x32xf32> to vector<32x32xbf16>
    %cst_91 = arith.constant dense<0.000000e+00> : vector<16x32xf32>
    %91 = tpu.matmul %89, %90, %cst_91 {dimension_numbers = #tpu.dot_dimension_numbers<[1], [0], [0], [1], [0, 0, 1, 1], [], []>} : vector<16x32xbf16>, vector<32x32xbf16>, vector<16x32xf32> -> vector<16x32xf32>
    %92 = vector.broadcast %9 : vector<1x32xf32> to vector<16x32xf32>
    %93 = arith.addf %91, %92 : vector<16x32xf32>
    %94 = arith.addf %73, %93 : vector<16x32xf32>
    %cst_92 = arith.constant 0.000000e+00 : f32
    %95 = vector.broadcast %cst_92 : f32 to vector<16x32xf32>
    %96 = arith.maximumf %94, %95 : vector<16x32xf32>
    %cst_93 = arith.constant 0.000000e+00 : f32
    %97 = vector.broadcast %cst_93 : f32 to vector<1x32xf32>
    %98 = vector.extract_strided_slice %96 {offsets = [0, 0], sizes = [15, 32], strides = [1, 1]} : vector<16x32xf32> to vector<15x32xf32>
    %99 = tpu.concatenate %97, %98 in 0 : vector<1x32xf32>, vector<15x32xf32> -> vector<16x32xf32>
    %100 = vector.extract_strided_slice %96 {offsets = [1, 0], sizes = [15, 32], strides = [1, 1]} : vector<16x32xf32> to vector<15x32xf32>
    %101 = tpu.concatenate %100, %97 in 0 : vector<15x32xf32>, vector<1x32xf32> -> vector<16x32xf32>
    %102 = tpu.concatenate %99, %96, %101 in 1 : vector<16x32xf32>, vector<16x32xf32>, vector<16x32xf32> -> vector<16x96xf32>
    %103 = arith.truncf %102 : vector<16x96xf32> to vector<16x96xbf16>
    %104 = arith.truncf %14 : vector<96x32xf32> to vector<96x32xbf16>
    %cst_94 = arith.constant dense<0.000000e+00> : vector<16x32xf32>
    %105 = tpu.matmul %103, %104, %cst_94 {dimension_numbers = #tpu.dot_dimension_numbers<[1], [0], [0], [1], [0, 0, 1, 1], [], []>} : vector<16x96xbf16>, vector<96x32xbf16>, vector<16x32xf32> -> vector<16x32xf32>
    %106 = vector.broadcast %12 : vector<1x32xf32> to vector<16x32xf32>
    %107 = arith.addf %105, %106 : vector<16x32xf32>
    %cst_95 = arith.constant 0.000000e+00 : f32
    %108 = vector.broadcast %cst_95 : f32 to vector<16x32xf32>
    %109 = arith.maximumf %107, %108 : vector<16x32xf32>
    %110 = arith.truncf %109 : vector<16x32xf32> to vector<16x32xbf16>
    %111 = arith.truncf %15 : vector<32x32xf32> to vector<32x32xbf16>
    %cst_96 = arith.constant dense<0.000000e+00> : vector<16x32xf32>
    %112 = tpu.matmul %110, %111, %cst_96 {dimension_numbers = #tpu.dot_dimension_numbers<[1], [0], [0], [1], [0, 0, 1, 1], [], []>} : vector<16x32xbf16>, vector<32x32xbf16>, vector<16x32xf32> -> vector<16x32xf32>
    %113 = vector.broadcast %13 : vector<1x32xf32> to vector<16x32xf32>
    %114 = arith.addf %112, %113 : vector<16x32xf32>
    %115 = arith.addf %94, %114 : vector<16x32xf32>
    %cst_97 = arith.constant 0.000000e+00 : f32
    %116 = vector.broadcast %cst_97 : f32 to vector<16x32xf32>
    %117 = arith.maximumf %115, %116 : vector<16x32xf32>
    %cst_98 = arith.constant 0.000000e+00 : f32
    %118 = vector.broadcast %cst_98 : f32 to vector<1x32xf32>
    %119 = vector.extract_strided_slice %117 {offsets = [0, 0], sizes = [15, 32], strides = [1, 1]} : vector<16x32xf32> to vector<15x32xf32>
    %120 = tpu.concatenate %118, %119 in 0 : vector<1x32xf32>, vector<15x32xf32> -> vector<16x32xf32>
    %121 = vector.extract_strided_slice %117 {offsets = [1, 0], sizes = [15, 32], strides = [1, 1]} : vector<16x32xf32> to vector<15x32xf32>
    %122 = tpu.concatenate %121, %118 in 0 : vector<15x32xf32>, vector<1x32xf32> -> vector<16x32xf32>
    %123 = tpu.concatenate %120, %117, %122 in 1 : vector<16x32xf32>, vector<16x32xf32>, vector<16x32xf32> -> vector<16x96xf32>
    %124 = arith.truncf %123 : vector<16x96xf32> to vector<16x96xbf16>
    %125 = arith.truncf %3 : vector<96x64xf32> to vector<96x64xbf16>
    %cst_99 = arith.constant dense<0.000000e+00> : vector<16x64xf32>
    %126 = tpu.matmul %124, %125, %cst_99 {dimension_numbers = #tpu.dot_dimension_numbers<[1], [0], [0], [1], [0, 0, 1, 1], [], []>} : vector<16x96xbf16>, vector<96x64xbf16>, vector<16x64xf32> -> vector<16x64xf32>
    %127 = vector.broadcast %2 : vector<1x64xf32> to vector<16x64xf32>
    %128 = arith.addf %126, %127 : vector<16x64xf32>
    %cst_100 = arith.constant 0.000000e+00 : f32
    %129 = vector.broadcast %cst_100 : f32 to vector<1x8xf32>
    %130 = vector.extract_strided_slice %41 {offsets = [0, 0], sizes = [15, 8], strides = [1, 1]} : vector<16x8xf32> to vector<15x8xf32>
    %131 = tpu.concatenate %129, %130 in 0 : vector<1x8xf32>, vector<15x8xf32> -> vector<16x8xf32>
    %132 = vector.extract_strided_slice %41 {offsets = [1, 0], sizes = [15, 8], strides = [1, 1]} : vector<16x8xf32> to vector<15x8xf32>
    %133 = tpu.concatenate %132, %129 in 0 : vector<15x8xf32>, vector<1x8xf32> -> vector<16x8xf32>
    %134 = tpu.concatenate %131, %41, %133 in 1 : vector<16x8xf32>, vector<16x8xf32>, vector<16x8xf32> -> vector<16x24xf32>
    %135 = arith.truncf %134 : vector<16x24xf32> to vector<16x24xbf16>
    %136 = arith.truncf %17 : vector<24x32xf32> to vector<24x32xbf16>
    %cst_101 = arith.constant dense<0.000000e+00> : vector<16x32xf32>
    %137 = tpu.matmul %135, %136, %cst_101 {dimension_numbers = #tpu.dot_dimension_numbers<[1], [0], [0], [1], [0, 0, 1, 1], [], []>} : vector<16x24xbf16>, vector<24x32xbf16>, vector<16x32xf32> -> vector<16x32xf32>
    %138 = vector.broadcast %16 : vector<1x32xf32> to vector<16x32xf32>
    %139 = arith.addf %137, %138 : vector<16x32xf32>
    %cst_102 = arith.constant 0.000000e+00 : f32
    %140 = vector.broadcast %cst_102 : f32 to vector<16x32xf32>
    %141 = arith.maximumf %139, %140 : vector<16x32xf32>
    %cst_103 = arith.constant 0.000000e+00 : f32
    %142 = vector.broadcast %cst_103 : f32 to vector<1x32xf32>
    %143 = vector.extract_strided_slice %141 {offsets = [0, 0], sizes = [15, 32], strides = [1, 1]} : vector<16x32xf32> to vector<15x32xf32>
    %144 = tpu.concatenate %142, %143 in 0 : vector<1x32xf32>, vector<15x32xf32> -> vector<16x32xf32>
    %145 = vector.extract_strided_slice %141 {offsets = [1, 0], sizes = [15, 32], strides = [1, 1]} : vector<16x32xf32> to vector<15x32xf32>
    %146 = tpu.concatenate %145, %142 in 0 : vector<15x32xf32>, vector<1x32xf32> -> vector<16x32xf32>
    %147 = tpu.concatenate %144, %141, %146 in 1 : vector<16x32xf32>, vector<16x32xf32>, vector<16x32xf32> -> vector<16x96xf32>
    %148 = arith.truncf %147 : vector<16x96xf32> to vector<16x96xbf16>
    %149 = arith.truncf %22 : vector<96x32xf32> to vector<96x32xbf16>
    %cst_104 = arith.constant dense<0.000000e+00> : vector<16x32xf32>
    %150 = tpu.matmul %148, %149, %cst_104 {dimension_numbers = #tpu.dot_dimension_numbers<[1], [0], [0], [1], [0, 0, 1, 1], [], []>} : vector<16x96xbf16>, vector<96x32xbf16>, vector<16x32xf32> -> vector<16x32xf32>
    %151 = vector.broadcast %20 : vector<1x32xf32> to vector<16x32xf32>
    %152 = arith.addf %150, %151 : vector<16x32xf32>
    %cst_105 = arith.constant 0.000000e+00 : f32
    %153 = vector.broadcast %cst_105 : f32 to vector<16x32xf32>
    %154 = arith.maximumf %152, %153 : vector<16x32xf32>
    %155 = arith.truncf %154 : vector<16x32xf32> to vector<16x32xbf16>
    %156 = arith.truncf %23 : vector<32x32xf32> to vector<32x32xbf16>
    %cst_106 = arith.constant dense<0.000000e+00> : vector<16x32xf32>
    %157 = tpu.matmul %155, %156, %cst_106 {dimension_numbers = #tpu.dot_dimension_numbers<[1], [0], [0], [1], [0, 0, 1, 1], [], []>} : vector<16x32xbf16>, vector<32x32xbf16>, vector<16x32xf32> -> vector<16x32xf32>
    %158 = vector.broadcast %21 : vector<1x32xf32> to vector<16x32xf32>
    %159 = arith.addf %157, %158 : vector<16x32xf32>
    %160 = arith.addf %139, %159 : vector<16x32xf32>
    %cst_107 = arith.constant 0.000000e+00 : f32
    %161 = vector.broadcast %cst_107 : f32 to vector<16x32xf32>
    %162 = arith.maximumf %160, %161 : vector<16x32xf32>
    %cst_108 = arith.constant 0.000000e+00 : f32
    %163 = vector.broadcast %cst_108 : f32 to vector<1x32xf32>
    %164 = vector.extract_strided_slice %162 {offsets = [0, 0], sizes = [15, 32], strides = [1, 1]} : vector<16x32xf32> to vector<15x32xf32>
    %165 = tpu.concatenate %163, %164 in 0 : vector<1x32xf32>, vector<15x32xf32> -> vector<16x32xf32>
    %166 = vector.extract_strided_slice %162 {offsets = [1, 0], sizes = [15, 32], strides = [1, 1]} : vector<16x32xf32> to vector<15x32xf32>
    %167 = tpu.concatenate %166, %163 in 0 : vector<15x32xf32>, vector<1x32xf32> -> vector<16x32xf32>
    %168 = tpu.concatenate %165, %162, %167 in 1 : vector<16x32xf32>, vector<16x32xf32>, vector<16x32xf32> -> vector<16x96xf32>
    %169 = arith.truncf %168 : vector<16x96xf32> to vector<16x96xbf16>
    %170 = arith.truncf %26 : vector<96x32xf32> to vector<96x32xbf16>
    %cst_109 = arith.constant dense<0.000000e+00> : vector<16x32xf32>
    %171 = tpu.matmul %169, %170, %cst_109 {dimension_numbers = #tpu.dot_dimension_numbers<[1], [0], [0], [1], [0, 0, 1, 1], [], []>} : vector<16x96xbf16>, vector<96x32xbf16>, vector<16x32xf32> -> vector<16x32xf32>
    %172 = vector.broadcast %24 : vector<1x32xf32> to vector<16x32xf32>
    %173 = arith.addf %171, %172 : vector<16x32xf32>
    %cst_110 = arith.constant 0.000000e+00 : f32
    %174 = vector.broadcast %cst_110 : f32 to vector<16x32xf32>
    %175 = arith.maximumf %173, %174 : vector<16x32xf32>
    %176 = arith.truncf %175 : vector<16x32xf32> to vector<16x32xbf16>
    %177 = arith.truncf %27 : vector<32x32xf32> to vector<32x32xbf16>
    %cst_111 = arith.constant dense<0.000000e+00> : vector<16x32xf32>
    %178 = tpu.matmul %176, %177, %cst_111 {dimension_numbers = #tpu.dot_dimension_numbers<[1], [0], [0], [1], [0, 0, 1, 1], [], []>} : vector<16x32xbf16>, vector<32x32xbf16>, vector<16x32xf32> -> vector<16x32xf32>
    %179 = vector.broadcast %25 : vector<1x32xf32> to vector<16x32xf32>
    %180 = arith.addf %178, %179 : vector<16x32xf32>
    %181 = arith.addf %160, %180 : vector<16x32xf32>
    %cst_112 = arith.constant 0.000000e+00 : f32
    %182 = vector.broadcast %cst_112 : f32 to vector<16x32xf32>
    %183 = arith.maximumf %181, %182 : vector<16x32xf32>
    %cst_113 = arith.constant 0.000000e+00 : f32
    %184 = vector.broadcast %cst_113 : f32 to vector<1x32xf32>
    %185 = vector.extract_strided_slice %183 {offsets = [0, 0], sizes = [15, 32], strides = [1, 1]} : vector<16x32xf32> to vector<15x32xf32>
    %186 = tpu.concatenate %184, %185 in 0 : vector<1x32xf32>, vector<15x32xf32> -> vector<16x32xf32>
    %187 = vector.extract_strided_slice %183 {offsets = [1, 0], sizes = [15, 32], strides = [1, 1]} : vector<16x32xf32> to vector<15x32xf32>
    %188 = tpu.concatenate %187, %184 in 0 : vector<15x32xf32>, vector<1x32xf32> -> vector<16x32xf32>
    %189 = tpu.concatenate %186, %183, %188 in 1 : vector<16x32xf32>, vector<16x32xf32>, vector<16x32xf32> -> vector<16x96xf32>
    %190 = arith.truncf %189 : vector<16x96xf32> to vector<16x96xbf16>
    %191 = arith.truncf %30 : vector<96x32xf32> to vector<96x32xbf16>
    %cst_114 = arith.constant dense<0.000000e+00> : vector<16x32xf32>
    %192 = tpu.matmul %190, %191, %cst_114 {dimension_numbers = #tpu.dot_dimension_numbers<[1], [0], [0], [1], [0, 0, 1, 1], [], []>} : vector<16x96xbf16>, vector<96x32xbf16>, vector<16x32xf32> -> vector<16x32xf32>
    %193 = vector.broadcast %28 : vector<1x32xf32> to vector<16x32xf32>
    %194 = arith.addf %192, %193 : vector<16x32xf32>
    %cst_115 = arith.constant 0.000000e+00 : f32
    %195 = vector.broadcast %cst_115 : f32 to vector<16x32xf32>
    %196 = arith.maximumf %194, %195 : vector<16x32xf32>
    %197 = arith.truncf %196 : vector<16x32xf32> to vector<16x32xbf16>
    %198 = arith.truncf %31 : vector<32x32xf32> to vector<32x32xbf16>
    %cst_116 = arith.constant dense<0.000000e+00> : vector<16x32xf32>
    %199 = tpu.matmul %197, %198, %cst_116 {dimension_numbers = #tpu.dot_dimension_numbers<[1], [0], [0], [1], [0, 0, 1, 1], [], []>} : vector<16x32xbf16>, vector<32x32xbf16>, vector<16x32xf32> -> vector<16x32xf32>
    %200 = vector.broadcast %29 : vector<1x32xf32> to vector<16x32xf32>
    %201 = arith.addf %199, %200 : vector<16x32xf32>
    %202 = arith.addf %181, %201 : vector<16x32xf32>
    %cst_117 = arith.constant 0.000000e+00 : f32
    %203 = vector.broadcast %cst_117 : f32 to vector<16x32xf32>
    %204 = arith.maximumf %202, %203 : vector<16x32xf32>
    %cst_118 = arith.constant 0.000000e+00 : f32
    %205 = vector.broadcast %cst_118 : f32 to vector<1x32xf32>
    %206 = vector.extract_strided_slice %204 {offsets = [0, 0], sizes = [15, 32], strides = [1, 1]} : vector<16x32xf32> to vector<15x32xf32>
    %207 = tpu.concatenate %205, %206 in 0 : vector<1x32xf32>, vector<15x32xf32> -> vector<16x32xf32>
    %208 = vector.extract_strided_slice %204 {offsets = [1, 0], sizes = [15, 32], strides = [1, 1]} : vector<16x32xf32> to vector<15x32xf32>
    %209 = tpu.concatenate %208, %205 in 0 : vector<15x32xf32>, vector<1x32xf32> -> vector<16x32xf32>
    %210 = tpu.concatenate %207, %204, %209 in 1 : vector<16x32xf32>, vector<16x32xf32>, vector<16x32xf32> -> vector<16x96xf32>
    %211 = arith.truncf %210 : vector<16x96xf32> to vector<16x96xbf16>
    %212 = arith.truncf %19 : vector<96x64xf32> to vector<96x64xbf16>
    %cst_119 = arith.constant dense<0.000000e+00> : vector<16x64xf32>
    %213 = tpu.matmul %211, %212, %cst_119 {dimension_numbers = #tpu.dot_dimension_numbers<[1], [0], [0], [1], [0, 0, 1, 1], [], []>} : vector<16x96xbf16>, vector<96x64xbf16>, vector<16x64xf32> -> vector<16x64xf32>
    %214 = vector.broadcast %18 : vector<1x64xf32> to vector<16x64xf32>
    %215 = arith.addf %213, %214 : vector<16x64xf32>
    %216 = tpu.concatenate %128, %215 in 1 : vector<16x64xf32>, vector<16x64xf32> -> vector<16x128xf32>
    %cst_120 = arith.constant 0.000000e+00 : f32
    %217 = vector.broadcast %cst_120 : f32 to vector<16x128xf32>
    %218 = arith.maximumf %216, %217 : vector<16x128xf32>
    %cst_121 = arith.constant 0.000000e+00 : f32
    %219 = vector.broadcast %cst_121 : f32 to vector<1x128xf32>
    %220 = vector.extract_strided_slice %218 {offsets = [0, 0], sizes = [15, 128], strides = [1, 1]} : vector<16x128xf32> to vector<15x128xf32>
    %221 = tpu.concatenate %219, %220 in 0 : vector<1x128xf32>, vector<15x128xf32> -> vector<16x128xf32>
    %222 = vector.extract_strided_slice %218 {offsets = [1, 0], sizes = [15, 128], strides = [1, 1]} : vector<16x128xf32> to vector<15x128xf32>
    %223 = tpu.concatenate %222, %219 in 0 : vector<15x128xf32>, vector<1x128xf32> -> vector<16x128xf32>
    %224 = tpu.concatenate %221, %218, %223 in 1 : vector<16x128xf32>, vector<16x128xf32>, vector<16x128xf32> -> vector<16x384xf32>
    %225 = arith.truncf %224 : vector<16x384xf32> to vector<16x384xbf16>
    %226 = arith.truncf %35 : vector<384x128xf32> to vector<384x128xbf16>
    %cst_122 = arith.constant dense<0.000000e+00> : vector<16x128xf32>
    %227 = tpu.matmul %225, %226, %cst_122 {dimension_numbers = #tpu.dot_dimension_numbers<[1], [0], [0], [1], [0, 0, 1, 1], [], []>} : vector<16x384xbf16>, vector<384x128xbf16>, vector<16x128xf32> -> vector<16x128xf32>
    %228 = vector.broadcast %32 : vector<1x128xf32> to vector<16x128xf32>
    %229 = arith.addf %227, %228 : vector<16x128xf32>
    %cst_123 = arith.constant 0.000000e+00 : f32
    %230 = vector.broadcast %cst_123 : f32 to vector<16x128xf32>
    %231 = arith.maximumf %229, %230 : vector<16x128xf32>
    %232 = arith.truncf %231 : vector<16x128xf32> to vector<16x128xbf16>
    %233 = arith.truncf %36 : vector<128x128xf32> to vector<128x128xbf16>
    %cst_124 = arith.constant dense<0.000000e+00> : vector<16x128xf32>
    %234 = tpu.matmul %232, %233, %cst_124 {dimension_numbers = #tpu.dot_dimension_numbers<[1], [0], [0], [1], [0, 0, 1, 1], [], []>} : vector<16x128xbf16>, vector<128x128xbf16>, vector<16x128xf32> -> vector<16x128xf32>
    %235 = vector.broadcast %33 : vector<1x128xf32> to vector<16x128xf32>
    %236 = arith.addf %234, %235 : vector<16x128xf32>
    %237 = arith.truncf %216 : vector<16x128xf32> to vector<16x128xbf16>
    %238 = arith.truncf %37 : vector<128x128xf32> to vector<128x128xbf16>
    %cst_125 = arith.constant dense<0.000000e+00> : vector<16x128xf32>
    %239 = tpu.matmul %237, %238, %cst_125 {dimension_numbers = #tpu.dot_dimension_numbers<[1], [0], [0], [1], [0, 0, 1, 1], [], []>} : vector<16x128xbf16>, vector<128x128xbf16>, vector<16x128xf32> -> vector<16x128xf32>
    %240 = vector.broadcast %34 : vector<1x128xf32> to vector<16x128xf32>
    %241 = arith.addf %239, %240 : vector<16x128xf32>
    %242 = arith.negf %241 : vector<16x128xf32>
    %243 = math.exp %242 : vector<16x128xf32>
    %cst_126 = arith.constant 1.000000e+00 : f32
    %244 = vector.broadcast %cst_126 : f32 to vector<16x128xf32>
    %245 = arith.addf %244, %243 : vector<16x128xf32>
    %246 = arith.divf %244, %245 : vector<16x128xf32>
    %247 = arith.mulf %236, %246 : vector<16x128xf32>
    %248 = arith.addf %216, %247 : vector<16x128xf32>
    %c0_127 = arith.constant 0 : index
    %c0_128 = arith.constant 0 : index
    %c0_129 = arith.constant 0 : index
    %249 = vector.load %arg41[%c0_127, %c0_128, %c0_129] : memref<1x16x128xf32, #tpu.memory_space<vmem>>, vector<1x16x128xf32>
    %250 = vector.shape_cast %249 : vector<1x16x128xf32> to vector<16x128xf32>
    %251 = vector.shape_cast %248 : vector<16x128xf32> to vector<1x16x128xf32>
    tpu.vector_store %arg41[%c0_127, %c0_128, %c0_129], %251 {strides = array<i32>} : memref<1x16x128xf32, #tpu.memory_space<vmem>>, vector<1x16x128xf32>,
    return
  }
  func.func @transform_0(%arg0: i32) -> (i32, i32, i32) {
    %c0_i32 = arith.constant 0 : i32
    %c0_i32_0 = arith.constant 0 : i32
    %c0_i32_1 = arith.constant 0 : i32
    return %arg0, %c0_i32, %c0_i32_0 : i32, i32, i32
  }
  func.func @transform_1(%arg0: i32) -> (i32, i32, i32) {
    %c0_i32 = arith.constant 0 : i32
    %c0_i32_0 = arith.constant 0 : i32
    %c0_i32_1 = arith.constant 0 : i32
    return %arg0, %c0_i32, %c0_i32_0 : i32, i32, i32
  }
  func.func @transform_2(%arg0: i32) -> (i32, i32) {
    %c0_i32 = arith.constant 0 : i32
    %c0_i32_0 = arith.constant 0 : i32
    %c0_i32_1 = arith.constant 0 : i32
    return %c0_i32, %c0_i32_0 : i32, i32
  }
  func.func @transform_3(%arg0: i32) -> (i32, i32) {
    %c0_i32 = arith.constant 0 : i32
    %c0_i32_0 = arith.constant 0 : i32
    %c0_i32_1 = arith.constant 0 : i32
    return %c0_i32, %c0_i32_0 : i32, i32
  }
  func.func @transform_4(%arg0: i32) -> (i32, i32) {
    %c0_i32 = arith.constant 0 : i32
    %c0_i32_0 = arith.constant 0 : i32
    %c0_i32_1 = arith.constant 0 : i32
    return %c0_i32, %c0_i32_0 : i32, i32
  }
  func.func @transform_5(%arg0: i32) -> (i32, i32) {
    %c0_i32 = arith.constant 0 : i32
    %c0_i32_0 = arith.constant 0 : i32
    %c0_i32_1 = arith.constant 0 : i32
    return %c0_i32, %c0_i32_0 : i32, i32
  }
  func.func @transform_6(%arg0: i32) -> (i32, i32) {
    %c0_i32 = arith.constant 0 : i32
    %c0_i32_0 = arith.constant 0 : i32
    %c0_i32_1 = arith.constant 0 : i32
    return %c0_i32, %c0_i32_0 : i32, i32
  }
  func.func @transform_7(%arg0: i32) -> (i32, i32) {
    %c0_i32 = arith.constant 0 : i32
    %c0_i32_0 = arith.constant 0 : i32
    %c0_i32_1 = arith.constant 0 : i32
    return %c0_i32, %c0_i32_0 : i32, i32
  }
  func.func @transform_8(%arg0: i32) -> (i32, i32) {
    %c0_i32 = arith.constant 0 : i32
    %c0_i32_0 = arith.constant 0 : i32
    %c0_i32_1 = arith.constant 0 : i32
    return %c0_i32, %c0_i32_0 : i32, i32
  }
  func.func @transform_9(%arg0: i32) -> (i32, i32) {
    %c0_i32 = arith.constant 0 : i32
    %c0_i32_0 = arith.constant 0 : i32
    %c0_i32_1 = arith.constant 0 : i32
    return %c0_i32, %c0_i32_0 : i32, i32
  }
  func.func @transform_10(%arg0: i32) -> (i32, i32) {
    %c0_i32 = arith.constant 0 : i32
    %c0_i32_0 = arith.constant 0 : i32
    %c0_i32_1 = arith.constant 0 : i32
    return %c0_i32, %c0_i32_0 : i32, i32
  }
  func.func @transform_11(%arg0: i32) -> (i32, i32) {
    %c0_i32 = arith.constant 0 : i32
    %c0_i32_0 = arith.constant 0 : i32
    %c0_i32_1 = arith.constant 0 : i32
    return %c0_i32, %c0_i32_0 : i32, i32
  }
  func.func @transform_12(%arg0: i32) -> (i32, i32) {
    %c0_i32 = arith.constant 0 : i32
    %c0_i32_0 = arith.constant 0 : i32
    %c0_i32_1 = arith.constant 0 : i32
    return %c0_i32, %c0_i32_0 : i32, i32
  }
  func.func @transform_13(%arg0: i32) -> (i32, i32) {
    %c0_i32 = arith.constant 0 : i32
    %c0_i32_0 = arith.constant 0 : i32
    %c0_i32_1 = arith.constant 0 : i32
    return %c0_i32, %c0_i32_0 : i32, i32
  }
  func.func @transform_14(%arg0: i32) -> (i32, i32) {
    %c0_i32 = arith.constant 0 : i32
    %c0_i32_0 = arith.constant 0 : i32
    %c0_i32_1 = arith.constant 0 : i32
    return %c0_i32, %c0_i32_0 : i32, i32
  }
  func.func @transform_15(%arg0: i32) -> (i32, i32) {
    %c0_i32 = arith.constant 0 : i32
    %c0_i32_0 = arith.constant 0 : i32
    %c0_i32_1 = arith.constant 0 : i32
    return %c0_i32, %c0_i32_0 : i32, i32
  }
  func.func @transform_16(%arg0: i32) -> (i32, i32) {
    %c0_i32 = arith.constant 0 : i32
    %c0_i32_0 = arith.constant 0 : i32
    %c0_i32_1 = arith.constant 0 : i32
    return %c0_i32, %c0_i32_0 : i32, i32
  }
  func.func @transform_17(%arg0: i32) -> (i32, i32) {
    %c0_i32 = arith.constant 0 : i32
    %c0_i32_0 = arith.constant 0 : i32
    %c0_i32_1 = arith.constant 0 : i32
    return %c0_i32, %c0_i32_0 : i32, i32
  }
  func.func @transform_18(%arg0: i32) -> (i32, i32) {
    %c0_i32 = arith.constant 0 : i32
    %c0_i32_0 = arith.constant 0 : i32
    %c0_i32_1 = arith.constant 0 : i32
    return %c0_i32, %c0_i32_0 : i32, i32
  }
  func.func @transform_19(%arg0: i32) -> (i32, i32) {
    %c0_i32 = arith.constant 0 : i32
    %c0_i32_0 = arith.constant 0 : i32
    %c0_i32_1 = arith.constant 0 : i32
    return %c0_i32, %c0_i32_0 : i32, i32
  }
  func.func @transform_20(%arg0: i32) -> (i32, i32) {
    %c0_i32 = arith.constant 0 : i32
    %c0_i32_0 = arith.constant 0 : i32
    %c0_i32_1 = arith.constant 0 : i32
    return %c0_i32, %c0_i32_0 : i32, i32
  }
  func.func @transform_21(%arg0: i32) -> (i32, i32) {
    %c0_i32 = arith.constant 0 : i32
    %c0_i32_0 = arith.constant 0 : i32
    %c0_i32_1 = arith.constant 0 : i32
    return %c0_i32, %c0_i32_0 : i32, i32
  }
  func.func @transform_22(%arg0: i32) -> (i32, i32) {
    %c0_i32 = arith.constant 0 : i32
    %c0_i32_0 = arith.constant 0 : i32
    %c0_i32_1 = arith.constant 0 : i32
    return %c0_i32, %c0_i32_0 : i32, i32
  }
  func.func @transform_23(%arg0: i32) -> (i32, i32) {
    %c0_i32 = arith.constant 0 : i32
    %c0_i32_0 = arith.constant 0 : i32
    %c0_i32_1 = arith.constant 0 : i32
    return %c0_i32, %c0_i32_0 : i32, i32
  }
  func.func @transform_24(%arg0: i32) -> (i32, i32) {
    %c0_i32 = arith.constant 0 : i32
    %c0_i32_0 = arith.constant 0 : i32
    %c0_i32_1 = arith.constant 0 : i32
    return %c0_i32, %c0_i32_0 : i32, i32
  }
  func.func @transform_25(%arg0: i32) -> (i32, i32) {
    %c0_i32 = arith.constant 0 : i32
    %c0_i32_0 = arith.constant 0 : i32
    %c0_i32_1 = arith.constant 0 : i32
    return %c0_i32, %c0_i32_0 : i32, i32
  }
  func.func @transform_26(%arg0: i32) -> (i32, i32) {
    %c0_i32 = arith.constant 0 : i32
    %c0_i32_0 = arith.constant 0 : i32
    %c0_i32_1 = arith.constant 0 : i32
    return %c0_i32, %c0_i32_0 : i32, i32
  }
  func.func @transform_27(%arg0: i32) -> (i32, i32) {
    %c0_i32 = arith.constant 0 : i32
    %c0_i32_0 = arith.constant 0 : i32
    %c0_i32_1 = arith.constant 0 : i32
    return %c0_i32, %c0_i32_0 : i32, i32
  }
  func.func @transform_28(%arg0: i32) -> (i32, i32) {
    %c0_i32 = arith.constant 0 : i32
    %c0_i32_0 = arith.constant 0 : i32
    %c0_i32_1 = arith.constant 0 : i32
    return %c0_i32, %c0_i32_0 : i32, i32
  }
  func.func @transform_29(%arg0: i32) -> (i32, i32) {
    %c0_i32 = arith.constant 0 : i32
    %c0_i32_0 = arith.constant 0 : i32
    %c0_i32_1 = arith.constant 0 : i32
    return %c0_i32, %c0_i32_0 : i32, i32
  }
  func.func @transform_30(%arg0: i32) -> (i32, i32) {
    %c0_i32 = arith.constant 0 : i32
    %c0_i32_0 = arith.constant 0 : i32
    %c0_i32_1 = arith.constant 0 : i32
    return %c0_i32, %c0_i32_0 : i32, i32
  }
  func.func @transform_31(%arg0: i32) -> (i32, i32) {
    %c0_i32 = arith.constant 0 : i32
    %c0_i32_0 = arith.constant 0 : i32
    %c0_i32_1 = arith.constant 0 : i32
    return %c0_i32, %c0_i32_0 : i32, i32
  }
  func.func @transform_32(%arg0: i32) -> (i32, i32) {
    %c0_i32 = arith.constant 0 : i32
    %c0_i32_0 = arith.constant 0 : i32
    %c0_i32_1 = arith.constant 0 : i32
    return %c0_i32, %c0_i32_0 : i32, i32
  }
  func.func @transform_33(%arg0: i32) -> (i32, i32) {
    %c0_i32 = arith.constant 0 : i32
    %c0_i32_0 = arith.constant 0 : i32
    %c0_i32_1 = arith.constant 0 : i32
    return %c0_i32, %c0_i32_0 : i32, i32
  }
  func.func @transform_34(%arg0: i32) -> (i32, i32) {
    %c0_i32 = arith.constant 0 : i32
    %c0_i32_0 = arith.constant 0 : i32
    %c0_i32_1 = arith.constant 0 : i32
    return %c0_i32, %c0_i32_0 : i32, i32
  }
  func.func @transform_35(%arg0: i32) -> (i32, i32) {
    %c0_i32 = arith.constant 0 : i32
    %c0_i32_0 = arith.constant 0 : i32
    %c0_i32_1 = arith.constant 0 : i32
    return %c0_i32, %c0_i32_0 : i32, i32
  }
  func.func @transform_36(%arg0: i32) -> (i32, i32) {
    %c0_i32 = arith.constant 0 : i32
    %c0_i32_0 = arith.constant 0 : i32
    %c0_i32_1 = arith.constant 0 : i32
    return %c0_i32, %c0_i32_0 : i32, i32
  }
  func.func @transform_37(%arg0: i32) -> (i32, i32) {
    %c0_i32 = arith.constant 0 : i32
    %c0_i32_0 = arith.constant 0 : i32
    %c0_i32_1 = arith.constant 0 : i32
    return %c0_i32, %c0_i32_0 : i32, i32
  }
  func.func @transform_38(%arg0: i32) -> (i32, i32) {
    %c0_i32 = arith.constant 0 : i32
    %c0_i32_0 = arith.constant 0 : i32
    %c0_i32_1 = arith.constant 0 : i32
    return %c0_i32, %c0_i32_0 : i32, i32
  }
  func.func @transform_39(%arg0: i32) -> (i32, i32) {
    %c0_i32 = arith.constant 0 : i32
    %c0_i32_0 = arith.constant 0 : i32
    %c0_i32_1 = arith.constant 0 : i32
    return %c0_i32, %c0_i32_0 : i32, i32
  }
  func.func @transform_40(%arg0: i32) -> (i32, i32, i32) {
    %c0_i32 = arith.constant 0 : i32
    %c0_i32_0 = arith.constant 0 : i32
    %c0_i32_1 = arith.constant 0 : i32
    return %arg0, %c0_i32, %c0_i32_0 : i32, i32, i32
  }
}

</mosaic_0001>

<llo_original>
// kernel: tpu_custom_call.1
$region0: #{tpu_custom_call.1}
  #allocation0 [shape = 'u32[]', space=smem, size = 0x4, offset = 0x4, fixed_abs, tag = 'smem constant byte address 0x4 - core index']
  #allocation1 [shape = 'u32[144,128]{1,0:T(1,128)}', space=vmem, size = 0x12000, scoped, tag = 'internal scratch']
  %s0 = inlined_call_operand.smem [shape: u32[41], index: -1, kind: input, shape index: {}]
  %s1 = sld [smem:[%s0]]
  %s2 = scalar_lea.smem %s0, 1
  %s3 = sld [smem:[%s2]]
  %s4 = scalar_lea.smem %s0, 2
  %s5 = sld [smem:[%s4]]
  %s6 = scalar_lea.smem %s0, 3
  %s7 = sld [smem:[%s6]]
  %s8 = scalar_lea.smem %s0, 4
  %s9 = sld [smem:[%s8]]
  %s10 = scalar_lea.smem %s0, 5
  %s11 = sld [smem:[%s10]]
  %s12 = scalar_lea.smem %s0, 6
  %s13 = sld [smem:[%s12]]
  %s14 = scalar_lea.smem %s0, 7
  %s15 = sld [smem:[%s14]]
  %s16 = scalar_lea.smem %s0, 8
  %s17 = sld [smem:[%s16]]
  %s18 = scalar_lea.smem %s0, 9
  %s19 = sld [smem:[%s18]]
  %s20 = scalar_lea.smem %s0, 10
  %s21 = sld [smem:[%s20]]
  %s22 = scalar_lea.smem %s0, 11
  %s23 = sld [smem:[%s22]]
  %s24 = scalar_lea.smem %s0, 12
  %s25 = sld [smem:[%s24]]
  %s26 = scalar_lea.smem %s0, 13
  %s27 = sld [smem:[%s26]]
  %s28 = scalar_lea.smem %s0, 14
  %s29 = sld [smem:[%s28]]
  %s30 = scalar_lea.smem %s0, 15
  %s31 = sld [smem:[%s30]]
  %s32 = scalar_lea.smem %s0, 16
  %s33 = sld [smem:[%s32]]
  %s34 = scalar_lea.smem %s0, 17
  %s35 = sld [smem:[%s34]]
  %s36 = scalar_lea.smem %s0, 18
  %s37 = sld [smem:[%s36]]
  %s38 = scalar_lea.smem %s0, 19
  %s39 = sld [smem:[%s38]]
  %s40 = scalar_lea.smem %s0, 20
  %s41 = sld [smem:[%s40]]
  %s42 = scalar_lea.smem %s0, 21
  %s43 = sld [smem:[%s42]]
  %s44 = scalar_lea.smem %s0, 22
  %s45 = sld [smem:[%s44]]
  %s46 = scalar_lea.smem %s0, 23
  %s47 = sld [smem:[%s46]]
  %s48 = scalar_lea.smem %s0, 24
  %s49 = sld [smem:[%s48]]
  %s50 = scalar_lea.smem %s0, 25
  %s51 = sld [smem:[%s50]]
  %s52 = scalar_lea.smem %s0, 26
  %s53 = sld [smem:[%s52]]
  %s54 = scalar_lea.smem %s0, 27
  %s55 = sld [smem:[%s54]]
  %s56 = scalar_lea.smem %s0, 28
  %s57 = sld [smem:[%s56]]
  %s58 = scalar_lea.smem %s0, 29
  %s59 = sld [smem:[%s58]]
  %s60 = scalar_lea.smem %s0, 30
  %s61 = sld [smem:[%s60]]
  %s62 = scalar_lea.smem %s0, 31
  %s63 = sld [smem:[%s62]]
  %s64 = scalar_lea.smem %s0, 32
  %s65 = sld [smem:[%s64]]
  %s66 = scalar_lea.smem %s0, 33
  %s67 = sld [smem:[%s66]]
  %s68 = scalar_lea.smem %s0, 34
  %s69 = sld [smem:[%s68]]
  %s70 = scalar_lea.smem %s0, 35
  %s71 = sld [smem:[%s70]]
  %s72 = scalar_lea.smem %s0, 36
  %s73 = sld [smem:[%s72]]
  %s74 = scalar_lea.smem %s0, 37
  %s75 = sld [smem:[%s74]]
  %s76 = scalar_lea.smem %s0, 38
  %s77 = sld [smem:[%s76]]
  %s78 = scalar_lea.smem %s0, 39
  %s79 = sld [smem:[%s78]]
  %s80 = scalar_lea.smem %s0, 40
  %s81 = sld [smem:[%s80]]
  %s82 = sld [smem:[#allocation0]]
  $region193: #{tpu_custom_call.1} parent=0
    _
  %s84 = ssub.s32 1, %s82
  %s85 = scalar_select 0, %s84, %s82
  $region1: #{tpu_custom_call.1} parent=0
    #allocation2 [shape = 'u8[16384]{0}', space=vmem, size = 0x4000, scoped, tag = 'output window, operand 0']
    #allocation3 [shape = 's32[2]{0}', space=sflag, size = 0x8, scoped, tag = 'scoped memory for tpu_custom_call.1']
    %86 = vsyncpa [#allocation3], 0
    %s87 = scalar_lea.sflag [#allocation3], 1
    %88 = vsyncpa %s87, 0
    loop: start=0, step=1, limit=4
    $region2: #{tpu_custom_call.1} parent=1 // loop_pre_header
      _
    $region3: #{tpu_custom_call.1} parent=1 // loop_header
      %s90 = sphi 0, %s94
      %p91 = scmp.ge.s32.totalorder %s90, 4
      %s100 = sphi 0, %s102
      %s103 = sphi 0, %s100
      %s104 = sphi 0, %s103
      %s120 = sphi 0, %s104
      %s126 = sphi 0, %s128
      %s129 = sphi 0, %s126
      %s130 = sphi 0, %s129
      %s146 = sphi 0, %s130
      %s150 = sphi 0, %s150
      %s152 = sphi 0, %s150
      %s153 = sphi 0, %s152
      %s167 = sphi 0, %s153
      %s171 = sphi 0, %s171
      %s173 = sphi 0, %s171
      %s174 = sphi 0, %s173
      %s188 = sphi 0, %s174
      %s192 = sphi 0, %s192
      %s194 = sphi 0, %s192
      %s195 = sphi 0, %s194
      %s209 = sphi 0, %s195
      %s213 = sphi 0, %s213
      %s215 = sphi 0, %s213
      %s216 = sphi 0, %s215
      %s230 = sphi 0, %s216
      %s234 = sphi 0, %s234
      %s236 = sphi 0, %s234
      %s237 = sphi 0, %s236
      %s251 = sphi 0, %s237
      %s255 = sphi 0, %s255
      %s257 = sphi 0, %s255
      %s258 = sphi 0, %s257
      %s272 = sphi 0, %s258
      %s276 = sphi 0, %s276
      %s278 = sphi 0, %s276
      %s279 = sphi 0, %s278
      %s293 = sphi 0, %s279
      %s297 = sphi 0, %s297
      %s299 = sphi 0, %s297
      %s300 = sphi 0, %s299
      %s314 = sphi 0, %s300
      %s318 = sphi 0, %s318
      %s320 = sphi 0, %s318
      %s321 = sphi 0, %s320
      %s335 = sphi 0, %s321
      %s339 = sphi 0, %s339
      %s341 = sphi 0, %s339
      %s342 = sphi 0, %s341
      %s356 = sphi 0, %s342
      %s360 = sphi 0, %s360
      %s362 = sphi 0, %s360
      %s363 = sphi 0, %s362
      %s377 = sphi 0, %s363
      %s381 = sphi 0, %s381
      %s383 = sphi 0, %s381
      %s384 = sphi 0, %s383
      %s398 = sphi 0, %s384
      %s402 = sphi 0, %s402
      %s404 = sphi 0, %s402
      %s405 = sphi 0, %s404
      %s419 = sphi 0, %s405
      %s423 = sphi 0, %s423
      %s425 = sphi 0, %s423
      %s426 = sphi 0, %s425
      %s440 = sphi 0, %s426
      %s444 = sphi 0, %s444
      %s446 = sphi 0, %s444
      %s447 = sphi 0, %s446
      %s461 = sphi 0, %s447
      %s465 = sphi 0, %s465
      %s467 = sphi 0, %s465
      %s468 = sphi 0, %s467
      %s482 = sphi 0, %s468
      %s486 = sphi 0, %s486
      %s488 = sphi 0, %s486
      %s489 = sphi 0, %s488
      %s503 = sphi 0, %s489
      %s507 = sphi 0, %s507
      %s509 = sphi 0, %s507
      %s510 = sphi 0, %s509
      %s524 = sphi 0, %s510
      %s528 = sphi 0, %s528
      %s530 = sphi 0, %s528
      %s531 = sphi 0, %s530
      %s545 = sphi 0, %s531
      %s549 = sphi 0, %s549
      %s551 = sphi 0, %s549
      %s552 = sphi 0, %s551
      %s566 = sphi 0, %s552
      %s570 = sphi 0, %s570
      %s572 = sphi 0, %s570
      %s573 = sphi 0, %s572
      %s587 = sphi 0, %s573
      %s591 = sphi 0, %s591
      %s593 = sphi 0, %s591
      %s594 = sphi 0, %s593
      %s608 = sphi 0, %s594
      %s612 = sphi 0, %s612
      %s614 = sphi 0, %s612
      %s615 = sphi 0, %s614
      %s629 = sphi 0, %s615
      %s633 = sphi 0, %s633
      %s635 = sphi 0, %s633
      %s636 = sphi 0, %s635
      %s650 = sphi 0, %s636
      %s654 = sphi 0, %s654
      %s656 = sphi 0, %s654
      %s657 = sphi 0, %s656
      %s671 = sphi 0, %s657
      %s675 = sphi 0, %s675
      %s677 = sphi 0, %s675
      %s678 = sphi 0, %s677
      %s692 = sphi 0, %s678
      %s696 = sphi 0, %s696
      %s698 = sphi 0, %s696
      %s699 = sphi 0, %s698
      %s713 = sphi 0, %s699
      %s717 = sphi 0, %s717
      %s719 = sphi 0, %s717
      %s720 = sphi 0, %s719
      %s734 = sphi 0, %s720
      %s738 = sphi 0, %s738
      %s740 = sphi 0, %s738
      %s741 = sphi 0, %s740
      %s755 = sphi 0, %s741
      %s759 = sphi 0, %s759
      %s761 = sphi 0, %s759
      %s762 = sphi 0, %s761
      %s776 = sphi 0, %s762
      %s780 = sphi 0, %s780
      %s782 = sphi 0, %s780
      %s783 = sphi 0, %s782
      %s797 = sphi 0, %s783
      %s801 = sphi 0, %s801
      %s803 = sphi 0, %s801
      %s804 = sphi 0, %s803
      %s818 = sphi 0, %s804
      %s822 = sphi 0, %s822
      %s824 = sphi 0, %s822
      %s825 = sphi 0, %s824
      %s839 = sphi 0, %s825
      %s843 = sphi 0, %s843
      %s845 = sphi 0, %s843
      %s846 = sphi 0, %s845
      %s860 = sphi 0, %s846
      %s864 = sphi 0, %s864
      %s866 = sphi 0, %s864
      %s867 = sphi 0, %s866
      %s881 = sphi 0, %s867
      %s885 = sphi 0, %s885
      %s887 = sphi 0, %s885
      %s888 = sphi 0, %s887
      %s902 = sphi 0, %s888
      %s906 = sphi 0, %s906
      %s908 = sphi 0, %s906
      %s909 = sphi 0, %s908
      %s923 = sphi 0, %s909
      %s927 = sphi 0, %s927
      %s929 = sphi 0, %s927
      %s930 = sphi 0, %s929
      %s944 = sphi 0, %s930
      %s950 = sphi 0, %s952
      %s953 = sphi 0, %s950
      %s954 = sphi 0, %s953
      %s970 = sphi 0, %s954
    $region4: #{tpu_custom_call.1} parent=1 // loop_header_branch
      %93 = sbr.rel (%p91) target = $region8
    $region5: #{tpu_custom_call.1} parent=1 // loop_body
      %s95 = ssub.s32 %s90, 1
      %s96 = ssub.s32 %s90, 2
      %s97 = sadd.s32 %s90, 1
      %s98 = ssub.s32 %s90, %s97
      %p99 = scmp.eq.s32.totalorder %s98, 0
      %s101 = sadd.s32 %s100, 1
      %s102 = scalar_select %p99, %s100, %s101
      %p105 = pneg %p99
      %p106 = scmp.eq.s32.totalorder %s90, 1
      %p107 = por %p105, %p106
      %p108 = scmp.ne.s32.totalorder %s100, %s103
      %p109 = scmp.eq.s32.totalorder %s90, 0
      %p110 = por %p108, %p109
      %p111 = scmp.ne.s32.totalorder %s100, %s103
      %p112 = scmp.eq.s32.totalorder %s95, 1
      %p113 = por %p111, %p112
      %p114 = scmp.ne.s32.totalorder %s103, %s104
      %p115 = scmp.eq.s32.totalorder %s95, 0
      %p116 = por %p114, %p115
      %p117 = scmp.ne.s32.totalorder %s103, %s104
      %p118 = scmp.eq.s32.totalorder %s96, 1
      %p119 = por %p117, %p118
      %p121 = scmp.ne.s32.totalorder %s104, %s120
      %p122 = scmp.eq.s32.totalorder %s96, 0
      %p123 = por %p121, %p122
      %s124 = ssub.s32 %s90, %s97
      %p125 = scmp.eq.s32.totalorder %s124, 0
      %s127 = sadd.s32 %s126, 1
      %s128 = scalar_select %p125, %s126, %s127
      %p131 = pneg %p125
      %p132 = scmp.eq.s32.totalorder %s90, 1
      %p133 = por %p131, %p132
      %p134 = scmp.ne.s32.totalorder %s126, %s129
      %p135 = scmp.eq.s32.totalorder %s90, 0
      %p136 = por %p134, %p135
      %p137 = scmp.ne.s32.totalorder %s126, %s129
      %p138 = scmp.eq.s32.totalorder %s95, 1
      %p139 = por %p137, %p138
      %p140 = scmp.ne.s32.totalorder %s129, %s130
      %p141 = scmp.eq.s32.totalorder %s95, 0
      %p142 = por %p140, %p141
      %p143 = scmp.ne.s32.totalorder %s129, %s130
      %p144 = scmp.eq.s32.totalorder %s96, 1
      %p145 = por %p143, %p144
      %p147 = scmp.ne.s32.totalorder %s130, %s146
      %p148 = scmp.eq.s32.totalorder %s96, 0
      %p149 = por %p147, %p148
      %s151 = sadd.s32 %s150, 1
      %p154 = scmp.eq.s32.totalorder %s90, 1
      %p155 = scmp.ne.s32.totalorder %s150, %s152
      %p156 = scmp.eq.s32.totalorder %s90, 0
      %p157 = por %p155, %p156
      %p158 = scmp.ne.s32.totalorder %s150, %s152
      %p159 = scmp.eq.s32.totalorder %s95, 1
      %p160 = por %p158, %p159
      %p161 = scmp.ne.s32.totalorder %s152, %s153
      %p162 = scmp.eq.s32.totalorder %s95, 0
      %p163 = por %p161, %p162
      %p164 = scmp.ne.s32.totalorder %s152, %s153
      %p165 = scmp.eq.s32.totalorder %s96, 1
      %p166 = por %p164, %p165
      %p168 = scmp.ne.s32.totalorder %s153, %s167
      %p169 = scmp.eq.s32.totalorder %s96, 0
      %p170 = por %p168, %p169
      %s172 = sadd.s32 %s171, 1
      %p175 = scmp.eq.s32.totalorder %s90, 1
      %p176 = scmp.ne.s32.totalorder %s171, %s173
      %p177 = scmp.eq.s32.totalorder %s90, 0
      %p178 = por %p176, %p177
      %p179 = scmp.ne.s32.totalorder %s171, %s173
      %p180 = scmp.eq.s32.totalorder %s95, 1
      %p181 = por %p179, %p180
      %p182 = scmp.ne.s32.totalorder %s173, %s174
      %p183 = scmp.eq.s32.totalorder %s95, 0
      %p184 = por %p182, %p183
      %p185 = scmp.ne.s32.totalorder %s173, %s174
      %p186 = scmp.eq.s32.totalorder %s96, 1
      %p187 = por %p185, %p186
      %p189 = scmp.ne.s32.totalorder %s174, %s188
      %p190 = scmp.eq.s32.totalorder %s96, 0
      %p191 = por %p189, %p190
      %s193 = sadd.s32 %s192, 1
      %p196 = scmp.eq.s32.totalorder %s90, 1
      %p197 = scmp.ne.s32.totalorder %s192, %s194
      %p198 = scmp.eq.s32.totalorder %s90, 0
      %p199 = por %p197, %p198
      %p200 = scmp.ne.s32.totalorder %s192, %s194
      %p201 = scmp.eq.s32.totalorder %s95, 1
      %p202 = por %p200, %p201
      %p203 = scmp.ne.s32.totalorder %s194, %s195
      %p204 = scmp.eq.s32.totalorder %s95, 0
      %p205 = por %p203, %p204
      %p206 = scmp.ne.s32.totalorder %s194, %s195
      %p207 = scmp.eq.s32.totalorder %s96, 1
      %p208 = por %p206, %p207
      %p210 = scmp.ne.s32.totalorder %s195, %s209
      %p211 = scmp.eq.s32.totalorder %s96, 0
      %p212 = por %p210, %p211
      %s214 = sadd.s32 %s213, 1
      %p217 = scmp.eq.s32.totalorder %s90, 1
      %p218 = scmp.ne.s32.totalorder %s213, %s215
      %p219 = scmp.eq.s32.totalorder %s90, 0
      %p220 = por %p218, %p219
      %p221 = scmp.ne.s32.totalorder %s213, %s215
      %p222 = scmp.eq.s32.totalorder %s95, 1
      %p223 = por %p221, %p222
      %p224 = scmp.ne.s32.totalorder %s215, %s216
      %p225 = scmp.eq.s32.totalorder %s95, 0
      %p226 = por %p224, %p225
      %p227 = scmp.ne.s32.totalorder %s215, %s216
      %p228 = scmp.eq.s32.totalorder %s96, 1
      %p229 = por %p227, %p228
      %p231 = scmp.ne.s32.totalorder %s216, %s230
      %p232 = scmp.eq.s32.totalorder %s96, 0
      %p233 = por %p231, %p232
      %s235 = sadd.s32 %s234, 1
      %p238 = scmp.eq.s32.totalorder %s90, 1
      %p239 = scmp.ne.s32.totalorder %s234, %s236
      %p240 = scmp.eq.s32.totalorder %s90, 0
      %p241 = por %p239, %p240
      %p242 = scmp.ne.s32.totalorder %s234, %s236
      %p243 = scmp.eq.s32.totalorder %s95, 1
      %p244 = por %p242, %p243
      %p245 = scmp.ne.s32.totalorder %s236, %s237
      %p246 = scmp.eq.s32.totalorder %s95, 0
      %p247 = por %p245, %p246
      %p248 = scmp.ne.s32.totalorder %s236, %s237
      %p249 = scmp.eq.s32.totalorder %s96, 1
      %p250 = por %p248, %p249
      %p252 = scmp.ne.s32.totalorder %s237, %s251
      %p253 = scmp.eq.s32.totalorder %s96, 0
      %p254 = por %p252, %p253
      %s256 = sadd.s32 %s255, 1
      %p259 = scmp.eq.s32.totalorder %s90, 1
      %p260 = scmp.ne.s32.totalorder %s255, %s257
      %p261 = scmp.eq.s32.totalorder %s90, 0
      %p262 = por %p260, %p261
      %p263 = scmp.ne.s32.totalorder %s255, %s257
      %p264 = scmp.eq.s32.totalorder %s95, 1
      %p265 = por %p263, %p264
      %p266 = scmp.ne.s32.totalorder %s257, %s258
      %p267 = scmp.eq.s32.totalorder %s95, 0
      %p268 = por %p266, %p267
      %p269 = scmp.ne.s32.totalorder %s257, %s258
      %p270 = scmp.eq.s32.totalorder %s96, 1
      %p271 = por %p269, %p270
      %p273 = scmp.ne.s32.totalorder %s258, %s272
      %p274 = scmp.eq.s32.totalorder %s96, 0
      %p275 = por %p273, %p274
      %s277 = sadd.s32 %s276, 1
      %p280 = scmp.eq.s32.totalorder %s90, 1
      %p281 = scmp.ne.s32.totalorder %s276, %s278
      %p282 = scmp.eq.s32.totalorder %s90, 0
      %p283 = por %p281, %p282
      %p284 = scmp.ne.s32.totalorder %s276, %s278
      %p285 = scmp.eq.s32.totalorder %s95, 1
      %p286 = por %p284, %p285
      %p287 = scmp.ne.s32.totalorder %s278, %s279
      %p288 = scmp.eq.s32.totalorder %s95, 0
      %p289 = por %p287, %p288
      %p290 = scmp.ne.s32.totalorder %s278, %s279
      %p291 = scmp.eq.s32.totalorder %s96, 1
      %p292 = por %p290, %p291
      %p294 = scmp.ne.s32.totalorder %s279, %s293
      %p295 = scmp.eq.s32.totalorder %s96, 0
      %p296 = por %p294, %p295
      %s298 = sadd.s32 %s297, 1
      %p301 = scmp.eq.s32.totalorder %s90, 1
      %p302 = scmp.ne.s32.totalorder %s297, %s299
      %p303 = scmp.eq.s32.totalorder %s90, 0
      %p304 = por %p302, %p303
      %p305 = scmp.ne.s32.totalorder %s297, %s299
      %p306 = scmp.eq.s32.totalorder %s95, 1
      %p307 = por %p305, %p306
      %p308 = scmp.ne.s32.totalorder %s299, %s300
      %p309 = scmp.eq.s32.totalorder %s95, 0
      %p310 = por %p308, %p309
      %p311 = scmp.ne.s32.totalorder %s299, %s300
      %p312 = scmp.eq.s32.totalorder %s96, 1
      %p313 = por %p311, %p312
      %p315 = scmp.ne.s32.totalorder %s300, %s314
      %p316 = scmp.eq.s32.totalorder %s96, 0
      %p317 = por %p315, %p316
      %s319 = sadd.s32 %s318, 1
      %p322 = scmp.eq.s32.totalorder %s90, 1
      %p323 = scmp.ne.s32.totalorder %s318, %s320
      %p324 = scmp.eq.s32.totalorder %s90, 0
      %p325 = por %p323, %p324
      %p326 = scmp.ne.s32.totalorder %s318, %s320
      %p327 = scmp.eq.s32.totalorder %s95, 1
      %p328 = por %p326, %p327
      %p329 = scmp.ne.s32.totalorder %s320, %s321
      %p330 = scmp.eq.s32.totalorder %s95, 0
      %p331 = por %p329, %p330
      %p332 = scmp.ne.s32.totalorder %s320, %s321
      %p333 = scmp.eq.s32.totalorder %s96, 1
      %p334 = por %p332, %p333
      %p336 = scmp.ne.s32.totalorder %s321, %s335
      %p337 = scmp.eq.s32.totalorder %s96, 0
      %p338 = por %p336, %p337
      %s340 = sadd.s32 %s339, 1
      %p343 = scmp.eq.s32.totalorder %s90, 1
      %p344 = scmp.ne.s32.totalorder %s339, %s341
      %p345 = scmp.eq.s32.totalorder %s90, 0
      %p346 = por %p344, %p345
      %p347 = scmp.ne.s32.totalorder %s339, %s341
      %p348 = scmp.eq.s32.totalorder %s95, 1
      %p349 = por %p347, %p348
      %p350 = scmp.ne.s32.totalorder %s341, %s342
      %p351 = scmp.eq.s32.totalorder %s95, 0
      %p352 = por %p350, %p351
      %p353 = scmp.ne.s32.totalorder %s341, %s342
      %p354 = scmp.eq.s32.totalorder %s96, 1
      %p355 = por %p353, %p354
      %p357 = scmp.ne.s32.totalorder %s342, %s356
      %p358 = scmp.eq.s32.totalorder %s96, 0
      %p359 = por %p357, %p358
      %s361 = sadd.s32 %s360, 1
      %p364 = scmp.eq.s32.totalorder %s90, 1
      %p365 = scmp.ne.s32.totalorder %s360, %s362
      %p366 = scmp.eq.s32.totalorder %s90, 0
      %p367 = por %p365, %p366
      %p368 = scmp.ne.s32.totalorder %s360, %s362
      %p369 = scmp.eq.s32.totalorder %s95, 1
      %p370 = por %p368, %p369
      %p371 = scmp.ne.s32.totalorder %s362, %s363
      %p372 = scmp.eq.s32.totalorder %s95, 0
      %p373 = por %p371, %p372
      %p374 = scmp.ne.s32.totalorder %s362, %s363
      %p375 = scmp.eq.s32.totalorder %s96, 1
      %p376 = por %p374, %p375
      %p378 = scmp.ne.s32.totalorder %s363, %s377
      %p379 = scmp.eq.s32.totalorder %s96, 0
      %p380 = por %p378, %p379
      %s382 = sadd.s32 %s381, 1
      %p385 = scmp.eq.s32.totalorder %s90, 1
      %p386 = scmp.ne.s32.totalorder %s381, %s383
      %p387 = scmp.eq.s32.totalorder %s90, 0
      %p388 = por %p386, %p387
      %p389 = scmp.ne.s32.totalorder %s381, %s383
      %p390 = scmp.eq.s32.totalorder %s95, 1
      %p391 = por %p389, %p390
      %p392 = scmp.ne.s32.totalorder %s383, %s384
      %p393 = scmp.eq.s32.totalorder %s95, 0
      %p394 = por %p392, %p393
      %p395 = scmp.ne.s32.totalorder %s383, %s384
      %p396 = scmp.eq.s32.totalorder %s96, 1
      %p397 = por %p395, %p396
      %p399 = scmp.ne.s32.totalorder %s384, %s398
      %p400 = scmp.eq.s32.totalorder %s96, 0
      %p401 = por %p399, %p400
      %s403 = sadd.s32 %s402, 1
      %p406 = scmp.eq.s32.totalorder %s90, 1
      %p407 = scmp.ne.s32.totalorder %s402, %s404
      %p408 = scmp.eq.s32.totalorder %s90, 0
      %p409 = por %p407, %p408
      %p410 = scmp.ne.s32.totalorder %s402, %s404
      %p411 = scmp.eq.s32.totalorder %s95, 1
      %p412 = por %p410, %p411
      %p413 = scmp.ne.s32.totalorder %s404, %s405
      %p414 = scmp.eq.s32.totalorder %s95, 0
      %p415 = por %p413, %p414
      %p416 = scmp.ne.s32.totalorder %s404, %s405
      %p417 = scmp.eq.s32.totalorder %s96, 1
      %p418 = por %p416, %p417
      %p420 = scmp.ne.s32.totalorder %s405, %s419
      %p421 = scmp.eq.s32.totalorder %s96, 0
      %p422 = por %p420, %p421
      %s424 = sadd.s32 %s423, 1
      %p427 = scmp.eq.s32.totalorder %s90, 1
      %p428 = scmp.ne.s32.totalorder %s423, %s425
      %p429 = scmp.eq.s32.totalorder %s90, 0
      %p430 = por %p428, %p429
      %p431 = scmp.ne.s32.totalorder %s423, %s425
      %p432 = scmp.eq.s32.totalorder %s95, 1
      %p433 = por %p431, %p432
      %p434 = scmp.ne.s32.totalorder %s425, %s426
      %p435 = scmp.eq.s32.totalorder %s95, 0
      %p436 = por %p434, %p435
      %p437 = scmp.ne.s32.totalorder %s425, %s426
      %p438 = scmp.eq.s32.totalorder %s96, 1
      %p439 = por %p437, %p438
      %p441 = scmp.ne.s32.totalorder %s426, %s440
      %p442 = scmp.eq.s32.totalorder %s96, 0
      %p443 = por %p441, %p442
      %s445 = sadd.s32 %s444, 1
      %p448 = scmp.eq.s32.totalorder %s90, 1
      %p449 = scmp.ne.s32.totalorder %s444, %s446
      %p450 = scmp.eq.s32.totalorder %s90, 0
      %p451 = por %p449, %p450
      %p452 = scmp.ne.s32.totalorder %s444, %s446
      %p453 = scmp.eq.s32.totalorder %s95, 1
      %p454 = por %p452, %p453
      %p455 = scmp.ne.s32.totalorder %s446, %s447
      %p456 = scmp.eq.s32.totalorder %s95, 0
      %p457 = por %p455, %p456
      %p458 = scmp.ne.s32.totalorder %s446, %s447
      %p459 = scmp.eq.s32.totalorder %s96, 1
      %p460 = por %p458, %p459
      %p462 = scmp.ne.s32.totalorder %s447, %s461
      %p463 = scmp.eq.s32.totalorder %s96, 0
      %p464 = por %p462, %p463
      %s466 = sadd.s32 %s465, 1
      %p469 = scmp.eq.s32.totalorder %s90, 1
      %p470 = scmp.ne.s32.totalorder %s465, %s467
      %p471 = scmp.eq.s32.totalorder %s90, 0
      %p472 = por %p470, %p471
      %p473 = scmp.ne.s32.totalorder %s465, %s467
      %p474 = scmp.eq.s32.totalorder %s95, 1
      %p475 = por %p473, %p474
      %p476 = scmp.ne.s32.totalorder %s467, %s468
      %p477 = scmp.eq.s32.totalorder %s95, 0
      %p478 = por %p476, %p477
      %p479 = scmp.ne.s32.totalorder %s467, %s468
      %p480 = scmp.eq.s32.totalorder %s96, 1
      %p481 = por %p479, %p480
      %p483 = scmp.ne.s32.totalorder %s468, %s482
      %p484 = scmp.eq.s32.totalorder %s96, 0
      %p485 = por %p483, %p484
      %s487 = sadd.s32 %s486, 1
      %p490 = scmp.eq.s32.totalorder %s90, 1
      %p491 = scmp.ne.s32.totalorder %s486, %s488
      %p492 = scmp.eq.s32.totalorder %s90, 0
      %p493 = por %p491, %p492
      %p494 = scmp.ne.s32.totalorder %s486, %s488
      %p495 = scmp.eq.s32.totalorder %s95, 1
      %p496 = por %p494, %p495
      %p497 = scmp.ne.s32.totalorder %s488, %s489
      %p498 = scmp.eq.s32.totalorder %s95, 0
      %p499 = por %p497, %p498
      %p500 = scmp.ne.s32.totalorder %s488, %s489
      %p501 = scmp.eq.s32.totalorder %s96, 1
      %p502 = por %p500, %p501
      %p504 = scmp.ne.s32.totalorder %s489, %s503
      %p505 = scmp.eq.s32.totalorder %s96, 0
      %p506 = por %p504, %p505
      %s508 = sadd.s32 %s507, 1
      %p511 = scmp.eq.s32.totalorder %s90, 1
      %p512 = scmp.ne.s32.totalorder %s507, %s509
      %p513 = scmp.eq.s32.totalorder %s90, 0
      %p514 = por %p512, %p513
      %p515 = scmp.ne.s32.totalorder %s507, %s509
      %p516 = scmp.eq.s32.totalorder %s95, 1
      %p517 = por %p515, %p516
      %p518 = scmp.ne.s32.totalorder %s509, %s510
      %p519 = scmp.eq.s32.totalorder %s95, 0
      %p520 = por %p518, %p519
      %p521 = scmp.ne.s32.totalorder %s509, %s510
      %p522 = scmp.eq.s32.totalorder %s96, 1
      %p523 = por %p521, %p522
      %p525 = scmp.ne.s32.totalorder %s510, %s524
      %p526 = scmp.eq.s32.totalorder %s96, 0
      %p527 = por %p525, %p526
      %s529 = sadd.s32 %s528, 1
      %p532 = scmp.eq.s32.totalorder %s90, 1
      %p533 = scmp.ne.s32.totalorder %s528, %s530
      %p534 = scmp.eq.s32.totalorder %s90, 0
      %p535 = por %p533, %p534
      %p536 = scmp.ne.s32.totalorder %s528, %s530
      %p537 = scmp.eq.s32.totalorder %s95, 1
      %p538 = por %p536, %p537
      %p539 = scmp.ne.s32.totalorder %s530, %s531
      %p540 = scmp.eq.s32.totalorder %s95, 0
      %p541 = por %p539, %p540
      %p542 = scmp.ne.s32.totalorder %s530, %s531
      %p543 = scmp.eq.s32.totalorder %s96, 1
      %p544 = por %p542, %p543
      %p546 = scmp.ne.s32.totalorder %s531, %s545
      %p547 = scmp.eq.s32.totalorder %s96, 0
      %p548 = por %p546, %p547
      %s550 = sadd.s32 %s549, 1
      %p553 = scmp.eq.s32.totalorder %s90, 1
      %p554 = scmp.ne.s32.totalorder %s549, %s551
      %p555 = scmp.eq.s32.totalorder %s90, 0
      %p556 = por %p554, %p555
      %p557 = scmp.ne.s32.totalorder %s549, %s551
      %p558 = scmp.eq.s32.totalorder %s95, 1
      %p559 = por %p557, %p558
      %p560 = scmp.ne.s32.totalorder %s551, %s552
      %p561 = scmp.eq.s32.totalorder %s95, 0
      %p562 = por %p560, %p561
      %p563 = scmp.ne.s32.totalorder %s551, %s552
      %p564 = scmp.eq.s32.totalorder %s96, 1
      %p565 = por %p563, %p564
      %p567 = scmp.ne.s32.totalorder %s552, %s566
      %p568 = scmp.eq.s32.totalorder %s96, 0
      %p569 = por %p567, %p568
      %s571 = sadd.s32 %s570, 1
      %p574 = scmp.eq.s32.totalorder %s90, 1
      %p575 = scmp.ne.s32.totalorder %s570, %s572
      %p576 = scmp.eq.s32.totalorder %s90, 0
      %p577 = por %p575, %p576
      %p578 = scmp.ne.s32.totalorder %s570, %s572
      %p579 = scmp.eq.s32.totalorder %s95, 1
      %p580 = por %p578, %p579
      %p581 = scmp.ne.s32.totalorder %s572, %s573
      %p582 = scmp.eq.s32.totalorder %s95, 0
      %p583 = por %p581, %p582
      %p584 = scmp.ne.s32.totalorder %s572, %s573
      %p585 = scmp.eq.s32.totalorder %s96, 1
      %p586 = por %p584, %p585
      %p588 = scmp.ne.s32.totalorder %s573, %s587
      %p589 = scmp.eq.s32.totalorder %s96, 0
      %p590 = por %p588, %p589
      %s592 = sadd.s32 %s591, 1
      %p595 = scmp.eq.s32.totalorder %s90, 1
      %p596 = scmp.ne.s32.totalorder %s591, %s593
      %p597 = scmp.eq.s32.totalorder %s90, 0
      %p598 = por %p596, %p597
      %p599 = scmp.ne.s32.totalorder %s591, %s593
      %p600 = scmp.eq.s32.totalorder %s95, 1
      %p601 = por %p599, %p600
      %p602 = scmp.ne.s32.totalorder %s593, %s594
      %p603 = scmp.eq.s32.totalorder %s95, 0
      %p604 = por %p602, %p603
      %p605 = scmp.ne.s32.totalorder %s593, %s594
      %p606 = scmp.eq.s32.totalorder %s96, 1
      %p607 = por %p605, %p606
      %p609 = scmp.ne.s32.totalorder %s594, %s608
      %p610 = scmp.eq.s32.totalorder %s96, 0
      %p611 = por %p609, %p610
      %s613 = sadd.s32 %s612, 1
      %p616 = scmp.eq.s32.totalorder %s90, 1
      %p617 = scmp.ne.s32.totalorder %s612, %s614
      %p618 = scmp.eq.s32.totalorder %s90, 0
      %p619 = por %p617, %p618
      %p620 = scmp.ne.s32.totalorder %s612, %s614
      %p621 = scmp.eq.s32.totalorder %s95, 1
      %p622 = por %p620, %p621
      %p623 = scmp.ne.s32.totalorder %s614, %s615
      %p624 = scmp.eq.s32.totalorder %s95, 0
      %p625 = por %p623, %p624
      %p626 = scmp.ne.s32.totalorder %s614, %s615
      %p627 = scmp.eq.s32.totalorder %s96, 1
      %p628 = por %p626, %p627
      %p630 = scmp.ne.s32.totalorder %s615, %s629
      %p631 = scmp.eq.s32.totalorder %s96, 0
      %p632 = por %p630, %p631
      %s634 = sadd.s32 %s633, 1
      %p637 = scmp.eq.s32.totalorder %s90, 1
      %p638 = scmp.ne.s32.totalorder %s633, %s635
      %p639 = scmp.eq.s32.totalorder %s90, 0
      %p640 = por %p638, %p639
      %p641 = scmp.ne.s32.totalorder %s633, %s635
      %p642 = scmp.eq.s32.totalorder %s95, 1
      %p643 = por %p641, %p642
      %p644 = scmp.ne.s32.totalorder %s635, %s636
      %p645 = scmp.eq.s32.totalorder %s95, 0
      %p646 = por %p644, %p645
      %p647 = scmp.ne.s32.totalorder %s635, %s636
      %p648 = scmp.eq.s32.totalorder %s96, 1
      %p649 = por %p647, %p648
      %p651 = scmp.ne.s32.totalorder %s636, %s650
      %p652 = scmp.eq.s32.totalorder %s96, 0
      %p653 = por %p651, %p652
      %s655 = sadd.s32 %s654, 1
      %p658 = scmp.eq.s32.totalorder %s90, 1
      %p659 = scmp.ne.s32.totalorder %s654, %s656
      %p660 = scmp.eq.s32.totalorder %s90, 0
      %p661 = por %p659, %p660
      %p662 = scmp.ne.s32.totalorder %s654, %s656
      %p663 = scmp.eq.s32.totalorder %s95, 1
      %p664 = por %p662, %p663
      %p665 = scmp.ne.s32.totalorder %s656, %s657
      %p666 = scmp.eq.s32.totalorder %s95, 0
      %p667 = por %p665, %p666
      %p668 = scmp.ne.s32.totalorder %s656, %s657
      %p669 = scmp.eq.s32.totalorder %s96, 1
      %p670 = por %p668, %p669
      %p672 = scmp.ne.s32.totalorder %s657, %s671
      %p673 = scmp.eq.s32.totalorder %s96, 0
      %p674 = por %p672, %p673
      %s676 = sadd.s32 %s675, 1
      %p679 = scmp.eq.s32.totalorder %s90, 1
      %p680 = scmp.ne.s32.totalorder %s675, %s677
      %p681 = scmp.eq.s32.totalorder %s90, 0
      %p682 = por %p680, %p681
      %p683 = scmp.ne.s32.totalorder %s675, %s677
      %p684 = scmp.eq.s32.totalorder %s95, 1
      %p685 = por %p683, %p684
      %p686 = scmp.ne.s32.totalorder %s677, %s678
      %p687 = scmp.eq.s32.totalorder %s95, 0
      %p688 = por %p686, %p687
      %p689 = scmp.ne.s32.totalorder %s677, %s678
      %p690 = scmp.eq.s32.totalorder %s96, 1
      %p691 = por %p689, %p690
      %p693 = scmp.ne.s32.totalorder %s678, %s692
      %p694 = scmp.eq.s32.totalorder %s96, 0
      %p695 = por %p693, %p694
      %s697 = sadd.s32 %s696, 1
      %p700 = scmp.eq.s32.totalorder %s90, 1
      %p701 = scmp.ne.s32.totalorder %s696, %s698
      %p702 = scmp.eq.s32.totalorder %s90, 0
      %p703 = por %p701, %p702
      %p704 = scmp.ne.s32.totalorder %s696, %s698
      %p705 = scmp.eq.s32.totalorder %s95, 1
      %p706 = por %p704, %p705
      %p707 = scmp.ne.s32.totalorder %s698, %s699
      %p708 = scmp.eq.s32.totalorder %s95, 0
      %p709 = por %p707, %p708
      %p710 = scmp.ne.s32.totalorder %s698, %s699
      %p711 = scmp.eq.s32.totalorder %s96, 1
      %p712 = por %p710, %p711
      %p714 = scmp.ne.s32.totalorder %s699, %s713
      %p715 = scmp.eq.s32.totalorder %s96, 0
      %p716 = por %p714, %p715
      %s718 = sadd.s32 %s717, 1
      %p721 = scmp.eq.s32.totalorder %s90, 1
      %p722 = scmp.ne.s32.totalorder %s717, %s719
      %p723 = scmp.eq.s32.totalorder %s90, 0
      %p724 = por %p722, %p723
      %p725 = scmp.ne.s32.totalorder %s717, %s719
      %p726 = scmp.eq.s32.totalorder %s95, 1
      %p727 = por %p725, %p726
      %p728 = scmp.ne.s32.totalorder %s719, %s720
      %p729 = scmp.eq.s32.totalorder %s95, 0
      %p730 = por %p728, %p729
      %p731 = scmp.ne.s32.totalorder %s719, %s720
      %p732 = scmp.eq.s32.totalorder %s96, 1
      %p733 = por %p731, %p732
      %p735 = scmp.ne.s32.totalorder %s720, %s734
      %p736 = scmp.eq.s32.totalorder %s96, 0
      %p737 = por %p735, %p736
      %s739 = sadd.s32 %s738, 1
      %p742 = scmp.eq.s32.totalorder %s90, 1
      %p743 = scmp.ne.s32.totalorder %s738, %s740
      %p744 = scmp.eq.s32.totalorder %s90, 0
      %p745 = por %p743, %p744
      %p746 = scmp.ne.s32.totalorder %s738, %s740
      %p747 = scmp.eq.s32.totalorder %s95, 1
      %p748 = por %p746, %p747
      %p749 = scmp.ne.s32.totalorder %s740, %s741
      %p750 = scmp.eq.s32.totalorder %s95, 0
      %p751 = por %p749, %p750
      %p752 = scmp.ne.s32.totalorder %s740, %s741
      %p753 = scmp.eq.s32.totalorder %s96, 1
      %p754 = por %p752, %p753
      %p756 = scmp.ne.s32.totalorder %s741, %s755
      %p757 = scmp.eq.s32.totalorder %s96, 0
      %p758 = por %p756, %p757
      %s760 = sadd.s32 %s759, 1
      %p763 = scmp.eq.s32.totalorder %s90, 1
      %p764 = scmp.ne.s32.totalorder %s759, %s761
      %p765 = scmp.eq.s32.totalorder %s90, 0
      %p766 = por %p764, %p765
      %p767 = scmp.ne.s32.totalorder %s759, %s761
      %p768 = scmp.eq.s32.totalorder %s95, 1
      %p769 = por %p767, %p768
      %p770 = scmp.ne.s32.totalorder %s761, %s762
      %p771 = scmp.eq.s32.totalorder %s95, 0
      %p772 = por %p770, %p771
      %p773 = scmp.ne.s32.totalorder %s761, %s762
      %p774 = scmp.eq.s32.totalorder %s96, 1
      %p775 = por %p773, %p774
      %p777 = scmp.ne.s32.totalorder %s762, %s776
      %p778 = scmp.eq.s32.totalorder %s96, 0
      %p779 = por %p777, %p778
      %s781 = sadd.s32 %s780, 1
      %p784 = scmp.eq.s32.totalorder %s90, 1
      %p785 = scmp.ne.s32.totalorder %s780, %s782
      %p786 = scmp.eq.s32.totalorder %s90, 0
      %p787 = por %p785, %p786
      %p788 = scmp.ne.s32.totalorder %s780, %s782
      %p789 = scmp.eq.s32.totalorder %s95, 1
      %p790 = por %p788, %p789
      %p791 = scmp.ne.s32.totalorder %s782, %s783
      %p792 = scmp.eq.s32.totalorder %s95, 0
      %p793 = por %p791, %p792
      %p794 = scmp.ne.s32.totalorder %s782, %s783
      %p795 = scmp.eq.s32.totalorder %s96, 1
      %p796 = por %p794, %p795
      %p798 = scmp.ne.s32.totalorder %s783, %s797
      %p799 = scmp.eq.s32.totalorder %s96, 0
      %p800 = por %p798, %p799
      %s802 = sadd.s32 %s801, 1
      %p805 = scmp.eq.s32.totalorder %s90, 1
      %p806 = scmp.ne.s32.totalorder %s801, %s803
      %p807 = scmp.eq.s32.totalorder %s90, 0
      %p808 = por %p806, %p807
      %p809 = scmp.ne.s32.totalorder %s801, %s803
      %p810 = scmp.eq.s32.totalorder %s95, 1
      %p811 = por %p809, %p810
      %p812 = scmp.ne.s32.totalorder %s803, %s804
      %p813 = scmp.eq.s32.totalorder %s95, 0
      %p814 = por %p812, %p813
      %p815 = scmp.ne.s32.totalorder %s803, %s804
      %p816 = scmp.eq.s32.totalorder %s96, 1
      %p817 = por %p815, %p816
      %p819 = scmp.ne.s32.totalorder %s804, %s818
      %p820 = scmp.eq.s32.totalorder %s96, 0
      %p821 = por %p819, %p820
      %s823 = sadd.s32 %s822, 1
      %p826 = scmp.eq.s32.totalorder %s90, 1
      %p827 = scmp.ne.s32.totalorder %s822, %s824
      %p828 = scmp.eq.s32.totalorder %s90, 0
      %p829 = por %p827, %p828
      %p830 = scmp.ne.s32.totalorder %s822, %s824
      %p831 = scmp.eq.s32.totalorder %s95, 1
      %p832 = por %p830, %p831
      %p833 = scmp.ne.s32.totalorder %s824, %s825
      %p834 = scmp.eq.s32.totalorder %s95, 0
      %p835 = por %p833, %p834
      %p836 = scmp.ne.s32.totalorder %s824, %s825
      %p837 = scmp.eq.s32.totalorder %s96, 1
      %p838 = por %p836, %p837
      %p840 = scmp.ne.s32.totalorder %s825, %s839
      %p841 = scmp.eq.s32.totalorder %s96, 0
      %p842 = por %p840, %p841
      %s844 = sadd.s32 %s843, 1
      %p847 = scmp.eq.s32.totalorder %s90, 1
      %p848 = scmp.ne.s32.totalorder %s843, %s845
      %p849 = scmp.eq.s32.totalorder %s90, 0
      %p850 = por %p848, %p849
      %p851 = scmp.ne.s32.totalorder %s843, %s845
      %p852 = scmp.eq.s32.totalorder %s95, 1
      %p853 = por %p851, %p852
      %p854 = scmp.ne.s32.totalorder %s845, %s846
      %p855 = scmp.eq.s32.totalorder %s95, 0
      %p856 = por %p854, %p855
      %p857 = scmp.ne.s32.totalorder %s845, %s846
      %p858 = scmp.eq.s32.totalorder %s96, 1
      %p859 = por %p857, %p858
      %p861 = scmp.ne.s32.totalorder %s846, %s860
      %p862 = scmp.eq.s32.totalorder %s96, 0
      %p863 = por %p861, %p862
      %s865 = sadd.s32 %s864, 1
      %p868 = scmp.eq.s32.totalorder %s90, 1
      %p869 = scmp.ne.s32.totalorder %s864, %s866
      %p870 = scmp.eq.s32.totalorder %s90, 0
      %p871 = por %p869, %p870
      %p872 = scmp.ne.s32.totalorder %s864, %s866
      %p873 = scmp.eq.s32.totalorder %s95, 1
      %p874 = por %p872, %p873
      %p875 = scmp.ne.s32.totalorder %s866, %s867
      %p876 = scmp.eq.s32.totalorder %s95, 0
      %p877 = por %p875, %p876
      %p878 = scmp.ne.s32.totalorder %s866, %s867
      %p879 = scmp.eq.s32.totalorder %s96, 1
      %p880 = por %p878, %p879
      %p882 = scmp.ne.s32.totalorder %s867, %s881
      %p883 = scmp.eq.s32.totalorder %s96, 0
      %p884 = por %p882, %p883
      %s886 = sadd.s32 %s885, 1
      %p889 = scmp.eq.s32.totalorder %s90, 1
      %p890 = scmp.ne.s32.totalorder %s885, %s887
      %p891 = scmp.eq.s32.totalorder %s90, 0
      %p892 = por %p890, %p891
      %p893 = scmp.ne.s32.totalorder %s885, %s887
      %p894 = scmp.eq.s32.totalorder %s95, 1
      %p895 = por %p893, %p894
      %p896 = scmp.ne.s32.totalorder %s887, %s888
      %p897 = scmp.eq.s32.totalorder %s95, 0
      %p898 = por %p896, %p897
      %p899 = scmp.ne.s32.totalorder %s887, %s888
      %p900 = scmp.eq.s32.totalorder %s96, 1
      %p901 = por %p899, %p900
      %p903 = scmp.ne.s32.totalorder %s888, %s902
      %p904 = scmp.eq.s32.totalorder %s96, 0
      %p905 = por %p903, %p904
      %s907 = sadd.s32 %s906, 1
      %p910 = scmp.eq.s32.totalorder %s90, 1
      %p911 = scmp.ne.s32.totalorder %s906, %s908
      %p912 = scmp.eq.s32.totalorder %s90, 0
      %p913 = por %p911, %p912
      %p914 = scmp.ne.s32.totalorder %s906, %s908
      %p915 = scmp.eq.s32.totalorder %s95, 1
      %p916 = por %p914, %p915
      %p917 = scmp.ne.s32.totalorder %s908, %s909
      %p918 = scmp.eq.s32.totalorder %s95, 0
      %p919 = por %p917, %p918
      %p920 = scmp.ne.s32.totalorder %s908, %s909
      %p921 = scmp.eq.s32.totalorder %s96, 1
      %p922 = por %p920, %p921
      %p924 = scmp.ne.s32.totalorder %s909, %s923
      %p925 = scmp.eq.s32.totalorder %s96, 0
      %p926 = por %p924, %p925
      %s928 = sadd.s32 %s927, 1
      %p931 = scmp.eq.s32.totalorder %s90, 1
      %p932 = scmp.ne.s32.totalorder %s927, %s929
      %p933 = scmp.eq.s32.totalorder %s90, 0
      %p934 = por %p932, %p933
      %p935 = scmp.ne.s32.totalorder %s927, %s929
      %p936 = scmp.eq.s32.totalorder %s95, 1
      %p937 = por %p935, %p936
      %p938 = scmp.ne.s32.totalorder %s929, %s930
      %p939 = scmp.eq.s32.totalorder %s95, 0
      %p940 = por %p938, %p939
      %p941 = scmp.ne.s32.totalorder %s929, %s930
      %p942 = scmp.eq.s32.totalorder %s96, 1
      %p943 = por %p941, %p942
      %p945 = scmp.ne.s32.totalorder %s930, %s944
      %p946 = scmp.eq.s32.totalorder %s96, 0
      %p947 = por %p945, %p946
      %s948 = ssub.s32 %s90, %s97
      %p949 = scmp.eq.s32.totalorder %s948, 0
      %s951 = sadd.s32 %s950, 1
      %s952 = scalar_select %p949, %s950, %s951
      %p955 = pneg %p949
      %p956 = scmp.eq.s32.totalorder %s90, 1
      %p957 = por %p955, %p956
      %p958 = scmp.ne.s32.totalorder %s950, %s953
      %p959 = scmp.eq.s32.totalorder %s90, 0
      %p960 = por %p958, %p959
      %p961 = scmp.ne.s32.totalorder %s950, %s953
      %p962 = scmp.eq.s32.totalorder %s95, 1
      %p963 = por %p961, %p962
      %p964 = scmp.ne.s32.totalorder %s953, %s954
      %p965 = scmp.eq.s32.totalorder %s95, 0
      %p966 = por %p964, %p965
      %p967 = scmp.ne.s32.totalorder %s953, %s954
      %p968 = scmp.eq.s32.totalorder %s96, 1
      %p969 = por %p967, %p968
      %p971 = scmp.ne.s32.totalorder %s954, %s970
      %p972 = scmp.eq.s32.totalorder %s96, 0
      %p973 = por %p971, %p972
      %p974 = scmp.le.s32.totalorder 1, %s90
      %p975 = scmp.lt.s32.totalorder %s90, 3
      %p976 = pnand %p974, %p975
      %p977 = pneg %p976
      // Predicated region
      $region9: #{tpu_custom_call.1} parent=5 // pred_check
        _
      $region10: #{tpu_custom_call.1} parent=5 // pred_check_branch
        %979 = sbr.rel (%p976) target = $region12
      $region11: #{tpu_custom_call.1} parent=5 // pred_region
        %s980 = ssub.s32 %s90, 1
        // Predicated region
        $region13: #{tpu_custom_call.1} parent=11 // pred_check
          %p981 = pneg %p163
        $region14: #{tpu_custom_call.1} parent=11 // pred_check_branch
          %983 = sbr.rel (%p981) target = $region16
        $region15: #{tpu_custom_call.1} parent=11 // pred_region
          _
        $region16: #{tpu_custom_call.1} parent=11 // pred_fallthru
          _
        // Predicated region
        $region17: #{tpu_custom_call.1} parent=11 // pred_check
          %p984 = pneg %p184
        $region18: #{tpu_custom_call.1} parent=11 // pred_check_branch
          %986 = sbr.rel (%p984) target = $region20
        $region19: #{tpu_custom_call.1} parent=11 // pred_region
          _
        $region20: #{tpu_custom_call.1} parent=11 // pred_fallthru
          _
        // Predicated region
        $region21: #{tpu_custom_call.1} parent=11 // pred_check
          %p987 = pneg %p205
        $region22: #{tpu_custom_call.1} parent=11 // pred_check_branch
          %989 = sbr.rel (%p987) target = $region24
        $region23: #{tpu_custom_call.1} parent=11 // pred_region
          _
        $region24: #{tpu_custom_call.1} parent=11 // pred_fallthru
          _
        // Predicated region
        $region25: #{tpu_custom_call.1} parent=11 // pred_check
          %p990 = pneg %p226
        $region26: #{tpu_custom_call.1} parent=11 // pred_check_branch
          %992 = sbr.rel (%p990) target = $region28
        $region27: #{tpu_custom_call.1} parent=11 // pred_region
          _
        $region28: #{tpu_custom_call.1} parent=11 // pred_fallthru
          _
        // Predicated region
        $region29: #{tpu_custom_call.1} parent=11 // pred_check
          %p993 = pneg %p247
        $region30: #{tpu_custom_call.1} parent=11 // pred_check_branch
          %995 = sbr.rel (%p993) target = $region32
        $region31: #{tpu_custom_call.1} parent=11 // pred_region
          _
        $region32: #{tpu_custom_call.1} parent=11 // pred_fallthru
          _
        // Predicated region
        $region33: #{tpu_custom_call.1} parent=11 // pred_check
          %p996 = pneg %p268
        $region34: #{tpu_custom_call.1} parent=11 // pred_check_branch
          %998 = sbr.rel (%p996) target = $region36
        $region35: #{tpu_custom_call.1} parent=11 // pred_region
          _
        $region36: #{tpu_custom_call.1} parent=11 // pred_fallthru
          _
        // Predicated region
        $region37: #{tpu_custom_call.1} parent=11 // pred_check
          %p999 = pneg %p289
        $region38: #{tpu_custom_call.1} parent=11 // pred_check_branch
          %1001 = sbr.rel (%p999) target = $region40
        $region39: #{tpu_custom_call.1} parent=11 // pred_region
          _
        $region40: #{tpu_custom_call.1} parent=11 // pred_fallthru
          _
        // Predicated region
        $region41: #{tpu_custom_call.1} parent=11 // pred_check
          %p1002 = pneg %p310
        $region42: #{tpu_custom_call.1} parent=11 // pred_check_branch
          %1004 = sbr.rel (%p1002) target = $region44
        $region43: #{tpu_custom_call.1} parent=11 // pred_region
          _
        $region44: #{tpu_custom_call.1} parent=11 // pred_fallthru
          _
        // Predicated region
        $region45: #{tpu_custom_call.1} parent=11 // pred_check
          %p1005 = pneg %p331
        $region46: #{tpu_custom_call.1} parent=11 // pred_check_branch
          %1007 = sbr.rel (%p1005) target = $region48
        $region47: #{tpu_custom_call.1} parent=11 // pred_region
          _
        $region48: #{tpu_custom_call.1} parent=11 // pred_fallthru
          _
        // Predicated region
        $region49: #{tpu_custom_call.1} parent=11 // pred_check
          %p1008 = pneg %p352
        $region50: #{tpu_custom_call.1} parent=11 // pred_check_branch
          %1010 = sbr.rel (%p1008) target = $region52
        $region51: #{tpu_custom_call.1} parent=11 // pred_region
          _
        $region52: #{tpu_custom_call.1} parent=11 // pred_fallthru
          _
        // Predicated region
        $region53: #{tpu_custom_call.1} parent=11 // pred_check
          %p1011 = pneg %p373
        $region54: #{tpu_custom_call.1} parent=11 // pred_check_branch
          %1013 = sbr.rel (%p1011) target = $region56
        $region55: #{tpu_custom_call.1} parent=11 // pred_region
          _
        $region56: #{tpu_custom_call.1} parent=11 // pred_fallthru
          _
        // Predicated region
        $region57: #{tpu_custom_call.1} parent=11 // pred_check
          %p1014 = pneg %p394
        $region58: #{tpu_custom_call.1} parent=11 // pred_check_branch
          %1016 = sbr.rel (%p1014) target = $region60
        $region59: #{tpu_custom_call.1} parent=11 // pred_region
          _
        $region60: #{tpu_custom_call.1} parent=11 // pred_fallthru
          _
        // Predicated region
        $region61: #{tpu_custom_call.1} parent=11 // pred_check
          %p1017 = pneg %p415
        $region62: #{tpu_custom_call.1} parent=11 // pred_check_branch
          %1019 = sbr.rel (%p1017) target = $region64
        $region63: #{tpu_custom_call.1} parent=11 // pred_region
          _
        $region64: #{tpu_custom_call.1} parent=11 // pred_fallthru
          _
        // Predicated region
        $region65: #{tpu_custom_call.1} parent=11 // pred_check
          %p1020 = pneg %p436
        $region66: #{tpu_custom_call.1} parent=11 // pred_check_branch
          %1022 = sbr.rel (%p1020) target = $region68
        $region67: #{tpu_custom_call.1} parent=11 // pred_region
          _
        $region68: #{tpu_custom_call.1} parent=11 // pred_fallthru
          _
        // Predicated region
        $region69: #{tpu_custom_call.1} parent=11 // pred_check
          %p1023 = pneg %p457
        $region70: #{tpu_custom_call.1} parent=11 // pred_check_branch
          %1025 = sbr.rel (%p1023) target = $region72
        $region71: #{tpu_custom_call.1} parent=11 // pred_region
          _
        $region72: #{tpu_custom_call.1} parent=11 // pred_fallthru
          _
        // Predicated region
        $region73: #{tpu_custom_call.1} parent=11 // pred_check
          %p1026 = pneg %p478
        $region74: #{tpu_custom_call.1} parent=11 // pred_check_branch
          %1028 = sbr.rel (%p1026) target = $region76
        $region75: #{tpu_custom_call.1} parent=11 // pred_region
          _
        $region76: #{tpu_custom_call.1} parent=11 // pred_fallthru
          _
        // Predicated region
        $region77: #{tpu_custom_call.1} parent=11 // pred_check
          %p1029 = pneg %p499
        $region78: #{tpu_custom_call.1} parent=11 // pred_check_branch
          %1031 = sbr.rel (%p1029) target = $region80
        $region79: #{tpu_custom_call.1} parent=11 // pred_region
          _
        $region80: #{tpu_custom_call.1} parent=11 // pred_fallthru
          _
        // Predicated region
        $region81: #{tpu_custom_call.1} parent=11 // pred_check
          %p1032 = pneg %p520
        $region82: #{tpu_custom_call.1} parent=11 // pred_check_branch
          %1034 = sbr.rel (%p1032) target = $region84
        $region83: #{tpu_custom_call.1} parent=11 // pred_region
          _
        $region84: #{tpu_custom_call.1} parent=11 // pred_fallthru
          _
        // Predicated region
        $region85: #{tpu_custom_call.1} parent=11 // pred_check
          %p1035 = pneg %p541
        $region86: #{tpu_custom_call.1} parent=11 // pred_check_branch
          %1037 = sbr.rel (%p1035) target = $region88
        $region87: #{tpu_custom_call.1} parent=11 // pred_region
          _
        $region88: #{tpu_custom_call.1} parent=11 // pred_fallthru
          _
        // Predicated region
        $region89: #{tpu_custom_call.1} parent=11 // pred_check
          %p1038 = pneg %p562
        $region90: #{tpu_custom_call.1} parent=11 // pred_check_branch
          %1040 = sbr.rel (%p1038) target = $region92
        $region91: #{tpu_custom_call.1} parent=11 // pred_region
          _
        $region92: #{tpu_custom_call.1} parent=11 // pred_fallthru
          _
        // Predicated region
        $region93: #{tpu_custom_call.1} parent=11 // pred_check
          %p1041 = pneg %p583
        $region94: #{tpu_custom_call.1} parent=11 // pred_check_branch
          %1043 = sbr.rel (%p1041) target = $region96
        $region95: #{tpu_custom_call.1} parent=11 // pred_region
          _
        $region96: #{tpu_custom_call.1} parent=11 // pred_fallthru
          _
        // Predicated region
        $region97: #{tpu_custom_call.1} parent=11 // pred_check
          %p1044 = pneg %p604
        $region98: #{tpu_custom_call.1} parent=11 // pred_check_branch
          %1046 = sbr.rel (%p1044) target = $region100
        $region99: #{tpu_custom_call.1} parent=11 // pred_region
          _
        $region100: #{tpu_custom_call.1} parent=11 // pred_fallthru
          _
        // Predicated region
        $region101: #{tpu_custom_call.1} parent=11 // pred_check
          %p1047 = pneg %p625
        $region102: #{tpu_custom_call.1} parent=11 // pred_check_branch
          %1049 = sbr.rel (%p1047) target = $region104
        $region103: #{tpu_custom_call.1} parent=11 // pred_region
          _
        $region104: #{tpu_custom_call.1} parent=11 // pred_fallthru
          _
        // Predicated region
        $region105: #{tpu_custom_call.1} parent=11 // pred_check
          %p1050 = pneg %p646
        $region106: #{tpu_custom_call.1} parent=11 // pred_check_branch
          %1052 = sbr.rel (%p1050) target = $region108
        $region107: #{tpu_custom_call.1} parent=11 // pred_region
          _
        $region108: #{tpu_custom_call.1} parent=11 // pred_fallthru
          _
        // Predicated region
        $region109: #{tpu_custom_call.1} parent=11 // pred_check
          %p1053 = pneg %p667
        $region110: #{tpu_custom_call.1} parent=11 // pred_check_branch
          %1055 = sbr.rel (%p1053) target = $region112
        $region111: #{tpu_custom_call.1} parent=11 // pred_region
          _
        $region112: #{tpu_custom_call.1} parent=11 // pred_fallthru
          _
        // Predicated region
        $region113: #{tpu_custom_call.1} parent=11 // pred_check
          %p1056 = pneg %p688
        $region114: #{tpu_custom_call.1} parent=11 // pred_check_branch
          %1058 = sbr.rel (%p1056) target = $region116
        $region115: #{tpu_custom_call.1} parent=11 // pred_region
          _
        $region116: #{tpu_custom_call.1} parent=11 // pred_fallthru
          _
        // Predicated region
        $region117: #{tpu_custom_call.1} parent=11 // pred_check
          %p1059 = pneg %p709
        $region118: #{tpu_custom_call.1} parent=11 // pred_check_branch
          %1061 = sbr.rel (%p1059) target = $region120
        $region119: #{tpu_custom_call.1} parent=11 // pred_region
          _
        $region120: #{tpu_custom_call.1} parent=11 // pred_fallthru
          _
        // Predicated region
        $region121: #{tpu_custom_call.1} parent=11 // pred_check
          %p1062 = pneg %p730
        $region122: #{tpu_custom_call.1} parent=11 // pred_check_branch
          %1064 = sbr.rel (%p1062) target = $region124
        $region123: #{tpu_custom_call.1} parent=11 // pred_region
          _
        $region124: #{tpu_custom_call.1} parent=11 // pred_fallthru
          _
        // Predicated region
        $region125: #{tpu_custom_call.1} parent=11 // pred_check
          %p1065 = pneg %p751
        $region126: #{tpu_custom_call.1} parent=11 // pred_check_branch
          %1067 = sbr.rel (%p1065) target = $region128
        $region127: #{tpu_custom_call.1} parent=11 // pred_region
          _
        $region128: #{tpu_custom_call.1} parent=11 // pred_fallthru
          _
        // Predicated region
        $region129: #{tpu_custom_call.1} parent=11 // pred_check
          %p1068 = pneg %p772
        $region130: #{tpu_custom_call.1} parent=11 // pred_check_branch
          %1070 = sbr.rel (%p1068) target = $region132
        $region131: #{tpu_custom_call.1} parent=11 // pred_region
          _
        $region132: #{tpu_custom_call.1} parent=11 // pred_fallthru
          _
        // Predicated region
        $region133: #{tpu_custom_call.1} parent=11 // pred_check
          %p1071 = pneg %p793
        $region134: #{tpu_custom_call.1} parent=11 // pred_check_branch
          %1073 = sbr.rel (%p1071) target = $region136
        $region135: #{tpu_custom_call.1} parent=11 // pred_region
          _
        $region136: #{tpu_custom_call.1} parent=11 // pred_fallthru
          _
        // Predicated region
        $region137: #{tpu_custom_call.1} parent=11 // pred_check
          %p1074 = pneg %p814
        $region138: #{tpu_custom_call.1} parent=11 // pred_check_branch
          %1076 = sbr.rel (%p1074) target = $region140
        $region139: #{tpu_custom_call.1} parent=11 // pred_region
          _
        $region140: #{tpu_custom_call.1} parent=11 // pred_fallthru
          _
        // Predicated region
        $region141: #{tpu_custom_call.1} parent=11 // pred_check
          %p1077 = pneg %p835
        $region142: #{tpu_custom_call.1} parent=11 // pred_check_branch
          %1079 = sbr.rel (%p1077) target = $region144
        $region143: #{tpu_custom_call.1} parent=11 // pred_region
          _
        $region144: #{tpu_custom_call.1} parent=11 // pred_fallthru
          _
        // Predicated region
        $region145: #{tpu_custom_call.1} parent=11 // pred_check
          %p1080 = pneg %p856
        $region146: #{tpu_custom_call.1} parent=11 // pred_check_branch
          %1082 = sbr.rel (%p1080) target = $region148
        $region147: #{tpu_custom_call.1} parent=11 // pred_region
          _
        $region148: #{tpu_custom_call.1} parent=11 // pred_fallthru
          _
        // Predicated region
        $region149: #{tpu_custom_call.1} parent=11 // pred_check
          %p1083 = pneg %p877
        $region150: #{tpu_custom_call.1} parent=11 // pred_check_branch
          %1085 = sbr.rel (%p1083) target = $region152
        $region151: #{tpu_custom_call.1} parent=11 // pred_region
          _
        $region152: #{tpu_custom_call.1} parent=11 // pred_fallthru
          _
        // Predicated region
        $region153: #{tpu_custom_call.1} parent=11 // pred_check
          %p1086 = pneg %p898
        $region154: #{tpu_custom_call.1} parent=11 // pred_check_branch
          %1088 = sbr.rel (%p1086) target = $region156
        $region155: #{tpu_custom_call.1} parent=11 // pred_region
          _
        $region156: #{tpu_custom_call.1} parent=11 // pred_fallthru
          _
        // Predicated region
        $region157: #{tpu_custom_call.1} parent=11 // pred_check
          %p1089 = pneg %p919
        $region158: #{tpu_custom_call.1} parent=11 // pred_check_branch
          %1091 = sbr.rel (%p1089) target = $region160
        $region159: #{tpu_custom_call.1} parent=11 // pred_region
          _
        $region160: #{tpu_custom_call.1} parent=11 // pred_fallthru
          _
        // Predicated region
        $region161: #{tpu_custom_call.1} parent=11 // pred_check
          %p1092 = pneg %p940
        $region162: #{tpu_custom_call.1} parent=11 // pred_check_branch
          %1094 = sbr.rel (%p1092) target = $region164
        $region163: #{tpu_custom_call.1} parent=11 // pred_region
          _
        $region164: #{tpu_custom_call.1} parent=11 // pred_fallthru
          _
      $region12: #{tpu_custom_call.1} parent=5 // pred_fallthru
        _
      %p1095 = scmp.lt.s32.totalorder %s90, 2
      // Predicated region
      $region165: #{tpu_custom_call.1} parent=5 // pred_check
        %p1096 = pneg %p1095
      $region166: #{tpu_custom_call.1} parent=5 // pred_check_branch
        %1098 = sbr.rel (%p1096) target = $region168
      $region167: #{tpu_custom_call.1} parent=5 // pred_region
        // Predicated region
        $region169: #{tpu_custom_call.1} parent=167 // pred_check
          %p1099 = pneg %p110
        $region170: #{tpu_custom_call.1} parent=167 // pred_check_branch
          %1101 = sbr.rel (%p1099) target = $region172
        $region171: #{tpu_custom_call.1} parent=167 // pred_region
          %p1102 = scmp.lt.s32.totalorder %s90, 1
          %s1103 = scalar_select %p1102, %s90, 1
          %s1104 = smul.addr %s1103, 2
          %s1105 = smul.addr %s1104, 8
          %s1106 = scalar_lea.vmem %s1, %s1105
        $region172: #{tpu_custom_call.1} parent=167 // pred_fallthru
          _
        // Predicated region
        $region173: #{tpu_custom_call.1} parent=167 // pred_check
          %p1107 = pneg %p136
        $region174: #{tpu_custom_call.1} parent=167 // pred_check_branch
          %1109 = sbr.rel (%p1107) target = $region176
        $region175: #{tpu_custom_call.1} parent=167 // pred_region
          %p1110 = scmp.lt.s32.totalorder %s90, 1
          %s1111 = scalar_select %p1110, %s90, 1
          %s1112 = smul.addr %s1111, 2
          %s1113 = smul.addr %s1112, 8
          %s1114 = scalar_lea.vmem %s3, %s1113
        $region176: #{tpu_custom_call.1} parent=167 // pred_fallthru
          _
      $region168: #{tpu_custom_call.1} parent=5 // pred_fallthru
        _
      %p1115 = scmp.le.s32.totalorder 1, %s90
      %p1116 = scmp.lt.s32.totalorder %s90, 3
      %p1117 = pnand %p1115, %p1116
      %p1118 = pneg %p1117
      // Predicated region
      $region177: #{tpu_custom_call.1} parent=5 // pred_check
        _
      $region178: #{tpu_custom_call.1} parent=5 // pred_check_branch
        %1120 = sbr.rel (%p1117) target = $region180
      $region179: #{tpu_custom_call.1} parent=5 // pred_region
        %s1121 = ssub.s32 %s90, 1
        %p1122 = scmp.lt.s32.totalorder %s95, 1
        %s1123 = scalar_select %p1122, %s95, 1
        %s1124 = smul.addr %s1123, 2
        %s1125 = smul.addr %s1124, 8
        %s1126 = scalar_lea.vmem %s1, %s1125
        %p1127 = pneg %p116
        %p1128 = pneg %p113
        %p1129 = scmp.lt.s32.totalorder %s95, 1
        %s1130 = scalar_select %p1129, %s95, 1
        %s1131 = smul.addr %s1130, 2
        %s1132 = smul.addr %s1131, 8
        %s1133 = scalar_lea.vmem %s3, %s1132
        %p1134 = pneg %p142
        %p1135 = pneg %p139
        %p1136 = pneg %p163
        %p1137 = pneg %p160
        %p1138 = pneg %p184
        %p1139 = pneg %p181
        %p1140 = pneg %p205
        %p1141 = pneg %p202
        %p1142 = pneg %p226
        %p1143 = pneg %p223
        %p1144 = pneg %p247
        %p1145 = pneg %p244
        %p1146 = pneg %p268
        %p1147 = pneg %p265
        %p1148 = pneg %p289
        %p1149 = pneg %p286
        %p1150 = pneg %p310
        %p1151 = pneg %p307
        %p1152 = pneg %p331
        %p1153 = pneg %p328
        %p1154 = pneg %p352
        %p1155 = pneg %p349
        %p1156 = pneg %p373
        %p1157 = pneg %p370
        %p1158 = pneg %p394
        %p1159 = pneg %p391
        %p1160 = pneg %p415
        %p1161 = pneg %p412
        %p1162 = pneg %p436
        %p1163 = pneg %p433
        %p1164 = pneg %p457
        %p1165 = pneg %p454
        %p1166 = pneg %p478
        %p1167 = pneg %p475
        %p1168 = pneg %p499
        %p1169 = pneg %p496
        %p1170 = pneg %p520
        %p1171 = pneg %p517
        %p1172 = pneg %p541
        %p1173 = pneg %p538
        %p1174 = pneg %p562
        %p1175 = pneg %p559
        %p1176 = pneg %p583
        %p1177 = pneg %p580
        %p1178 = pneg %p604
        %p1179 = pneg %p601
        %p1180 = pneg %p625
        %p1181 = pneg %p622
        %p1182 = pneg %p646
        %p1183 = pneg %p643
        %p1184 = pneg %p667
        %p1185 = pneg %p664
        %p1186 = pneg %p688
        %p1187 = pneg %p685
        %p1188 = pneg %p709
        %p1189 = pneg %p706
        %p1190 = pneg %p730
        %p1191 = pneg %p727
        %p1192 = pneg %p751
        %p1193 = pneg %p748
        %p1194 = pneg %p772
        %p1195 = pneg %p769
        %p1196 = pneg %p793
        %p1197 = pneg %p790
        %p1198 = pneg %p814
        %p1199 = pneg %p811
        %p1200 = pneg %p835
        %p1201 = pneg %p832
        %p1202 = pneg %p856
        %p1203 = pneg %p853
        %p1204 = pneg %p877
        %p1205 = pneg %p874
        %p1206 = pneg %p898
        %p1207 = pneg %p895
        %p1208 = pneg %p919
        %p1209 = pneg %p916
        %p1210 = pneg %p940
        %p1211 = pneg %p937
        %p1212 = pneg %p966
        %p1213 = pneg %p963
        %s1214 = sand.u32 %s953, 1
        %s1215 = scalar_lea.sflag [#allocation3], %s1214
        %s1216 = sand.u32 %s953, 1
        %s1217 = smul.addr %s1216, 16
        %s1218 = scalar_lea.vmem [#allocation2], %s1217
        %p1219 = scmp.lt.s32.totalorder %s95, 1
        %s1220 = scalar_select %p1219, %s95, 1
        %s1221 = smul.addr %s1220, 2
        %s1222 = smul.addr %s1221, 8
        %s1223 = scalar_lea.vmem %s1, %s1222
        %p1224 = scmp.lt.s32.totalorder %s95, 1
        %s1225 = scalar_select %p1224, %s95, 1
        %s1226 = smul.addr %s1225, 2
        %s1227 = smul.addr %s1226, 8
        %s1228 = scalar_lea.vmem %s3, %s1227
        %v1230 = vld [vmem:[%s5] sm:$0x1]
        %v1231 = vld [vmem:[%s7] sm:$0xff]
        %v1232 = vld [vmem:[%s7 + $0x8] sm:$0xff]
        %v1233 = vld [vmem:[%s7 + $0x10] sm:$0xff]
        %v1234 = vld [vmem:[%s7 + $0x18] sm:$0xff]
        %v1235 = vld [vmem:[%s7 + $0x20] sm:$0xff]
        %v1236 = vld [vmem:[%s7 + $0x28] sm:$0xff]
        %v1237 = vld [vmem:[%s9] sm:$0x1]
        %v1238 = vld [vmem:[%s11] sm:$0xff]
        %v1239 = vld [vmem:[%s11 + $0x8] sm:$0xff]
        %v1240 = vld [vmem:[%s11 + $0x10] sm:$0xff]
        %v1241 = vld [vmem:[%s11 + $0x18] sm:$0xff]
        %v1242 = vld [vmem:[%s11 + $0x20] sm:$0xff]
        %v1243 = vld [vmem:[%s11 + $0x28] sm:$0xff]
        %v1244 = vld [vmem:[%s11 + $0x30] sm:$0xff]
        %v1245 = vld [vmem:[%s11 + $0x38] sm:$0xff]
        %v1246 = vld [vmem:[%s11 + $0x40] sm:$0xff]
        %v1247 = vld [vmem:[%s11 + $0x48] sm:$0xff]
        %v1248 = vld [vmem:[%s11 + $0x50] sm:$0xff]
        %v1249 = vld [vmem:[%s11 + $0x58] sm:$0xff]
        %v1250 = vld [vmem:[%s13] sm:$0x1]
        %v1251 = vld [vmem:[%s15] sm:$0x1]
        %v1252 = vld [vmem:[%s17] sm:$0xff]
        %v1253 = vld [vmem:[%s17 + $0x8] sm:$0xff]
        %v1254 = vld [vmem:[%s17 + $0x10] sm:$0xff]
        %v1255 = vld [vmem:[%s17 + $0x18] sm:$0xff]
        %v1256 = vld [vmem:[%s17 + $0x20] sm:$0xff]
        %v1257 = vld [vmem:[%s17 + $0x28] sm:$0xff]
        %v1258 = vld [vmem:[%s17 + $0x30] sm:$0xff]
        %v1259 = vld [vmem:[%s17 + $0x38] sm:$0xff]
        %v1260 = vld [vmem:[%s17 + $0x40] sm:$0xff]
        %v1261 = vld [vmem:[%s17 + $0x48] sm:$0xff]
        %v1262 = vld [vmem:[%s17 + $0x50] sm:$0xff]
        %v1263 = vld [vmem:[%s17 + $0x58] sm:$0xff]
        %v1264 = vld [vmem:[%s19] sm:$0xff]
        %v1265 = vld [vmem:[%s19 + $0x8] sm:$0xff]
        %v1266 = vld [vmem:[%s19 + $0x10] sm:$0xff]
        %v1267 = vld [vmem:[%s19 + $0x18] sm:$0xff]
        %v1268 = vld [vmem:[%s21] sm:$0x1]
        %v1269 = vld [vmem:[%s23] sm:$0x1]
        %v1270 = vld [vmem:[%s25] sm:$0xff]
        %v1271 = vld [vmem:[%s25 + $0x8] sm:$0xff]
        %v1272 = vld [vmem:[%s25 + $0x10] sm:$0xff]
        %v1273 = vld [vmem:[%s25 + $0x18] sm:$0xff]
        %v1274 = vld [vmem:[%s25 + $0x20] sm:$0xff]
        %v1275 = vld [vmem:[%s25 + $0x28] sm:$0xff]
        %v1276 = vld [vmem:[%s25 + $0x30] sm:$0xff]
        %v1277 = vld [vmem:[%s25 + $0x38] sm:$0xff]
        %v1278 = vld [vmem:[%s25 + $0x40] sm:$0xff]
        %v1279 = vld [vmem:[%s25 + $0x48] sm:$0xff]
        %v1280 = vld [vmem:[%s25 + $0x50] sm:$0xff]
        %v1281 = vld [vmem:[%s25 + $0x58] sm:$0xff]
        %v1282 = vld [vmem:[%s27] sm:$0xff]
        %v1283 = vld [vmem:[%s27 + $0x8] sm:$0xff]
        %v1284 = vld [vmem:[%s27 + $0x10] sm:$0xff]
        %v1285 = vld [vmem:[%s27 + $0x18] sm:$0xff]
        %v1286 = vld [vmem:[%s29] sm:$0x1]
        %v1287 = vld [vmem:[%s31] sm:$0x1]
        %v1288 = vld [vmem:[%s33] sm:$0xff]
        %v1289 = vld [vmem:[%s33 + $0x8] sm:$0xff]
        %v1290 = vld [vmem:[%s33 + $0x10] sm:$0xff]
        %v1291 = vld [vmem:[%s33 + $0x18] sm:$0xff]
        %v1292 = vld [vmem:[%s33 + $0x20] sm:$0xff]
        %v1293 = vld [vmem:[%s33 + $0x28] sm:$0xff]
        %v1294 = vld [vmem:[%s33 + $0x30] sm:$0xff]
        %v1295 = vld [vmem:[%s33 + $0x38] sm:$0xff]
        %v1296 = vld [vmem:[%s33 + $0x40] sm:$0xff]
        %v1297 = vld [vmem:[%s33 + $0x48] sm:$0xff]
        %v1298 = vld [vmem:[%s33 + $0x50] sm:$0xff]
        %v1299 = vld [vmem:[%s33 + $0x58] sm:$0xff]
        %v1300 = vld [vmem:[%s35] sm:$0xff]
        %v1301 = vld [vmem:[%s35 + $0x8] sm:$0xff]
        %v1302 = vld [vmem:[%s35 + $0x10] sm:$0xff]
        %v1303 = vld [vmem:[%s35 + $0x18] sm:$0xff]
        %v1304 = vld [vmem:[%s37] sm:$0x1]
        %v1305 = vld [vmem:[%s39] sm:$0xff]
        %v1306 = vld [vmem:[%s39 + $0x8] sm:$0xff]
        %v1307 = vld [vmem:[%s39 + $0x10] sm:$0xff]
        %v1308 = vld [vmem:[%s41] sm:$0x1]
        %v1309 = vld [vmem:[%s43] sm:$0xff]
        %v1310 = vld [vmem:[%s43 + $0x8] sm:$0xff]
        %v1311 = vld [vmem:[%s43 + $0x10] sm:$0xff]
        %v1312 = vld [vmem:[%s43 + $0x18] sm:$0xff]
        %v1313 = vld [vmem:[%s43 + $0x20] sm:$0xff]
        %v1314 = vld [vmem:[%s43 + $0x28] sm:$0xff]
        %v1315 = vld [vmem:[%s43 + $0x30] sm:$0xff]
        %v1316 = vld [vmem:[%s43 + $0x38] sm:$0xff]
        %v1317 = vld [vmem:[%s43 + $0x40] sm:$0xff]
        %v1318 = vld [vmem:[%s43 + $0x48] sm:$0xff]
        %v1319 = vld [vmem:[%s43 + $0x50] sm:$0xff]
        %v1320 = vld [vmem:[%s43 + $0x58] sm:$0xff]
        %v1321 = vld [vmem:[%s45] sm:$0x1]
        %v1322 = vld [vmem:[%s47] sm:$0x1]
        %v1323 = vld [vmem:[%s49] sm:$0xff]
        %v1324 = vld [vmem:[%s49 + $0x8] sm:$0xff]
        %v1325 = vld [vmem:[%s49 + $0x10] sm:$0xff]
        %v1326 = vld [vmem:[%s49 + $0x18] sm:$0xff]
        %v1327 = vld [vmem:[%s49 + $0x20] sm:$0xff]
        %v1328 = vld [vmem:[%s49 + $0x28] sm:$0xff]
        %v1329 = vld [vmem:[%s49 + $0x30] sm:$0xff]
        %v1330 = vld [vmem:[%s49 + $0x38] sm:$0xff]
        %v1331 = vld [vmem:[%s49 + $0x40] sm:$0xff]
        %v1332 = vld [vmem:[%s49 + $0x48] sm:$0xff]
        %v1333 = vld [vmem:[%s49 + $0x50] sm:$0xff]
        %v1334 = vld [vmem:[%s49 + $0x58] sm:$0xff]
        %v1335 = vld [vmem:[%s51] sm:$0xff]
        %v1336 = vld [vmem:[%s51 + $0x8] sm:$0xff]
        %v1337 = vld [vmem:[%s51 + $0x10] sm:$0xff]
        %v1338 = vld [vmem:[%s51 + $0x18] sm:$0xff]
        %v1339 = vld [vmem:[%s53] sm:$0x1]
        %v1340 = vld [vmem:[%s55] sm:$0x1]
        %v1341 = vld [vmem:[%s57] sm:$0xff]
        %v1342 = vld [vmem:[%s57 + $0x8] sm:$0xff]
        %v1343 = vld [vmem:[%s57 + $0x10] sm:$0xff]
        %v1344 = vld [vmem:[%s57 + $0x18] sm:$0xff]
        %v1345 = vld [vmem:[%s57 + $0x20] sm:$0xff]
        %v1346 = vld [vmem:[%s57 + $0x28] sm:$0xff]
        %v1347 = vld [vmem:[%s57 + $0x30] sm:$0xff]
        %v1348 = vld [vmem:[%s57 + $0x38] sm:$0xff]
        %v1349 = vld [vmem:[%s57 + $0x40] sm:$0xff]
        %v1350 = vld [vmem:[%s57 + $0x48] sm:$0xff]
        %v1351 = vld [vmem:[%s57 + $0x50] sm:$0xff]
        %v1352 = vld [vmem:[%s57 + $0x58] sm:$0xff]
        %v1353 = vld [vmem:[%s59] sm:$0xff]
        %v1354 = vld [vmem:[%s59 + $0x8] sm:$0xff]
        %v1355 = vld [vmem:[%s59 + $0x10] sm:$0xff]
        %v1356 = vld [vmem:[%s59 + $0x18] sm:$0xff]
        %v1357 = vld [vmem:[%s61] sm:$0x1]
        %v1358 = vld [vmem:[%s63] sm:$0x1]
        %v1359 = vld [vmem:[%s65] sm:$0xff]
        %v1360 = vld [vmem:[%s65 + $0x8] sm:$0xff]
        %v1361 = vld [vmem:[%s65 + $0x10] sm:$0xff]
        %v1362 = vld [vmem:[%s65 + $0x18] sm:$0xff]
        %v1363 = vld [vmem:[%s65 + $0x20] sm:$0xff]
        %v1364 = vld [vmem:[%s65 + $0x28] sm:$0xff]
        %v1365 = vld [vmem:[%s65 + $0x30] sm:$0xff]
        %v1366 = vld [vmem:[%s65 + $0x38] sm:$0xff]
        %v1367 = vld [vmem:[%s65 + $0x40] sm:$0xff]
        %v1368 = vld [vmem:[%s65 + $0x48] sm:$0xff]
        %v1369 = vld [vmem:[%s65 + $0x50] sm:$0xff]
        %v1370 = vld [vmem:[%s65 + $0x58] sm:$0xff]
        %v1371 = vld [vmem:[%s67] sm:$0xff]
        %v1372 = vld [vmem:[%s67 + $0x8] sm:$0xff]
        %v1373 = vld [vmem:[%s67 + $0x10] sm:$0xff]
        %v1374 = vld [vmem:[%s67 + $0x18] sm:$0xff]
        %v1375 = vld [vmem:[%s69] sm:$0x1]
        %v1376 = vld [vmem:[%s71] sm:$0x1]
        %v1377 = vld [vmem:[%s73] sm:$0x1]
        %v1378 = vld [vmem:[%s75] sm:$0xff]
        %v1379 = vld [vmem:[%s75 + $0x8] sm:$0xff]
        %v1380 = vld [vmem:[%s75 + $0x10] sm:$0xff]
        %v1381 = vld [vmem:[%s75 + $0x18] sm:$0xff]
        %v1382 = vld [vmem:[%s75 + $0x20] sm:$0xff]
        %v1383 = vld [vmem:[%s75 + $0x28] sm:$0xff]
        %v1384 = vld [vmem:[%s75 + $0x30] sm:$0xff]
        %v1385 = vld [vmem:[%s75 + $0x38] sm:$0xff]
        %v1386 = vld [vmem:[%s75 + $0x40] sm:$0xff]
        %v1387 = vld [vmem:[%s75 + $0x48] sm:$0xff]
        %v1388 = vld [vmem:[%s75 + $0x50] sm:$0xff]
        %v1389 = vld [vmem:[%s75 + $0x58] sm:$0xff]
        %v1390 = vld [vmem:[%s75 + $0x60] sm:$0xff]
        %v1391 = vld [vmem:[%s75 + $0x68] sm:$0xff]
        %v1392 = vld [vmem:[%s75 + $0x70] sm:$0xff]
        %v1393 = vld [vmem:[%s75 + $0x78] sm:$0xff]
        %v1394 = vld [vmem:[%s75 + $0x80] sm:$0xff]
        %v1395 = vld [vmem:[%s75 + $0x88] sm:$0xff]
        %v1396 = vld [vmem:[%s75 + $0x90] sm:$0xff]
        %v1397 = vld [vmem:[%s75 + $0x98] sm:$0xff]
        %v1398 = vld [vmem:[%s75 + $0xa0] sm:$0xff]
        %v1399 = vld [vmem:[%s75 + $0xa8] sm:$0xff]
        %v1400 = vld [vmem:[%s75 + $0xb0] sm:$0xff]
        %v1401 = vld [vmem:[%s75 + $0xb8] sm:$0xff]
        %v1402 = vld [vmem:[%s75 + $0xc0] sm:$0xff]
        %v1403 = vld [vmem:[%s75 + $0xc8] sm:$0xff]
        %v1404 = vld [vmem:[%s75 + $0xd0] sm:$0xff]
        %v1405 = vld [vmem:[%s75 + $0xd8] sm:$0xff]
        %v1406 = vld [vmem:[%s75 + $0xe0] sm:$0xff]
        %v1407 = vld [vmem:[%s75 + $0xe8] sm:$0xff]
        %v1408 = vld [vmem:[%s75 + $0xf0] sm:$0xff]
        %v1409 = vld [vmem:[%s75 + $0xf8] sm:$0xff]
        %v1410 = vld [vmem:[%s75 + $0x100] sm:$0xff]
        %v1411 = vld [vmem:[%s75 + $0x108] sm:$0xff]
        %v1412 = vld [vmem:[%s75 + $0x110] sm:$0xff]
        %v1413 = vld [vmem:[%s75 + $0x118] sm:$0xff]
        %v1414 = vld [vmem:[%s75 + $0x120] sm:$0xff]
        %v1415 = vld [vmem:[%s75 + $0x128] sm:$0xff]
        %v1416 = vld [vmem:[%s75 + $0x130] sm:$0xff]
        %v1417 = vld [vmem:[%s75 + $0x138] sm:$0xff]
        %v1418 = vld [vmem:[%s75 + $0x140] sm:$0xff]
        %v1419 = vld [vmem:[%s75 + $0x148] sm:$0xff]
        %v1420 = vld [vmem:[%s75 + $0x150] sm:$0xff]
        %v1421 = vld [vmem:[%s75 + $0x158] sm:$0xff]
        %v1422 = vld [vmem:[%s75 + $0x160] sm:$0xff]
        %v1423 = vld [vmem:[%s75 + $0x168] sm:$0xff]
        %v1424 = vld [vmem:[%s75 + $0x170] sm:$0xff]
        %v1425 = vld [vmem:[%s75 + $0x178] sm:$0xff]
        %v1426 = vld [vmem:[%s77] sm:$0xff]
        %v1427 = vld [vmem:[%s77 + $0x8] sm:$0xff]
        %v1428 = vld [vmem:[%s77 + $0x10] sm:$0xff]
        %v1429 = vld [vmem:[%s77 + $0x18] sm:$0xff]
        %v1430 = vld [vmem:[%s77 + $0x20] sm:$0xff]
        %v1431 = vld [vmem:[%s77 + $0x28] sm:$0xff]
        %v1432 = vld [vmem:[%s77 + $0x30] sm:$0xff]
        %v1433 = vld [vmem:[%s77 + $0x38] sm:$0xff]
        %v1434 = vld [vmem:[%s77 + $0x40] sm:$0xff]
        %v1435 = vld [vmem:[%s77 + $0x48] sm:$0xff]
        %v1436 = vld [vmem:[%s77 + $0x50] sm:$0xff]
        %v1437 = vld [vmem:[%s77 + $0x58] sm:$0xff]
        %v1438 = vld [vmem:[%s77 + $0x60] sm:$0xff]
        %v1439 = vld [vmem:[%s77 + $0x68] sm:$0xff]
        %v1440 = vld [vmem:[%s77 + $0x70] sm:$0xff]
        %v1441 = vld [vmem:[%s77 + $0x78] sm:$0xff]
        %v1442 = vld [vmem:[%s79] sm:$0xff]
        %v1443 = vld [vmem:[%s79 + $0x8] sm:$0xff]
        %v1444 = vld [vmem:[%s79 + $0x10] sm:$0xff]
        %v1445 = vld [vmem:[%s79 + $0x18] sm:$0xff]
        %v1446 = vld [vmem:[%s79 + $0x20] sm:$0xff]
        %v1447 = vld [vmem:[%s79 + $0x28] sm:$0xff]
        %v1448 = vld [vmem:[%s79 + $0x30] sm:$0xff]
        %v1449 = vld [vmem:[%s79 + $0x38] sm:$0xff]
        %v1450 = vld [vmem:[%s79 + $0x40] sm:$0xff]
        %v1451 = vld [vmem:[%s79 + $0x48] sm:$0xff]
        %v1452 = vld [vmem:[%s79 + $0x50] sm:$0xff]
        %v1453 = vld [vmem:[%s79 + $0x58] sm:$0xff]
        %v1454 = vld [vmem:[%s79 + $0x60] sm:$0xff]
        %v1455 = vld [vmem:[%s79 + $0x68] sm:$0xff]
        %v1456 = vld [vmem:[%s79 + $0x70] sm:$0xff]
        %v1457 = vld [vmem:[%s79 + $0x78] sm:$0xff]
        %v1458 = vld [vmem:[%s1223] sm:$0xff]
        %v1459 = vld [vmem:[%s1223 + $0x8] sm:$0xff]
        %v1460 = vld [vmem:[%s1228] sm:$0xff]
        %v1461 = vld [vmem:[%s1228 + $0x8] sm:$0xff]
        %vm1464 = vcmask 1040384
        %v1465 = vrot.slane %v1458, 7
        %v1466 = vrot.slane %v1459, 7
        %v1467 = vsel %vm1464, %v1465, %v1466
        %v1470 = vsel %vm1464, 0.0, %v1465
        %vm1471 = vcmask 1046528
        %v1472 = vrot.slane %v1458, 1
        %v1473 = vrot.slane %v1459, 1
        %v1474 = vsel %vm1471, %v1472, %v1473
        %v1476 = vsel %vm1471, %v1473, 0.0
        %1477 = vrot.lane.b32.xlu0 %v1458, 16
        %v1478 = vpop.permute.xlu0 %1477
        %1479 = vrot.lane.b32.xlu0 %v1459, 16
        %v1480 = vpop.permute.xlu0 %1479
        %1484 = vrot.lane.b32.xlu0 %v1474, 32
        %v1485 = vpop.permute.xlu0 %1484
        %1486 = vrot.lane.b32.xlu0 %v1476, 32
        %v1487 = vpop.permute.xlu0 %1486
        %vm1490 = vcmask 130048
        %v1491 = vsel %vm1490, %v1470, %v1478
        %v1492 = vsel %vm1490, %v1467, %v1480
        %vm1493 = vcmask 261120
        %v1494 = vsel %vm1493, %v1491, %v1485
        %v1495 = vsel %vm1493, %v1492, %v1487
        %v1496 = vpack.c.bf16 %v1495, %v1494
        %v1497 = vpack.c.bf16 %v1232, %v1231
        %v1498 = vpack.c.bf16 %v1234, %v1233
        %v1499 = vpack.c.bf16 %v1236, %v1235
        %v1501 = vlaneseq
        %v1502 = vshrl.u32 %v1501, 7
        %v1503 = vsub.s32 0, %v1502
        %v1504 = vrot.slane %v1230, %v1503
        %vm1506 = vcmask 392192
        %v1508 = vsel %vm1506, %v1496, 0
        %1510 = vmatprep.subr.bf16.mxu0 0
        %1511 = vmatpush1.bf16.msra.mxu0 %v1497
        %1512 = vmatprep.subr.bf16.mxu0 0
        %1513 = vmatpush1.bf16.msra.mxu0 %v1498
        %1514 = vmatprep.subr.bf16.mxu0 0
        %1515 = vmatpush1.bf16.msra.mxu0 %v1499
        %1516 = vmatprep.subr.bf16.mxu0 0
        %1517 = vmatpush1.bf16.msra.mxu0 0
        %1518 = vmatprep.subr.bf16.mxu0 0
        %1519 = vmatpush1.bf16.msra.mxu0 0
        %1520 = vmatprep.subr.bf16.mxu0 0
        %1521 = vmatpush1.bf16.msra.mxu0 0
        %1522 = vmatprep.subr.bf16.mxu0 0
        %1523 = vmatpush1.bf16.msra.mxu0 0
        %1524 = vmatprep.subr.bf16.mxu0 0
        %1525 = vmatpush1.bf16.msra.mxu0 0
        %1526 = vmatprep.subr.bf16.mxu0 0
        %1527 = vmatpush1.bf16.msra.mxu0 0
        %1528 = vmatprep.subr.bf16.mxu0 0
        %1529 = vmatpush1.bf16.msra.mxu0 0
        %1530 = vmatprep.subr.bf16.mxu0 0
        %1531 = vmatpush1.bf16.msra.mxu0 0
        %1532 = vmatprep.subr.bf16.mxu0 0
        %1533 = vmatpush1.bf16.msra.mxu0 0
        %1534 = vmatprep.subr.bf16.mxu0 0
        %1535 = vmatpush1.bf16.msra.mxu0 0
        %1536 = vmatprep.subr.bf16.mxu0 0
        %1537 = vmatpush1.bf16.msra.mxu0 0
        %1538 = vmatprep.subr.bf16.mxu0 0
        %1539 = vmatpush1.bf16.msra.mxu0 0
        %1540 = vmatprep.subr.bf16.mxu0 0
        %1541 = vmatpush1.bf16.msra.mxu0 0
        %1542 = vmatprep.mubr.bf16.mxu0 0
        %1543 = vmatmul.mubr.bf16.gmra.mrb[0].mxu0 %v1508
        %v1544 = vpop.f32.mrb[0].mxu0
        %v1545 = vadd.f32 %v1504, %v1544
        %v1546 = vpop.f32.mrb[0].mxu0
        %v1547 = vpop.f32.mrb[0].mxu0
        %v1548 = vadd.f32 %v1504, %v1547
        %v1549 = vpop.f32.mrb[0].mxu0
        %1550 = vdwg.mxu0
        %v1551 = vmax.f32 %v1545, 0.0
        %v1552 = vmax.f32 %v1548, 0.0
        %v1555 = vrot.slane %v1551, 7
        %v1556 = vrot.slane %v1552, 7
        %v1557 = vsel %vm1464, %v1555, %v1556
        %v1560 = vsel %vm1464, 0.0, %v1555
        %v1561 = vrot.slane %v1551, 1
        %v1562 = vrot.slane %v1552, 1
        %v1563 = vsel %vm1471, %v1561, %v1562
        %v1565 = vsel %vm1471, %v1562, 0.0
        %1566 = vrot.lane.b32.xlu0 %v1551, 32
        %v1567 = vpop.permute.xlu0 %1566
        %1568 = vrot.lane.b32.xlu0 %v1552, 32
        %v1569 = vpop.permute.xlu0 %1568
        %1573 = vrot.lane.b32.xlu0 %v1563, 64
        %v1574 = vpop.permute.xlu0 %1573
        %1575 = vrot.lane.b32.xlu0 %v1565, 64
        %v1576 = vpop.permute.xlu0 %1575
        %v1579 = vsel %vm1493, %v1560, %v1567
        %v1580 = vsel %vm1493, %v1557, %v1569
        %vm1581 = vcmask 523264
        %v1582 = vsel %vm1581, %v1579, %v1574
        %v1583 = vsel %vm1581, %v1580, %v1576
        %v1584 = vpack.c.bf16 %v1583, %v1582
        %v1585 = vpack.c.bf16 %v1253, %v1252
        %v1586 = vpack.c.bf16 %v1255, %v1254
        %v1587 = vpack.c.bf16 %v1257, %v1256
        %v1588 = vpack.c.bf16 %v1259, %v1258
        %v1589 = vpack.c.bf16 %v1261, %v1260
        %v1590 = vpack.c.bf16 %v1263, %v1262
        %v1592 = vlaneseq
        %v1593 = vshrl.u32 %v1592, 7
        %v1594 = vsub.s32 0, %v1593
        %v1595 = vrot.slane %v1250, %v1594
        %vm1597 = vcmask 785408
        %v1599 = vsel %vm1597, %v1584, 0
        %1601 = vmatprep.subr.bf16.mxu0 0
        %1602 = vmatpush1.bf16.msra.mxu0 %v1585
        %1603 = vmatprep.subr.bf16.mxu0 0
        %1604 = vmatpush1.bf16.msra.mxu0 %v1586
        %1605 = vmatprep.subr.bf16.mxu0 0
        %1606 = vmatpush1.bf16.msra.mxu0 %v1587
        %1607 = vmatprep.subr.bf16.mxu0 0
        %1608 = vmatpush1.bf16.msra.mxu0 %v1588
        %1609 = vmatprep.subr.bf16.mxu0 0
        %1610 = vmatpush1.bf16.msra.mxu0 %v1589
        %1611 = vmatprep.subr.bf16.mxu0 0
        %1612 = vmatpush1.bf16.msra.mxu0 %v1590
        %1613 = vmatprep.subr.bf16.mxu0 0
        %1614 = vmatpush1.bf16.msra.mxu0 0
        %1615 = vmatprep.subr.bf16.mxu0 0
        %1616 = vmatpush1.bf16.msra.mxu0 0
        %1617 = vmatprep.subr.bf16.mxu0 0
        %1618 = vmatpush1.bf16.msra.mxu0 0
        %1619 = vmatprep.subr.bf16.mxu0 0
        %1620 = vmatpush1.bf16.msra.mxu0 0
        %1621 = vmatprep.subr.bf16.mxu0 0
        %1622 = vmatpush1.bf16.msra.mxu0 0
        %1623 = vmatprep.subr.bf16.mxu0 0
        %1624 = vmatpush1.bf16.msra.mxu0 0
        %1625 = vmatprep.subr.bf16.mxu0 0
        %1626 = vmatpush1.bf16.msra.mxu0 0
        %1627 = vmatprep.subr.bf16.mxu0 0
        %1628 = vmatpush1.bf16.msra.mxu0 0
        %1629 = vmatprep.subr.bf16.mxu0 0
        %1630 = vmatpush1.bf16.msra.mxu0 0
        %1631 = vmatprep.subr.bf16.mxu0 0
        %1632 = vmatpush1.bf16.msra.mxu0 0
        %1633 = vmatprep.mubr.bf16.mxu0 0
        %1634 = vmatmul.mubr.bf16.gmra.mrb[0].mxu0 %v1599
        %v1635 = vpop.f32.mrb[0].mxu0
        %v1636 = vadd.f32 %v1595, %v1635
        %v1637 = vpop.f32.mrb[0].mxu0
        %v1638 = vpop.f32.mrb[0].mxu0
        %v1639 = vadd.f32 %v1595, %v1638
        %v1640 = vpop.f32.mrb[0].mxu0
        %1641 = vdwg.mxu0
        %v1642 = vmax.f32 %v1636, 0.0
        %v1643 = vmax.f32 %v1639, 0.0
        %v1644 = vpack.c.bf16 %v1643, %v1642
        %v1645 = vpack.c.bf16 %v1265, %v1264
        %v1646 = vpack.c.bf16 %v1267, %v1266
        %v1648 = vlaneseq
        %v1649 = vshrl.u32 %v1648, 7
        %v1650 = vsub.s32 0, %v1649
        %v1651 = vrot.slane %v1251, %v1650
        %v1654 = vsel %vm1493, %v1644, 0
        %1656 = vmatprep.subr.bf16.mxu0 0
        %1657 = vmatpush1.bf16.msra.mxu0 %v1645
        %1658 = vmatprep.subr.bf16.mxu0 0
        %1659 = vmatpush1.bf16.msra.mxu0 %v1646
        %1660 = vmatprep.subr.bf16.mxu0 0
        %1661 = vmatpush1.bf16.msra.mxu0 0
        %1662 = vmatprep.subr.bf16.mxu0 0
        %1663 = vmatpush1.bf16.msra.mxu0 0
        %1664 = vmatprep.subr.bf16.mxu0 0
        %1665 = vmatpush1.bf16.msra.mxu0 0
        %1666 = vmatprep.subr.bf16.mxu0 0
        %1667 = vmatpush1.bf16.msra.mxu0 0
        %1668 = vmatprep.subr.bf16.mxu0 0
        %1669 = vmatpush1.bf16.msra.mxu0 0
        %1670 = vmatprep.subr.bf16.mxu0 0
        %1671 = vmatpush1.bf16.msra.mxu0 0
        %1672 = vmatprep.subr.bf16.mxu0 0
        %1673 = vmatpush1.bf16.msra.mxu0 0
        %1674 = vmatprep.subr.bf16.mxu0 0
        %1675 = vmatpush1.bf16.msra.mxu0 0
        %1676 = vmatprep.subr.bf16.mxu0 0
        %1677 = vmatpush1.bf16.msra.mxu0 0
        %1678 = vmatprep.subr.bf16.mxu0 0
        %1679 = vmatpush1.bf16.msra.mxu0 0
        %1680 = vmatprep.subr.bf16.mxu0 0
        %1681 = vmatpush1.bf16.msra.mxu0 0
        %1682 = vmatprep.subr.bf16.mxu0 0
        %1683 = vmatpush1.bf16.msra.mxu0 0
        %1684 = vmatprep.subr.bf16.mxu0 0
        %1685 = vmatpush1.bf16.msra.mxu0 0
        %1686 = vmatprep.subr.bf16.mxu0 0
        %1687 = vmatpush1.bf16.msra.mxu0 0
        %1688 = vmatprep.mubr.bf16.mxu0 0
        %1689 = vmatmul.mubr.bf16.gmra.mrb[0].mxu0 %v1654
        %v1690 = vpop.f32.mrb[0].mxu0
        %v1691 = vadd.f32 %v1651, %v1690
        %v1692 = vpop.f32.mrb[0].mxu0
        %v1693 = vpop.f32.mrb[0].mxu0
        %v1694 = vadd.f32 %v1651, %v1693
        %v1695 = vpop.f32.mrb[0].mxu0
        %1696 = vdwg.mxu0
        %v1697 = vadd.f32 %v1545, %v1691
        %v1698 = vadd.f32 %v1548, %v1694
        %v1699 = vmax.f32 %v1697, 0.0
        %v1700 = vmax.f32 %v1698, 0.0
        %v1703 = vrot.slane %v1699, 7
        %v1704 = vrot.slane %v1700, 7
        %v1705 = vsel %vm1464, %v1703, %v1704
        %v1708 = vsel %vm1464, 0.0, %v1703
        %v1709 = vrot.slane %v1699, 1
        %v1710 = vrot.slane %v1700, 1
        %v1711 = vsel %vm1471, %v1709, %v1710
        %v1713 = vsel %vm1471, %v1710, 0.0
        %1714 = vrot.lane.b32.xlu0 %v1699, 32
        %v1715 = vpop.permute.xlu0 %1714
        %1716 = vrot.lane.b32.xlu0 %v1700, 32
        %v1717 = vpop.permute.xlu0 %1716
        %1721 = vrot.lane.b32.xlu0 %v1711, 64
        %v1722 = vpop.permute.xlu0 %1721
        %1723 = vrot.lane.b32.xlu0 %v1713, 64
        %v1724 = vpop.permute.xlu0 %1723
        %v1727 = vsel %vm1493, %v1708, %v1715
        %v1728 = vsel %vm1493, %v1705, %v1717
        %v1729 = vsel %vm1581, %v1727, %v1722
        %v1730 = vsel %vm1581, %v1728, %v1724
        %v1731 = vpack.c.bf16 %v1730, %v1729
        %v1732 = vpack.c.bf16 %v1271, %v1270
        %v1733 = vpack.c.bf16 %v1273, %v1272
        %v1734 = vpack.c.bf16 %v1275, %v1274
        %v1735 = vpack.c.bf16 %v1277, %v1276
        %v1736 = vpack.c.bf16 %v1279, %v1278
        %v1737 = vpack.c.bf16 %v1281, %v1280
        %v1739 = vlaneseq
        %v1740 = vshrl.u32 %v1739, 7
        %v1741 = vsub.s32 0, %v1740
        %v1742 = vrot.slane %v1268, %v1741
        %v1745 = vsel %vm1597, %v1731, 0
        %1747 = vmatprep.subr.bf16.mxu0 0
        %1748 = vmatpush1.bf16.msra.mxu0 %v1732
        %1749 = vmatprep.subr.bf16.mxu0 0
        %1750 = vmatpush1.bf16.msra.mxu0 %v1733
        %1751 = vmatprep.subr.bf16.mxu0 0
        %1752 = vmatpush1.bf16.msra.mxu0 %v1734
        %1753 = vmatprep.subr.bf16.mxu0 0
        %1754 = vmatpush1.bf16.msra.mxu0 %v1735
        %1755 = vmatprep.subr.bf16.mxu0 0
        %1756 = vmatpush1.bf16.msra.mxu0 %v1736
        %1757 = vmatprep.subr.bf16.mxu0 0
        %1758 = vmatpush1.bf16.msra.mxu0 %v1737
        %1759 = vmatprep.subr.bf16.mxu0 0
        %1760 = vmatpush1.bf16.msra.mxu0 0
        %1761 = vmatprep.subr.bf16.mxu0 0
        %1762 = vmatpush1.bf16.msra.mxu0 0
        %1763 = vmatprep.subr.bf16.mxu0 0
        %1764 = vmatpush1.bf16.msra.mxu0 0
        %1765 = vmatprep.subr.bf16.mxu0 0
        %1766 = vmatpush1.bf16.msra.mxu0 0
        %1767 = vmatprep.subr.bf16.mxu0 0
        %1768 = vmatpush1.bf16.msra.mxu0 0
        %1769 = vmatprep.subr.bf16.mxu0 0
        %1770 = vmatpush1.bf16.msra.mxu0 0
        %1771 = vmatprep.subr.bf16.mxu0 0
        %1772 = vmatpush1.bf16.msra.mxu0 0
        %1773 = vmatprep.subr.bf16.mxu0 0
        %1774 = vmatpush1.bf16.msra.mxu0 0
        %1775 = vmatprep.subr.bf16.mxu0 0
        %1776 = vmatpush1.bf16.msra.mxu0 0
        %1777 = vmatprep.subr.bf16.mxu0 0
        %1778 = vmatpush1.bf16.msra.mxu0 0
        %1779 = vmatprep.mubr.bf16.mxu0 0
        %1780 = vmatmul.mubr.bf16.gmra.mrb[0].mxu0 %v1745
        %v1781 = vpop.f32.mrb[0].mxu0
        %v1782 = vadd.f32 %v1742, %v1781
        %v1783 = vpop.f32.mrb[0].mxu0
        %v1784 = vpop.f32.mrb[0].mxu0
        %v1785 = vadd.f32 %v1742, %v1784
        %v1786 = vpop.f32.mrb[0].mxu0
        %1787 = vdwg.mxu0
        %v1788 = vmax.f32 %v1782, 0.0
        %v1789 = vmax.f32 %v1785, 0.0
        %v1790 = vpack.c.bf16 %v1789, %v1788
        %v1791 = vpack.c.bf16 %v1283, %v1282
        %v1792 = vpack.c.bf16 %v1285, %v1284
        %v1794 = vlaneseq
        %v1795 = vshrl.u32 %v1794, 7
        %v1796 = vsub.s32 0, %v1795
        %v1797 = vrot.slane %v1269, %v1796
        %v1800 = vsel %vm1493, %v1790, 0
        %1802 = vmatprep.subr.bf16.mxu0 0
        %1803 = vmatpush1.bf16.msra.mxu0 %v1791
        %1804 = vmatprep.subr.bf16.mxu0 0
        %1805 = vmatpush1.bf16.msra.mxu0 %v1792
        %1806 = vmatprep.subr.bf16.mxu0 0
        %1807 = vmatpush1.bf16.msra.mxu0 0
        %1808 = vmatprep.subr.bf16.mxu0 0
        %1809 = vmatpush1.bf16.msra.mxu0 0
        %1810 = vmatprep.subr.bf16.mxu0 0
        %1811 = vmatpush1.bf16.msra.mxu0 0
        %1812 = vmatprep.subr.bf16.mxu0 0
        %1813 = vmatpush1.bf16.msra.mxu0 0
        %1814 = vmatprep.subr.bf16.mxu0 0
        %1815 = vmatpush1.bf16.msra.mxu0 0
        %1816 = vmatprep.subr.bf16.mxu0 0
        %1817 = vmatpush1.bf16.msra.mxu0 0
        %1818 = vmatprep.subr.bf16.mxu0 0
        %1819 = vmatpush1.bf16.msra.mxu0 0
        %1820 = vmatprep.subr.bf16.mxu0 0
        %1821 = vmatpush1.bf16.msra.mxu0 0
        %1822 = vmatprep.subr.bf16.mxu0 0
        %1823 = vmatpush1.bf16.msra.mxu0 0
        %1824 = vmatprep.subr.bf16.mxu0 0
        %1825 = vmatpush1.bf16.msra.mxu0 0
        %1826 = vmatprep.subr.bf16.mxu0 0
        %1827 = vmatpush1.bf16.msra.mxu0 0
        %1828 = vmatprep.subr.bf16.mxu0 0
        %1829 = vmatpush1.bf16.msra.mxu0 0
        %1830 = vmatprep.subr.bf16.mxu0 0
        %1831 = vmatpush1.bf16.msra.mxu0 0
        %1832 = vmatprep.subr.bf16.mxu0 0
        %1833 = vmatpush1.bf16.msra.mxu0 0
        %1834 = vmatprep.mubr.bf16.mxu0 0
        %1835 = vmatmul.mubr.bf16.gmra.mrb[0].mxu0 %v1800
        %v1836 = vpop.f32.mrb[0].mxu0
        %v1837 = vadd.f32 %v1797, %v1836
        %v1838 = vpop.f32.mrb[0].mxu0
        %v1839 = vpop.f32.mrb[0].mxu0
        %v1840 = vadd.f32 %v1797, %v1839
        %v1841 = vpop.f32.mrb[0].mxu0
        %1842 = vdwg.mxu0
        %v1843 = vadd.f32 %v1697, %v1837
        %v1844 = vadd.f32 %v1698, %v1840
        %v1845 = vmax.f32 %v1843, 0.0
        %v1846 = vmax.f32 %v1844, 0.0
        %v1849 = vrot.slane %v1845, 7
        %v1850 = vrot.slane %v1846, 7
        %v1851 = vsel %vm1464, %v1849, %v1850
        %v1854 = vsel %vm1464, 0.0, %v1849
        %v1855 = vrot.slane %v1845, 1
        %v1856 = vrot.slane %v1846, 1
        %v1857 = vsel %vm1471, %v1855, %v1856
        %v1859 = vsel %vm1471, %v1856, 0.0
        %1860 = vrot.lane.b32.xlu0 %v1845, 32
        %v1861 = vpop.permute.xlu0 %1860
        %1862 = vrot.lane.b32.xlu0 %v1846, 32
        %v1863 = vpop.permute.xlu0 %1862
        %1867 = vrot.lane.b32.xlu0 %v1857, 64
        %v1868 = vpop.permute.xlu0 %1867
        %1869 = vrot.lane.b32.xlu0 %v1859, 64
        %v1870 = vpop.permute.xlu0 %1869
        %v1873 = vsel %vm1493, %v1854, %v1861
        %v1874 = vsel %vm1493, %v1851, %v1863
        %v1875 = vsel %vm1581, %v1873, %v1868
        %v1876 = vsel %vm1581, %v1874, %v1870
        %v1877 = vpack.c.bf16 %v1876, %v1875
        %v1878 = vpack.c.bf16 %v1289, %v1288
        %v1879 = vpack.c.bf16 %v1291, %v1290
        %v1880 = vpack.c.bf16 %v1293, %v1292
        %v1881 = vpack.c.bf16 %v1295, %v1294
        %v1882 = vpack.c.bf16 %v1297, %v1296
        %v1883 = vpack.c.bf16 %v1299, %v1298
        %v1885 = vlaneseq
        %v1886 = vshrl.u32 %v1885, 7
        %v1887 = vsub.s32 0, %v1886
        %v1888 = vrot.slane %v1286, %v1887
        %v1891 = vsel %vm1597, %v1877, 0
        %1893 = vmatprep.subr.bf16.mxu0 0
        %1894 = vmatpush1.bf16.msra.mxu0 %v1878
        %1895 = vmatprep.subr.bf16.mxu0 0
        %1896 = vmatpush1.bf16.msra.mxu0 %v1879
        %1897 = vmatprep.subr.bf16.mxu0 0
        %1898 = vmatpush1.bf16.msra.mxu0 %v1880
        %1899 = vmatprep.subr.bf16.mxu0 0
        %1900 = vmatpush1.bf16.msra.mxu0 %v1881
        %1901 = vmatprep.subr.bf16.mxu0 0
        %1902 = vmatpush1.bf16.msra.mxu0 %v1882
        %1903 = vmatprep.subr.bf16.mxu0 0
        %1904 = vmatpush1.bf16.msra.mxu0 %v1883
        %1905 = vmatprep.subr.bf16.mxu0 0
        %1906 = vmatpush1.bf16.msra.mxu0 0
        %1907 = vmatprep.subr.bf16.mxu0 0
        %1908 = vmatpush1.bf16.msra.mxu0 0
        %1909 = vmatprep.subr.bf16.mxu0 0
        %1910 = vmatpush1.bf16.msra.mxu0 0
        %1911 = vmatprep.subr.bf16.mxu0 0
        %1912 = vmatpush1.bf16.msra.mxu0 0
        %1913 = vmatprep.subr.bf16.mxu0 0
        %1914 = vmatpush1.bf16.msra.mxu0 0
        %1915 = vmatprep.subr.bf16.mxu0 0
        %1916 = vmatpush1.bf16.msra.mxu0 0
        %1917 = vmatprep.subr.bf16.mxu0 0
        %1918 = vmatpush1.bf16.msra.mxu0 0
        %1919 = vmatprep.subr.bf16.mxu0 0
        %1920 = vmatpush1.bf16.msra.mxu0 0
        %1921 = vmatprep.subr.bf16.mxu0 0
        %1922 = vmatpush1.bf16.msra.mxu0 0
        %1923 = vmatprep.subr.bf16.mxu0 0
        %1924 = vmatpush1.bf16.msra.mxu0 0
        %1925 = vmatprep.mubr.bf16.mxu0 0
        %1926 = vmatmul.mubr.bf16.gmra.mrb[0].mxu0 %v1891
        %v1927 = vpop.f32.mrb[0].mxu0
        %v1928 = vadd.f32 %v1888, %v1927
        %v1929 = vpop.f32.mrb[0].mxu0
        %v1930 = vpop.f32.mrb[0].mxu0
        %v1931 = vadd.f32 %v1888, %v1930
        %v1932 = vpop.f32.mrb[0].mxu0
        %1933 = vdwg.mxu0
        %v1934 = vmax.f32 %v1928, 0.0
        %v1935 = vmax.f32 %v1931, 0.0
        %v1936 = vpack.c.bf16 %v1935, %v1934
        %v1937 = vpack.c.bf16 %v1301, %v1300
        %v1938 = vpack.c.bf16 %v1303, %v1302
        %v1940 = vlaneseq
        %v1941 = vshrl.u32 %v1940, 7
        %v1942 = vsub.s32 0, %v1941
        %v1943 = vrot.slane %v1287, %v1942
        %v1946 = vsel %vm1493, %v1936, 0
        %1948 = vmatprep.subr.bf16.mxu0 0
        %1949 = vmatpush1.bf16.msra.mxu0 %v1937
        %1950 = vmatprep.subr.bf16.mxu0 0
        %1951 = vmatpush1.bf16.msra.mxu0 %v1938
        %1952 = vmatprep.subr.bf16.mxu0 0
        %1953 = vmatpush1.bf16.msra.mxu0 0
        %1954 = vmatprep.subr.bf16.mxu0 0
        %1955 = vmatpush1.bf16.msra.mxu0 0
        %1956 = vmatprep.subr.bf16.mxu0 0
        %1957 = vmatpush1.bf16.msra.mxu0 0
        %1958 = vmatprep.subr.bf16.mxu0 0
        %1959 = vmatpush1.bf16.msra.mxu0 0
        %1960 = vmatprep.subr.bf16.mxu0 0
        %1961 = vmatpush1.bf16.msra.mxu0 0
        %1962 = vmatprep.subr.bf16.mxu0 0
        %1963 = vmatpush1.bf16.msra.mxu0 0
        %1964 = vmatprep.subr.bf16.mxu0 0
        %1965 = vmatpush1.bf16.msra.mxu0 0
        %1966 = vmatprep.subr.bf16.mxu0 0
        %1967 = vmatpush1.bf16.msra.mxu0 0
        %1968 = vmatprep.subr.bf16.mxu0 0
        %1969 = vmatpush1.bf16.msra.mxu0 0
        %1970 = vmatprep.subr.bf16.mxu0 0
        %1971 = vmatpush1.bf16.msra.mxu0 0
        %1972 = vmatprep.subr.bf16.mxu0 0
        %1973 = vmatpush1.bf16.msra.mxu0 0
        %1974 = vmatprep.subr.bf16.mxu0 0
        %1975 = vmatpush1.bf16.msra.mxu0 0
        %1976 = vmatprep.subr.bf16.mxu0 0
        %1977 = vmatpush1.bf16.msra.mxu0 0
        %1978 = vmatprep.subr.bf16.mxu0 0
        %1979 = vmatpush1.bf16.msra.mxu0 0
        %1980 = vmatprep.mubr.bf16.mxu0 0
        %1981 = vmatmul.mubr.bf16.gmra.mrb[0].mxu0 %v1946
        %v1982 = vpop.f32.mrb[0].mxu0
        %v1983 = vadd.f32 %v1943, %v1982
        %v1984 = vpop.f32.mrb[0].mxu0
        %v1985 = vpop.f32.mrb[0].mxu0
        %v1986 = vadd.f32 %v1943, %v1985
        %v1987 = vpop.f32.mrb[0].mxu0
        %1988 = vdwg.mxu0
        %v1989 = vadd.f32 %v1843, %v1983
        %v1990 = vadd.f32 %v1844, %v1986
        %v1991 = vmax.f32 %v1989, 0.0
        %v1992 = vmax.f32 %v1990, 0.0
        %v1995 = vrot.slane %v1991, 7
        %v1996 = vrot.slane %v1992, 7
        %v1997 = vsel %vm1464, %v1995, %v1996
        %v2000 = vsel %vm1464, 0.0, %v1995
        %v2001 = vrot.slane %v1991, 1
        %v2002 = vrot.slane %v1992, 1
        %v2003 = vsel %vm1471, %v2001, %v2002
        %v2005 = vsel %vm1471, %v2002, 0.0
        %2006 = vrot.lane.b32.xlu0 %v1991, 32
        %v2007 = vpop.permute.xlu0 %2006
        %2008 = vrot.lane.b32.xlu0 %v1992, 32
        %v2009 = vpop.permute.xlu0 %2008
        %2013 = vrot.lane.b32.xlu0 %v2003, 64
        %v2014 = vpop.permute.xlu0 %2013
        %2015 = vrot.lane.b32.xlu0 %v2005, 64
        %v2016 = vpop.permute.xlu0 %2015
        %v2019 = vsel %vm1493, %v2000, %v2007
        %v2020 = vsel %vm1493, %v1997, %v2009
        %v2021 = vsel %vm1581, %v2019, %v2014
        %v2022 = vsel %vm1581, %v2020, %v2016
        %v2023 = vpack.c.bf16 %v2022, %v2021
        %v2024 = vpack.c.bf16 %v1239, %v1238
        %v2025 = vpack.c.bf16 %v1241, %v1240
        %v2026 = vpack.c.bf16 %v1243, %v1242
        %v2027 = vpack.c.bf16 %v1245, %v1244
        %v2028 = vpack.c.bf16 %v1247, %v1246
        %v2029 = vpack.c.bf16 %v1249, %v1248
        %v2031 = vlaneseq
        %v2032 = vshrl.u32 %v2031, 7
        %v2033 = vsub.s32 0, %v2032
        %v2034 = vrot.slane %v1237, %v2033
        %v2037 = vsel %vm1597, %v2023, 0
        %2039 = vmatprep.subr.bf16.mxu0 0
        %2040 = vmatpush1.bf16.msra.mxu0 %v2024
        %2041 = vmatprep.subr.bf16.mxu0 0
        %2042 = vmatpush1.bf16.msra.mxu0 %v2025
        %2043 = vmatprep.subr.bf16.mxu0 0
        %2044 = vmatpush1.bf16.msra.mxu0 %v2026
        %2045 = vmatprep.subr.bf16.mxu0 0
        %2046 = vmatpush1.bf16.msra.mxu0 %v2027
        %2047 = vmatprep.subr.bf16.mxu0 0
        %2048 = vmatpush1.bf16.msra.mxu0 %v2028
        %2049 = vmatprep.subr.bf16.mxu0 0
        %2050 = vmatpush1.bf16.msra.mxu0 %v2029
        %2051 = vmatprep.subr.bf16.mxu0 0
        %2052 = vmatpush1.bf16.msra.mxu0 0
        %2053 = vmatprep.subr.bf16.mxu0 0
        %2054 = vmatpush1.bf16.msra.mxu0 0
        %2055 = vmatprep.subr.bf16.mxu0 0
        %2056 = vmatpush1.bf16.msra.mxu0 0
        %2057 = vmatprep.subr.bf16.mxu0 0
        %2058 = vmatpush1.bf16.msra.mxu0 0
        %2059 = vmatprep.subr.bf16.mxu0 0
        %2060 = vmatpush1.bf16.msra.mxu0 0
        %2061 = vmatprep.subr.bf16.mxu0 0
        %2062 = vmatpush1.bf16.msra.mxu0 0
        %2063 = vmatprep.subr.bf16.mxu0 0
        %2064 = vmatpush1.bf16.msra.mxu0 0
        %2065 = vmatprep.subr.bf16.mxu0 0
        %2066 = vmatpush1.bf16.msra.mxu0 0
        %2067 = vmatprep.subr.bf16.mxu0 0
        %2068 = vmatpush1.bf16.msra.mxu0 0
        %2069 = vmatprep.subr.bf16.mxu0 0
        %2070 = vmatpush1.bf16.msra.mxu0 0
        %2071 = vmatprep.mubr.bf16.mxu0 0
        %2072 = vmatmul.mubr.bf16.gmra.mrb[0].mxu0 %v2037
        %v2073 = vpop.f32.mrb[0].mxu0
        %v2074 = vadd.f32 %v2034, %v2073
        %v2075 = vpop.f32.mrb[0].mxu0
        %v2076 = vpop.f32.mrb[0].mxu0
        %v2077 = vadd.f32 %v2034, %v2076
        %v2078 = vpop.f32.mrb[0].mxu0
        %2079 = vdwg.mxu0
        %v2082 = vrot.slane %v1460, 7
        %v2083 = vrot.slane %v1461, 7
        %v2084 = vsel %vm1464, %v2082, %v2083
        %v2087 = vsel %vm1464, 0.0, %v2082
        %v2088 = vrot.slane %v1460, 1
        %v2089 = vrot.slane %v1461, 1
        %v2090 = vsel %vm1471, %v2088, %v2089
        %v2092 = vsel %vm1471, %v2089, 0.0
        %2093 = vrot.lane.b32.xlu0 %v1460, 8
        %v2094 = vpop.permute.xlu0 %2093
        %2095 = vrot.lane.b32.xlu0 %v1461, 8
        %v2096 = vpop.permute.xlu0 %2095
        %2100 = vrot.lane.b32.xlu0 %v2090, 16
        %v2101 = vpop.permute.xlu0 %2100
        %2102 = vrot.lane.b32.xlu0 %v2092, 16
        %v2103 = vpop.permute.xlu0 %2102
        %vm2106 = vcmask 64512
        %v2107 = vsel %vm2106, %v2087, %v2094
        %v2108 = vsel %vm2106, %v2084, %v2096
        %v2109 = vsel %vm1490, %v2107, %v2101
        %v2110 = vsel %vm1490, %v2108, %v2103
        %v2111 = vpack.c.bf16 %v2110, %v2109
        %v2112 = vpack.c.bf16 %v1306, %v1305
        %v2113 = vpack.c.bf16 %v1307, %v1307
        %v2115 = vlaneseq
        %v2116 = vshrl.u32 %v2115, 7
        %v2117 = vsub.s32 0, %v2116
        %v2118 = vrot.slane %v1304, %v2117
        %vm2120 = vcmask 195584
        %v2122 = vsel %vm2120, %v2111, 0
        %vm2124 = vcmask 1043456
        %v2126 = vsel %vm2124, %v2113, 0
        %2128 = vmatprep.subr.bf16.mxu0 0
        %2129 = vmatpush1.bf16.msra.mxu0 %v2112
        %2130 = vmatprep.subr.bf16.mxu0 0
        %2131 = vmatpush1.bf16.msra.mxu0 %v2126
        %2132 = vmatprep.subr.bf16.mxu0 0
        %2133 = vmatpush1.bf16.msra.mxu0 0
        %2134 = vmatprep.subr.bf16.mxu0 0
        %2135 = vmatpush1.bf16.msra.mxu0 0
        %2136 = vmatprep.subr.bf16.mxu0 0
        %2137 = vmatpush1.bf16.msra.mxu0 0
        %2138 = vmatprep.subr.bf16.mxu0 0
        %2139 = vmatpush1.bf16.msra.mxu0 0
        %2140 = vmatprep.subr.bf16.mxu0 0
        %2141 = vmatpush1.bf16.msra.mxu0 0
        %2142 = vmatprep.subr.bf16.mxu0 0
        %2143 = vmatpush1.bf16.msra.mxu0 0
        %2144 = vmatprep.subr.bf16.mxu0 0
        %2145 = vmatpush1.bf16.msra.mxu0 0
        %2146 = vmatprep.subr.bf16.mxu0 0
        %2147 = vmatpush1.bf16.msra.mxu0 0
        %2148 = vmatprep.subr.bf16.mxu0 0
        %2149 = vmatpush1.bf16.msra.mxu0 0
        %2150 = vmatprep.subr.bf16.mxu0 0
        %2151 = vmatpush1.bf16.msra.mxu0 0
        %2152 = vmatprep.subr.bf16.mxu0 0
        %2153 = vmatpush1.bf16.msra.mxu0 0
        %2154 = vmatprep.subr.bf16.mxu0 0
        %2155 = vmatpush1.bf16.msra.mxu0 0
        %2156 = vmatprep.subr.bf16.mxu0 0
        %2157 = vmatpush1.bf16.msra.mxu0 0
        %2158 = vmatprep.subr.bf16.mxu0 0
        %2159 = vmatpush1.bf16.msra.mxu0 0
        %2160 = vmatprep.mubr.bf16.mxu0 0
        %2161 = vmatmul.mubr.bf16.gmra.mrb[0].mxu0 %v2122
        %v2162 = vpop.f32.mrb[0].mxu0
        %v2163 = vadd.f32 %v2118, %v2162
        %v2164 = vpop.f32.mrb[0].mxu0
        %v2165 = vpop.f32.mrb[0].mxu0
        %v2166 = vadd.f32 %v2118, %v2165
        %v2167 = vpop.f32.mrb[0].mxu0
        %2168 = vdwg.mxu0
        %v2169 = vmax.f32 %v2163, 0.0
        %v2170 = vmax.f32 %v2166, 0.0
        %v2173 = vrot.slane %v2169, 7
        %v2174 = vrot.slane %v2170, 7
        %v2175 = vsel %vm1464, %v2173, %v2174
        %v2178 = vsel %vm1464, 0.0, %v2173
        %v2179 = vrot.slane %v2169, 1
        %v2180 = vrot.slane %v2170, 1
        %v2181 = vsel %vm1471, %v2179, %v2180
        %v2183 = vsel %vm1471, %v2180, 0.0
        %2184 = vrot.lane.b32.xlu0 %v2169, 32
        %v2185 = vpop.permute.xlu0 %2184
        %2186 = vrot.lane.b32.xlu0 %v2170, 32
        %v2187 = vpop.permute.xlu0 %2186
        %2191 = vrot.lane.b32.xlu0 %v2181, 64
        %v2192 = vpop.permute.xlu0 %2191
        %2193 = vrot.lane.b32.xlu0 %v2183, 64
        %v2194 = vpop.permute.xlu0 %2193
        %v2197 = vsel %vm1493, %v2178, %v2185
        %v2198 = vsel %vm1493, %v2175, %v2187
        %v2199 = vsel %vm1581, %v2197, %v2192
        %v2200 = vsel %vm1581, %v2198, %v2194
        %v2201 = vpack.c.bf16 %v2200, %v2199
        %v2202 = vpack.c.bf16 %v1324, %v1323
        %v2203 = vpack.c.bf16 %v1326, %v1325
        %v2204 = vpack.c.bf16 %v1328, %v1327
        %v2205 = vpack.c.bf16 %v1330, %v1329
        %v2206 = vpack.c.bf16 %v1332, %v1331
        %v2207 = vpack.c.bf16 %v1334, %v1333
        %v2209 = vlaneseq
        %v2210 = vshrl.u32 %v2209, 7
        %v2211 = vsub.s32 0, %v2210
        %v2212 = vrot.slane %v1321, %v2211
        %v2215 = vsel %vm1597, %v2201, 0
        %2217 = vmatprep.subr.bf16.mxu0 0
        %2218 = vmatpush1.bf16.msra.mxu0 %v2202
        %2219 = vmatprep.subr.bf16.mxu0 0
        %2220 = vmatpush1.bf16.msra.mxu0 %v2203
        %2221 = vmatprep.subr.bf16.mxu0 0
        %2222 = vmatpush1.bf16.msra.mxu0 %v2204
        %2223 = vmatprep.subr.bf16.mxu0 0
        %2224 = vmatpush1.bf16.msra.mxu0 %v2205
        %2225 = vmatprep.subr.bf16.mxu0 0
        %2226 = vmatpush1.bf16.msra.mxu0 %v2206
        %2227 = vmatprep.subr.bf16.mxu0 0
        %2228 = vmatpush1.bf16.msra.mxu0 %v2207
        %2229 = vmatprep.subr.bf16.mxu0 0
        %2230 = vmatpush1.bf16.msra.mxu0 0
        %2231 = vmatprep.subr.bf16.mxu0 0
        %2232 = vmatpush1.bf16.msra.mxu0 0
        %2233 = vmatprep.subr.bf16.mxu0 0
        %2234 = vmatpush1.bf16.msra.mxu0 0
        %2235 = vmatprep.subr.bf16.mxu0 0
        %2236 = vmatpush1.bf16.msra.mxu0 0
        %2237 = vmatprep.subr.bf16.mxu0 0
        %2238 = vmatpush1.bf16.msra.mxu0 0
        %2239 = vmatprep.subr.bf16.mxu0 0
        %2240 = vmatpush1.bf16.msra.mxu0 0
        %2241 = vmatprep.subr.bf16.mxu0 0
        %2242 = vmatpush1.bf16.msra.mxu0 0
        %2243 = vmatprep.subr.bf16.mxu0 0
        %2244 = vmatpush1.bf16.msra.mxu0 0
        %2245 = vmatprep.subr.bf16.mxu0 0
        %2246 = vmatpush1.bf16.msra.mxu0 0
        %2247 = vmatprep.subr.bf16.mxu0 0
        %2248 = vmatpush1.bf16.msra.mxu0 0
        %2249 = vmatprep.mubr.bf16.mxu0 0
        %2250 = vmatmul.mubr.bf16.gmra.mrb[0].mxu0 %v2215
        %v2251 = vpop.f32.mrb[0].mxu0
        %v2252 = vadd.f32 %v2212, %v2251
        %v2253 = vpop.f32.mrb[0].mxu0
        %v2254 = vpop.f32.mrb[0].mxu0
        %v2255 = vadd.f32 %v2212, %v2254
        %v2256 = vpop.f32.mrb[0].mxu0
        %2257 = vdwg.mxu0
        %v2258 = vmax.f32 %v2252, 0.0
        %v2259 = vmax.f32 %v2255, 0.0
        %v2260 = vpack.c.bf16 %v2259, %v2258
        %v2261 = vpack.c.bf16 %v1336, %v1335
        %v2262 = vpack.c.bf16 %v1338, %v1337
        %v2264 = vlaneseq
        %v2265 = vshrl.u32 %v2264, 7
        %v2266 = vsub.s32 0, %v2265
        %v2267 = vrot.slane %v1322, %v2266
        %v2270 = vsel %vm1493, %v2260, 0
        %2272 = vmatprep.subr.bf16.mxu0 0
        %2273 = vmatpush1.bf16.msra.mxu0 %v2261
        %2274 = vmatprep.subr.bf16.mxu0 0
        %2275 = vmatpush1.bf16.msra.mxu0 %v2262
        %2276 = vmatprep.subr.bf16.mxu0 0
        %2277 = vmatpush1.bf16.msra.mxu0 0
        %2278 = vmatprep.subr.bf16.mxu0 0
        %2279 = vmatpush1.bf16.msra.mxu0 0
        %2280 = vmatprep.subr.bf16.mxu0 0
        %2281 = vmatpush1.bf16.msra.mxu0 0
        %2282 = vmatprep.subr.bf16.mxu0 0
        %2283 = vmatpush1.bf16.msra.mxu0 0
        %2284 = vmatprep.subr.bf16.mxu0 0
        %2285 = vmatpush1.bf16.msra.mxu0 0
        %2286 = vmatprep.subr.bf16.mxu0 0
        %2287 = vmatpush1.bf16.msra.mxu0 0
        %2288 = vmatprep.subr.bf16.mxu0 0
        %2289 = vmatpush1.bf16.msra.mxu0 0
        %2290 = vmatprep.subr.bf16.mxu0 0
        %2291 = vmatpush1.bf16.msra.mxu0 0
        %2292 = vmatprep.subr.bf16.mxu0 0
        %2293 = vmatpush1.bf16.msra.mxu0 0
        %2294 = vmatprep.subr.bf16.mxu0 0
        %2295 = vmatpush1.bf16.msra.mxu0 0
        %2296 = vmatprep.subr.bf16.mxu0 0
        %2297 = vmatpush1.bf16.msra.mxu0 0
        %2298 = vmatprep.subr.bf16.mxu0 0
        %2299 = vmatpush1.bf16.msra.mxu0 0
        %2300 = vmatprep.subr.bf16.mxu0 0
        %2301 = vmatpush1.bf16.msra.mxu0 0
        %2302 = vmatprep.subr.bf16.mxu0 0
        %2303 = vmatpush1.bf16.msra.mxu0 0
        %2304 = vmatprep.mubr.bf16.mxu0 0
        %2305 = vmatmul.mubr.bf16.gmra.mrb[0].mxu0 %v2270
        %v2306 = vpop.f32.mrb[0].mxu0
        %v2307 = vadd.f32 %v2267, %v2306
        %v2308 = vpop.f32.mrb[0].mxu0
        %v2309 = vpop.f32.mrb[0].mxu0
        %v2310 = vadd.f32 %v2267, %v2309
        %v2311 = vpop.f32.mrb[0].mxu0
        %2312 = vdwg.mxu0
        %v2313 = vadd.f32 %v2163, %v2307
        %v2314 = vadd.f32 %v2166, %v2310
        %v2315 = vmax.f32 %v2313, 0.0
        %v2316 = vmax.f32 %v2314, 0.0
        %v2319 = vrot.slane %v2315, 7
        %v2320 = vrot.slane %v2316, 7
        %v2321 = vsel %vm1464, %v2319, %v2320
        %v2324 = vsel %vm1464, 0.0, %v2319
        %v2325 = vrot.slane %v2315, 1
        %v2326 = vrot.slane %v2316, 1
        %v2327 = vsel %vm1471, %v2325, %v2326
        %v2329 = vsel %vm1471, %v2326, 0.0
        %2330 = vrot.lane.b32.xlu0 %v2315, 32
        %v2331 = vpop.permute.xlu0 %2330
        %2332 = vrot.lane.b32.xlu0 %v2316, 32
        %v2333 = vpop.permute.xlu0 %2332
        %2337 = vrot.lane.b32.xlu0 %v2327, 64
        %v2338 = vpop.permute.xlu0 %2337
        %2339 = vrot.lane.b32.xlu0 %v2329, 64
        %v2340 = vpop.permute.xlu0 %2339
        %v2343 = vsel %vm1493, %v2324, %v2331
        %v2344 = vsel %vm1493, %v2321, %v2333
        %v2345 = vsel %vm1581, %v2343, %v2338
        %v2346 = vsel %vm1581, %v2344, %v2340
        %v2347 = vpack.c.bf16 %v2346, %v2345
        %v2348 = vpack.c.bf16 %v1342, %v1341
        %v2349 = vpack.c.bf16 %v1344, %v1343
        %v2350 = vpack.c.bf16 %v1346, %v1345
        %v2351 = vpack.c.bf16 %v1348, %v1347
        %v2352 = vpack.c.bf16 %v1350, %v1349
        %v2353 = vpack.c.bf16 %v1352, %v1351
        %v2355 = vlaneseq
        %v2356 = vshrl.u32 %v2355, 7
        %v2357 = vsub.s32 0, %v2356
        %v2358 = vrot.slane %v1339, %v2357
        %v2361 = vsel %vm1597, %v2347, 0
        %2363 = vmatprep.subr.bf16.mxu0 0
        %2364 = vmatpush1.bf16.msra.mxu0 %v2348
        %2365 = vmatprep.subr.bf16.mxu0 0
        %2366 = vmatpush1.bf16.msra.mxu0 %v2349
        %2367 = vmatprep.subr.bf16.mxu0 0
        %2368 = vmatpush1.bf16.msra.mxu0 %v2350
        %2369 = vmatprep.subr.bf16.mxu0 0
        %2370 = vmatpush1.bf16.msra.mxu0 %v2351
        %2371 = vmatprep.subr.bf16.mxu0 0
        %2372 = vmatpush1.bf16.msra.mxu0 %v2352
        %2373 = vmatprep.subr.bf16.mxu0 0
        %2374 = vmatpush1.bf16.msra.mxu0 %v2353
        %2375 = vmatprep.subr.bf16.mxu0 0
        %2376 = vmatpush1.bf16.msra.mxu0 0
        %2377 = vmatprep.subr.bf16.mxu0 0
        %2378 = vmatpush1.bf16.msra.mxu0 0
        %2379 = vmatprep.subr.bf16.mxu0 0
        %2380 = vmatpush1.bf16.msra.mxu0 0
        %2381 = vmatprep.subr.bf16.mxu0 0
        %2382 = vmatpush1.bf16.msra.mxu0 0
        %2383 = vmatprep.subr.bf16.mxu0 0
        %2384 = vmatpush1.bf16.msra.mxu0 0
        %2385 = vmatprep.subr.bf16.mxu0 0
        %2386 = vmatpush1.bf16.msra.mxu0 0
        %2387 = vmatprep.subr.bf16.mxu0 0
        %2388 = vmatpush1.bf16.msra.mxu0 0
        %2389 = vmatprep.subr.bf16.mxu0 0
        %2390 = vmatpush1.bf16.msra.mxu0 0
        %2391 = vmatprep.subr.bf16.mxu0 0
        %2392 = vmatpush1.bf16.msra.mxu0 0
        %2393 = vmatprep.subr.bf16.mxu0 0
        %2394 = vmatpush1.bf16.msra.mxu0 0
        %2395 = vmatprep.mubr.bf16.mxu0 0
        %2396 = vmatmul.mubr.bf16.gmra.mrb[0].mxu0 %v2361
        %v2397 = vpop.f32.mrb[0].mxu0
        %v2398 = vadd.f32 %v2358, %v2397
        %v2399 = vpop.f32.mrb[0].mxu0
        %v2400 = vpop.f32.mrb[0].mxu0
        %v2401 = vadd.f32 %v2358, %v2400
        %v2402 = vpop.f32.mrb[0].mxu0
        %2403 = vdwg.mxu0
        %v2404 = vmax.f32 %v2398, 0.0
        %v2405 = vmax.f32 %v2401, 0.0
        %v2406 = vpack.c.bf16 %v2405, %v2404
        %v2407 = vpack.c.bf16 %v1354, %v1353
        %v2408 = vpack.c.bf16 %v1356, %v1355
        %v2410 = vlaneseq
        %v2411 = vshrl.u32 %v2410, 7
        %v2412 = vsub.s32 0, %v2411
        %v2413 = vrot.slane %v1340, %v2412
        %v2416 = vsel %vm1493, %v2406, 0
        %2418 = vmatprep.subr.bf16.mxu0 0
        %2419 = vmatpush1.bf16.msra.mxu0 %v2407
        %2420 = vmatprep.subr.bf16.mxu0 0
        %2421 = vmatpush1.bf16.msra.mxu0 %v2408
        %2422 = vmatprep.subr.bf16.mxu0 0
        %2423 = vmatpush1.bf16.msra.mxu0 0
        %2424 = vmatprep.subr.bf16.mxu0 0
        %2425 = vmatpush1.bf16.msra.mxu0 0
        %2426 = vmatprep.subr.bf16.mxu0 0
        %2427 = vmatpush1.bf16.msra.mxu0 0
        %2428 = vmatprep.subr.bf16.mxu0 0
        %2429 = vmatpush1.bf16.msra.mxu0 0
        %2430 = vmatprep.subr.bf16.mxu0 0
        %2431 = vmatpush1.bf16.msra.mxu0 0
        %2432 = vmatprep.subr.bf16.mxu0 0
        %2433 = vmatpush1.bf16.msra.mxu0 0
        %2434 = vmatprep.subr.bf16.mxu0 0
        %2435 = vmatpush1.bf16.msra.mxu0 0
        %2436 = vmatprep.subr.bf16.mxu0 0
        %2437 = vmatpush1.bf16.msra.mxu0 0
        %2438 = vmatprep.subr.bf16.mxu0 0
        %2439 = vmatpush1.bf16.msra.mxu0 0
        %2440 = vmatprep.subr.bf16.mxu0 0
        %2441 = vmatpush1.bf16.msra.mxu0 0
        %2442 = vmatprep.subr.bf16.mxu0 0
        %2443 = vmatpush1.bf16.msra.mxu0 0
        %2444 = vmatprep.subr.bf16.mxu0 0
        %2445 = vmatpush1.bf16.msra.mxu0 0
        %2446 = vmatprep.subr.bf16.mxu0 0
        %2447 = vmatpush1.bf16.msra.mxu0 0
        %2448 = vmatprep.subr.bf16.mxu0 0
        %2449 = vmatpush1.bf16.msra.mxu0 0
        %2450 = vmatprep.mubr.bf16.mxu0 0
        %2451 = vmatmul.mubr.bf16.gmra.mrb[0].mxu0 %v2416
        %v2452 = vpop.f32.mrb[0].mxu0
        %v2453 = vadd.f32 %v2413, %v2452
        %v2454 = vpop.f32.mrb[0].mxu0
        %v2455 = vpop.f32.mrb[0].mxu0
        %v2456 = vadd.f32 %v2413, %v2455
        %v2457 = vpop.f32.mrb[0].mxu0
        %2458 = vdwg.mxu0
        %v2459 = vadd.f32 %v2313, %v2453
        %v2460 = vadd.f32 %v2314, %v2456
        %v2461 = vmax.f32 %v2459, 0.0
        %v2462 = vmax.f32 %v2460, 0.0
        %v2465 = vrot.slane %v2461, 7
        %v2466 = vrot.slane %v2462, 7
        %v2467 = vsel %vm1464, %v2465, %v2466
        %v2470 = vsel %vm1464, 0.0, %v2465
        %v2471 = vrot.slane %v2461, 1
        %v2472 = vrot.slane %v2462, 1
        %v2473 = vsel %vm1471, %v2471, %v2472
        %v2475 = vsel %vm1471, %v2472, 0.0
        %2476 = vrot.lane.b32.xlu0 %v2461, 32
        %v2477 = vpop.permute.xlu0 %2476
        %2478 = vrot.lane.b32.xlu0 %v2462, 32
        %v2479 = vpop.permute.xlu0 %2478
        %2483 = vrot.lane.b32.xlu0 %v2473, 64
        %v2484 = vpop.permute.xlu0 %2483
        %2485 = vrot.lane.b32.xlu0 %v2475, 64
        %v2486 = vpop.permute.xlu0 %2485
        %v2489 = vsel %vm1493, %v2470, %v2477
        %v2490 = vsel %vm1493, %v2467, %v2479
        %v2491 = vsel %vm1581, %v2489, %v2484
        %v2492 = vsel %vm1581, %v2490, %v2486
        %v2493 = vpack.c.bf16 %v2492, %v2491
        %v2494 = vpack.c.bf16 %v1360, %v1359
        %v2495 = vpack.c.bf16 %v1362, %v1361
        %v2496 = vpack.c.bf16 %v1364, %v1363
        %v2497 = vpack.c.bf16 %v1366, %v1365
        %v2498 = vpack.c.bf16 %v1368, %v1367
        %v2499 = vpack.c.bf16 %v1370, %v1369
        %v2501 = vlaneseq
        %v2502 = vshrl.u32 %v2501, 7
        %v2503 = vsub.s32 0, %v2502
        %v2504 = vrot.slane %v1357, %v2503
        %v2507 = vsel %vm1597, %v2493, 0
        %2509 = vmatprep.subr.bf16.mxu0 0
        %2510 = vmatpush1.bf16.msra.mxu0 %v2494
        %2511 = vmatprep.subr.bf16.mxu0 0
        %2512 = vmatpush1.bf16.msra.mxu0 %v2495
        %2513 = vmatprep.subr.bf16.mxu0 0
        %2514 = vmatpush1.bf16.msra.mxu0 %v2496
        %2515 = vmatprep.subr.bf16.mxu0 0
        %2516 = vmatpush1.bf16.msra.mxu0 %v2497
        %2517 = vmatprep.subr.bf16.mxu0 0
        %2518 = vmatpush1.bf16.msra.mxu0 %v2498
        %2519 = vmatprep.subr.bf16.mxu0 0
        %2520 = vmatpush1.bf16.msra.mxu0 %v2499
        %2521 = vmatprep.subr.bf16.mxu0 0
        %2522 = vmatpush1.bf16.msra.mxu0 0
        %2523 = vmatprep.subr.bf16.mxu0 0
        %2524 = vmatpush1.bf16.msra.mxu0 0
        %2525 = vmatprep.subr.bf16.mxu0 0
        %2526 = vmatpush1.bf16.msra.mxu0 0
        %2527 = vmatprep.subr.bf16.mxu0 0
        %2528 = vmatpush1.bf16.msra.mxu0 0
        %2529 = vmatprep.subr.bf16.mxu0 0
        %2530 = vmatpush1.bf16.msra.mxu0 0
        %2531 = vmatprep.subr.bf16.mxu0 0
        %2532 = vmatpush1.bf16.msra.mxu0 0
        %2533 = vmatprep.subr.bf16.mxu0 0
        %2534 = vmatpush1.bf16.msra.mxu0 0
        %2535 = vmatprep.subr.bf16.mxu0 0
        %2536 = vmatpush1.bf16.msra.mxu0 0
        %2537 = vmatprep.subr.bf16.mxu0 0
        %2538 = vmatpush1.bf16.msra.mxu0 0
        %2539 = vmatprep.subr.bf16.mxu0 0
        %2540 = vmatpush1.bf16.msra.mxu0 0
        %2541 = vmatprep.mubr.bf16.mxu0 0
        %2542 = vmatmul.mubr.bf16.gmra.mrb[0].mxu0 %v2507
        %v2543 = vpop.f32.mrb[0].mxu0
        %v2544 = vadd.f32 %v2504, %v2543
        %v2545 = vpop.f32.mrb[0].mxu0
        %v2546 = vpop.f32.mrb[0].mxu0
        %v2547 = vadd.f32 %v2504, %v2546
        %v2548 = vpop.f32.mrb[0].mxu0
        %2549 = vdwg.mxu0
        %v2550 = vmax.f32 %v2544, 0.0
        %v2551 = vmax.f32 %v2547, 0.0
        %v2552 = vpack.c.bf16 %v2551, %v2550
        %v2553 = vpack.c.bf16 %v1372, %v1371
        %v2554 = vpack.c.bf16 %v1374, %v1373
        %v2556 = vlaneseq
        %v2557 = vshrl.u32 %v2556, 7
        %v2558 = vsub.s32 0, %v2557
        %v2559 = vrot.slane %v1358, %v2558
        %v2562 = vsel %vm1493, %v2552, 0
        %2564 = vmatprep.subr.bf16.mxu0 0
        %2565 = vmatpush1.bf16.msra.mxu0 %v2553
        %2566 = vmatprep.subr.bf16.mxu0 0
        %2567 = vmatpush1.bf16.msra.mxu0 %v2554
        %2568 = vmatprep.subr.bf16.mxu0 0
        %2569 = vmatpush1.bf16.msra.mxu0 0
        %2570 = vmatprep.subr.bf16.mxu0 0
        %2571 = vmatpush1.bf16.msra.mxu0 0
        %2572 = vmatprep.subr.bf16.mxu0 0
        %2573 = vmatpush1.bf16.msra.mxu0 0
        %2574 = vmatprep.subr.bf16.mxu0 0
        %2575 = vmatpush1.bf16.msra.mxu0 0
        %2576 = vmatprep.subr.bf16.mxu0 0
        %2577 = vmatpush1.bf16.msra.mxu0 0
        %2578 = vmatprep.subr.bf16.mxu0 0
        %2579 = vmatpush1.bf16.msra.mxu0 0
        %2580 = vmatprep.subr.bf16.mxu0 0
        %2581 = vmatpush1.bf16.msra.mxu0 0
        %2582 = vmatprep.subr.bf16.mxu0 0
        %2583 = vmatpush1.bf16.msra.mxu0 0
        %2584 = vmatprep.subr.bf16.mxu0 0
        %2585 = vmatpush1.bf16.msra.mxu0 0
        %2586 = vmatprep.subr.bf16.mxu0 0
        %2587 = vmatpush1.bf16.msra.mxu0 0
        %2588 = vmatprep.subr.bf16.mxu0 0
        %2589 = vmatpush1.bf16.msra.mxu0 0
        %2590 = vmatprep.subr.bf16.mxu0 0
        %2591 = vmatpush1.bf16.msra.mxu0 0
        %2592 = vmatprep.subr.bf16.mxu0 0
        %2593 = vmatpush1.bf16.msra.mxu0 0
        %2594 = vmatprep.subr.bf16.mxu0 0
        %2595 = vmatpush1.bf16.msra.mxu0 0
        %2596 = vmatprep.mubr.bf16.mxu0 0
        %2597 = vmatmul.mubr.bf16.gmra.mrb[0].mxu0 %v2562
        %v2598 = vpop.f32.mrb[0].mxu0
        %v2599 = vadd.f32 %v2559, %v2598
        %v2600 = vpop.f32.mrb[0].mxu0
        %v2601 = vpop.f32.mrb[0].mxu0
        %v2602 = vadd.f32 %v2559, %v2601
        %v2603 = vpop.f32.mrb[0].mxu0
        %2604 = vdwg.mxu0
        %v2605 = vadd.f32 %v2459, %v2599
        %v2606 = vadd.f32 %v2460, %v2602
        %v2607 = vmax.f32 %v2605, 0.0
        %v2608 = vmax.f32 %v2606, 0.0
        %v2611 = vrot.slane %v2607, 7
        %v2612 = vrot.slane %v2608, 7
        %v2613 = vsel %vm1464, %v2611, %v2612
        %v2616 = vsel %vm1464, 0.0, %v2611
        %v2617 = vrot.slane %v2607, 1
        %v2618 = vrot.slane %v2608, 1
        %v2619 = vsel %vm1471, %v2617, %v2618
        %v2621 = vsel %vm1471, %v2618, 0.0
        %2622 = vrot.lane.b32.xlu0 %v2607, 32
        %v2623 = vpop.permute.xlu0 %2622
        %2624 = vrot.lane.b32.xlu0 %v2608, 32
        %v2625 = vpop.permute.xlu0 %2624
        %2629 = vrot.lane.b32.xlu0 %v2619, 64
        %v2630 = vpop.permute.xlu0 %2629
        %2631 = vrot.lane.b32.xlu0 %v2621, 64
        %v2632 = vpop.permute.xlu0 %2631
        %v2635 = vsel %vm1493, %v2616, %v2623
        %v2636 = vsel %vm1493, %v2613, %v2625
        %v2637 = vsel %vm1581, %v2635, %v2630
        %v2638 = vsel %vm1581, %v2636, %v2632
        %v2639 = vpack.c.bf16 %v2638, %v2637
        %v2640 = vpack.c.bf16 %v1310, %v1309
        %v2641 = vpack.c.bf16 %v1312, %v1311
        %v2642 = vpack.c.bf16 %v1314, %v1313
        %v2643 = vpack.c.bf16 %v1316, %v1315
        %v2644 = vpack.c.bf16 %v1318, %v1317
        %v2645 = vpack.c.bf16 %v1320, %v1319
        %v2647 = vlaneseq
        %v2648 = vshrl.u32 %v2647, 7
        %v2649 = vsub.s32 0, %v2648
        %v2650 = vrot.slane %v1308, %v2649
        %v2653 = vsel %vm1597, %v2639, 0
        %2655 = vmatprep.subr.bf16.mxu0 0
        %2656 = vmatpush1.bf16.msra.mxu0 %v2640
        %2657 = vmatprep.subr.bf16.mxu0 0
        %2658 = vmatpush1.bf16.msra.mxu0 %v2641
        %2659 = vmatprep.subr.bf16.mxu0 0
        %2660 = vmatpush1.bf16.msra.mxu0 %v2642
        %2661 = vmatprep.subr.bf16.mxu0 0
        %2662 = vmatpush1.bf16.msra.mxu0 %v2643
        %2663 = vmatprep.subr.bf16.mxu0 0
        %2664 = vmatpush1.bf16.msra.mxu0 %v2644
        %2665 = vmatprep.subr.bf16.mxu0 0
        %2666 = vmatpush1.bf16.msra.mxu0 %v2645
        %2667 = vmatprep.subr.bf16.mxu0 0
        %2668 = vmatpush1.bf16.msra.mxu0 0
        %2669 = vmatprep.subr.bf16.mxu0 0
        %2670 = vmatpush1.bf16.msra.mxu0 0
        %2671 = vmatprep.subr.bf16.mxu0 0
        %2672 = vmatpush1.bf16.msra.mxu0 0
        %2673 = vmatprep.subr.bf16.mxu0 0
        %2674 = vmatpush1.bf16.msra.mxu0 0
        %2675 = vmatprep.subr.bf16.mxu0 0
        %2676 = vmatpush1.bf16.msra.mxu0 0
        %2677 = vmatprep.subr.bf16.mxu0 0
        %2678 = vmatpush1.bf16.msra.mxu0 0
        %2679 = vmatprep.subr.bf16.mxu0 0
        %2680 = vmatpush1.bf16.msra.mxu0 0
        %2681 = vmatprep.subr.bf16.mxu0 0
        %2682 = vmatpush1.bf16.msra.mxu0 0
        %2683 = vmatprep.subr.bf16.mxu0 0
        %2684 = vmatpush1.bf16.msra.mxu0 0
        %2685 = vmatprep.subr.bf16.mxu0 0
        %2686 = vmatpush1.bf16.msra.mxu0 0
        %2687 = vmatprep.mubr.bf16.mxu0 0
        %2688 = vmatmul.mubr.bf16.gmra.mrb[0].mxu0 %v2653
        %v2689 = vpop.f32.mrb[0].mxu0
        %v2690 = vadd.f32 %v2650, %v2689
        %v2691 = vpop.f32.mrb[0].mxu0
        %v2692 = vpop.f32.mrb[0].mxu0
        %v2693 = vadd.f32 %v2650, %v2692
        %v2694 = vpop.f32.mrb[0].mxu0
        %2695 = vdwg.mxu0
        %2698 = vrot.lane.b32.xlu0 %v2690, 64
        %v2699 = vpop.permute.xlu0 %2698
        %2700 = vrot.lane.b32.xlu0 %v2693, 64
        %v2701 = vpop.permute.xlu0 %2700
        %v2704 = vsel %vm1581, %v2074, %v2699
        %v2705 = vsel %vm1581, %v2077, %v2701
        %v2706 = vmax.f32 %v2704, 0.0
        %v2707 = vmax.f32 %v2705, 0.0
        %v2710 = vrot.slane %v2706, 7
        %v2711 = vrot.slane %v2707, 7
        %v2712 = vsel %vm1464, %v2710, %v2711
        %v2715 = vsel %vm1464, 0.0, %v2710
        %v2716 = vrot.slane %v2706, 1
        %v2717 = vrot.slane %v2707, 1
        %v2718 = vsel %vm1471, %v2716, %v2717
        %v2721 = vsel %vm1471, %v2717, 0.0
        %v2722 = vpack.c.bf16 %v2712, %v2715
        %v2723 = vpack.c.bf16 %v2707, %v2706
        %v2724 = vpack.c.bf16 %v2721, %v2718
        %v2725 = vpack.c.bf16 %v1379, %v1378
        %v2726 = vpack.c.bf16 %v1381, %v1380
        %v2727 = vpack.c.bf16 %v1383, %v1382
        %v2728 = vpack.c.bf16 %v1385, %v1384
        %v2729 = vpack.c.bf16 %v1387, %v1386
        %v2730 = vpack.c.bf16 %v1389, %v1388
        %v2731 = vpack.c.bf16 %v1391, %v1390
        %v2732 = vpack.c.bf16 %v1393, %v1392
        %v2733 = vpack.c.bf16 %v1395, %v1394
        %v2734 = vpack.c.bf16 %v1397, %v1396
        %v2735 = vpack.c.bf16 %v1399, %v1398
        %v2736 = vpack.c.bf16 %v1401, %v1400
        %v2737 = vpack.c.bf16 %v1403, %v1402
        %v2738 = vpack.c.bf16 %v1405, %v1404
        %v2739 = vpack.c.bf16 %v1407, %v1406
        %v2740 = vpack.c.bf16 %v1409, %v1408
        %v2741 = vpack.c.bf16 %v1411, %v1410
        %v2742 = vpack.c.bf16 %v1413, %v1412
        %v2743 = vpack.c.bf16 %v1415, %v1414
        %v2744 = vpack.c.bf16 %v1417, %v1416
        %v2745 = vpack.c.bf16 %v1419, %v1418
        %v2746 = vpack.c.bf16 %v1421, %v1420
        %v2747 = vpack.c.bf16 %v1423, %v1422
        %v2748 = vpack.c.bf16 %v1425, %v1424
        %v2750 = vlaneseq
        %v2751 = vshrl.u32 %v2750, 7
        %v2752 = vsub.s32 0, %v2751
        %v2753 = vrot.slane %v1375, %v2752
        %2755 = vmatprep.subr.bf16.mxu0 0
        %2756 = vmatpush1.bf16.msra.mxu0 %v2725
        %2757 = vmatprep.subr.bf16.mxu0 0
        %2758 = vmatpush1.bf16.msra.mxu0 %v2726
        %2759 = vmatprep.subr.bf16.mxu0 0
        %2760 = vmatpush1.bf16.msra.mxu0 %v2727
        %2761 = vmatprep.subr.bf16.mxu0 0
        %2762 = vmatpush1.bf16.msra.mxu0 %v2728
        %2763 = vmatprep.subr.bf16.mxu0 0
        %2764 = vmatpush1.bf16.msra.mxu0 %v2729
        %2765 = vmatprep.subr.bf16.mxu0 0
        %2766 = vmatpush1.bf16.msra.mxu0 %v2730
        %2767 = vmatprep.subr.bf16.mxu0 0
        %2768 = vmatpush1.bf16.msra.mxu0 %v2731
        %2769 = vmatprep.subr.bf16.mxu0 0
        %2770 = vmatpush1.bf16.msra.mxu0 %v2732
        %2771 = vmatprep.subr.bf16.mxu0 0
        %2772 = vmatpush1.bf16.msra.mxu0 %v2733
        %2773 = vmatprep.subr.bf16.mxu0 0
        %2774 = vmatpush1.bf16.msra.mxu0 %v2734
        %2775 = vmatprep.subr.bf16.mxu0 0
        %2776 = vmatpush1.bf16.msra.mxu0 %v2735
        %2777 = vmatprep.subr.bf16.mxu0 0
        %2778 = vmatpush1.bf16.msra.mxu0 %v2736
        %2779 = vmatprep.subr.bf16.mxu0 0
        %2780 = vmatpush1.bf16.msra.mxu0 %v2737
        %2781 = vmatprep.subr.bf16.mxu0 0
        %2782 = vmatpush1.bf16.msra.mxu0 %v2738
        %2783 = vmatprep.subr.bf16.mxu0 0
        %2784 = vmatpush1.bf16.msra.mxu0 %v2739
        %2785 = vmatprep.subr.bf16.mxu0 0
        %2786 = vmatpush1.bf16.msra.mxu0 %v2740
        %2787 = vmatprep.mubr.bf16.mxu0 %v2723
        %2788 = vmatmul.mubr.bf16.gmra.mrb[0].mxu0 %v2722
        %v2789 = vpop.f32.mrb[0].mxu0
        %v2790 = vadd.f32 %v2753, %v2789
        %v2791 = vpop.f32.mrb[0].mxu0
        %v2792 = vpop.f32.mrb[0].mxu0
        %v2793 = vadd.f32 %v2753, %v2792
        %v2794 = vpop.f32.mrb[0].mxu0
        %2795 = vdwg.mxu0
        %2796 = vmatprep.subr.bf16.mxu0 0
        %2797 = vmatpush1.bf16.msra.mxu0 %v2741
        %2798 = vmatprep.subr.bf16.mxu0 0
        %2799 = vmatpush1.bf16.msra.mxu0 %v2742
        %2800 = vmatprep.subr.bf16.mxu0 0
        %2801 = vmatpush1.bf16.msra.mxu0 %v2743
        %2802 = vmatprep.subr.bf16.mxu0 0
        %2803 = vmatpush1.bf16.msra.mxu0 %v2744
        %2804 = vmatprep.subr.bf16.mxu0 0
        %2805 = vmatpush1.bf16.msra.mxu0 %v2745
        %2806 = vmatprep.subr.bf16.mxu0 0
        %2807 = vmatpush1.bf16.msra.mxu0 %v2746
        %2808 = vmatprep.subr.bf16.mxu0 0
        %2809 = vmatpush1.bf16.msra.mxu0 %v2747
        %2810 = vmatprep.subr.bf16.mxu0 0
        %2811 = vmatpush1.bf16.msra.mxu0 %v2748
        %2812 = vmatprep.subr.bf16.mxu0 0
        %2813 = vmatpush1.bf16.msra.mxu0 0
        %2814 = vmatprep.subr.bf16.mxu0 0
        %2815 = vmatpush1.bf16.msra.mxu0 0
        %2816 = vmatprep.subr.bf16.mxu0 0
        %2817 = vmatpush1.bf16.msra.mxu0 0
        %2818 = vmatprep.subr.bf16.mxu0 0
        %2819 = vmatpush1.bf16.msra.mxu0 0
        %2820 = vmatprep.subr.bf16.mxu0 0
        %2821 = vmatpush1.bf16.msra.mxu0 0
        %2822 = vmatprep.subr.bf16.mxu0 0
        %2823 = vmatpush1.bf16.msra.mxu0 0
        %2824 = vmatprep.subr.bf16.mxu0 0
        %2825 = vmatpush1.bf16.msra.mxu0 0
        %2826 = vmatprep.subr.bf16.mxu0 0
        %2827 = vmatpush1.bf16.msra.mxu0 0
        %2828 = vmatprep.mubr.bf16.mxu0 0
        %2829 = vmatmul.mubr.bf16.gmra.mrb[0].mxu0 %v2724
        %v2830 = vpop.f32.mrb[0].mxu0
        %v2831 = vadd.f32 %v2790, %v2830
        %v2832 = vpop.f32.mrb[0].mxu0
        %v2833 = vpop.f32.mrb[0].mxu0
        %v2834 = vadd.f32 %v2793, %v2833
        %v2835 = vpop.f32.mrb[0].mxu0
        %2836 = vdwg.mxu0
        %v2837 = vmax.f32 %v2831, 0.0
        %v2838 = vmax.f32 %v2834, 0.0
        %v2839 = vpack.c.bf16 %v2838, %v2837
        %v2840 = vpack.c.bf16 %v1427, %v1426
        %v2841 = vpack.c.bf16 %v1429, %v1428
        %v2842 = vpack.c.bf16 %v1431, %v1430
        %v2843 = vpack.c.bf16 %v1433, %v1432
        %v2844 = vpack.c.bf16 %v1435, %v1434
        %v2845 = vpack.c.bf16 %v1437, %v1436
        %v2846 = vpack.c.bf16 %v1439, %v1438
        %v2847 = vpack.c.bf16 %v1441, %v1440
        %v2849 = vlaneseq
        %v2850 = vshrl.u32 %v2849, 7
        %v2851 = vsub.s32 0, %v2850
        %v2852 = vrot.slane %v1376, %v2851
        %2854 = vmatprep.subr.bf16.mxu0 0
        %2855 = vmatpush1.bf16.msra.mxu0 %v2840
        %2856 = vmatprep.subr.bf16.mxu0 0
        %2857 = vmatpush1.bf16.msra.mxu0 %v2841
        %2858 = vmatprep.subr.bf16.mxu0 0
        %2859 = vmatpush1.bf16.msra.mxu0 %v2842
        %2860 = vmatprep.subr.bf16.mxu0 0
        %2861 = vmatpush1.bf16.msra.mxu0 %v2843
        %2862 = vmatprep.subr.bf16.mxu0 0
        %2863 = vmatpush1.bf16.msra.mxu0 %v2844
        %2864 = vmatprep.subr.bf16.mxu0 0
        %2865 = vmatpush1.bf16.msra.mxu0 %v2845
        %2866 = vmatprep.subr.bf16.mxu0 0
        %2867 = vmatpush1.bf16.msra.mxu0 %v2846
        %2868 = vmatprep.subr.bf16.mxu0 0
        %2869 = vmatpush1.bf16.msra.mxu0 %v2847
        %2870 = vmatprep.subr.bf16.mxu0 0
        %2871 = vmatpush1.bf16.msra.mxu0 0
        %2872 = vmatprep.subr.bf16.mxu0 0
        %2873 = vmatpush1.bf16.msra.mxu0 0
        %2874 = vmatprep.subr.bf16.mxu0 0
        %2875 = vmatpush1.bf16.msra.mxu0 0
        %2876 = vmatprep.subr.bf16.mxu0 0
        %2877 = vmatpush1.bf16.msra.mxu0 0
        %2878 = vmatprep.subr.bf16.mxu0 0
        %2879 = vmatpush1.bf16.msra.mxu0 0
        %2880 = vmatprep.subr.bf16.mxu0 0
        %2881 = vmatpush1.bf16.msra.mxu0 0
        %2882 = vmatprep.subr.bf16.mxu0 0
        %2883 = vmatpush1.bf16.msra.mxu0 0
        %2884 = vmatprep.subr.bf16.mxu0 0
        %2885 = vmatpush1.bf16.msra.mxu0 0
        %2886 = vmatprep.mubr.bf16.mxu0 0
        %2887 = vmatmul.mubr.bf16.gmra.mrb[0].mxu0 %v2839
        %v2888 = vpop.f32.mrb[0].mxu0
        %v2889 = vadd.f32 %v2852, %v2888
        %v2890 = vpop.f32.mrb[0].mxu0
        %v2891 = vpop.f32.mrb[0].mxu0
        %v2892 = vadd.f32 %v2852, %v2891
        %v2893 = vpop.f32.mrb[0].mxu0
        %2894 = vdwg.mxu0
        %v2895 = vpack.c.bf16 %v2705, %v2704
        %v2896 = vpack.c.bf16 %v1443, %v1442
        %v2897 = vpack.c.bf16 %v1445, %v1444
        %v2898 = vpack.c.bf16 %v1447, %v1446
        %v2899 = vpack.c.bf16 %v1449, %v1448
        %v2900 = vpack.c.bf16 %v1451, %v1450
        %v2901 = vpack.c.bf16 %v1453, %v1452
        %v2902 = vpack.c.bf16 %v1455, %v1454
        %v2903 = vpack.c.bf16 %v1457, %v1456
        %v2905 = vlaneseq
        %v2906 = vshrl.u32 %v2905, 7
        %v2907 = vsub.s32 0, %v2906
        %v2908 = vrot.slane %v1377, %v2907
        %2910 = vmatprep.subr.bf16.mxu0 0
        %2911 = vmatpush1.bf16.msra.mxu0 %v2896
        %2912 = vmatprep.subr.bf16.mxu0 0
        %2913 = vmatpush1.bf16.msra.mxu0 %v2897
        %2914 = vmatprep.subr.bf16.mxu0 0
        %2915 = vmatpush1.bf16.msra.mxu0 %v2898
        %2916 = vmatprep.subr.bf16.mxu0 0
        %2917 = vmatpush1.bf16.msra.mxu0 %v2899
        %2918 = vmatprep.subr.bf16.mxu0 0
        %2919 = vmatpush1.bf16.msra.mxu0 %v2900
        %2920 = vmatprep.subr.bf16.mxu0 0
        %2921 = vmatpush1.bf16.msra.mxu0 %v2901
        %2922 = vmatprep.subr.bf16.mxu0 0
        %2923 = vmatpush1.bf16.msra.mxu0 %v2902
        %2924 = vmatprep.subr.bf16.mxu0 0
        %2925 = vmatpush1.bf16.msra.mxu0 %v2903
        %2926 = vmatprep.subr.bf16.mxu0 0
        %2927 = vmatpush1.bf16.msra.mxu0 0
        %2928 = vmatprep.subr.bf16.mxu0 0
        %2929 = vmatpush1.bf16.msra.mxu0 0
        %2930 = vmatprep.subr.bf16.mxu0 0
        %2931 = vmatpush1.bf16.msra.mxu0 0
        %2932 = vmatprep.subr.bf16.mxu0 0
        %2933 = vmatpush1.bf16.msra.mxu0 0
        %2934 = vmatprep.subr.bf16.mxu0 0
        %2935 = vmatpush1.bf16.msra.mxu0 0
        %2936 = vmatprep.subr.bf16.mxu0 0
        %2937 = vmatpush1.bf16.msra.mxu0 0
        %2938 = vmatprep.subr.bf16.mxu0 0
        %2939 = vmatpush1.bf16.msra.mxu0 0
        %2940 = vmatprep.subr.bf16.mxu0 0
        %2941 = vmatpush1.bf16.msra.mxu0 0
        %2942 = vmatprep.mubr.bf16.mxu0 0
        %2943 = vmatmul.mubr.bf16.gmra.mrb[0].mxu0 %v2895
        %v2944 = vpop.f32.mrb[0].mxu0
        %v2945 = vadd.f32 %v2908, %v2944
        %v2946 = vpop.f32.mrb[0].mxu0
        %v2947 = vpop.f32.mrb[0].mxu0
        %v2948 = vadd.f32 %v2908, %v2947
        %v2949 = vpop.f32.mrb[0].mxu0
        %2950 = vdwg.mxu0
        %v2951 = vxor.u32 %v2945, 2147483648
        %v2952 = vxor.u32 %v2948, 2147483648
        %v2953 = vmul.f32 %v2951, 1.442695
        %v2954 = vpow.pop %v2953
        %v2955 = vmul.f32 %v2952, 1.442695
        %v2956 = vpow.pop %v2955
        %v2957 = vadd.f32 %v2954, 1.0
        %v2958 = vadd.f32 %v2956, 1.0
        %v2959 = vrcp.pop %v2957
        %v2960 = vmul.f32 1.0, %v2959
        %v2961 = vrcp.pop %v2958
        %v2962 = vmul.f32 1.0, %v2961
        %v2963 = vmul.f32 %v2889, %v2960
        %v2964 = vmul.f32 %v2892, %v2962
        %v2965 = vadd.f32 %v2704, %v2963
        %v2966 = vadd.f32 %v2705, %v2964
        %2967 = vst [vmem:[%s1218] sm:$0xff] %v2965
        %2968 = vst [vmem:[%s1218 + $0x8] sm:$0xff] %v2966
        %s2969 = sand.u32 %s953, 1
        %s2970 = scalar_lea.sflag [#allocation3], %s2969
        %s2971 = sand.u32 %s953, 1
        %s2972 = smul.addr %s2971, 16
        %s2973 = scalar_lea.vmem [#allocation2], %s2972
        // Predicated region
        $region181: #{tpu_custom_call.1} parent=179 // pred_check
          %p2974 = pneg %p963
        $region182: #{tpu_custom_call.1} parent=179 // pred_check_branch
          %2976 = sbr.rel (%p2974) target = $region184
        $region183: #{tpu_custom_call.1} parent=179 // pred_region
          %s2978 = ssub.s32 256, 256
          %2979 = vsyncadd %s2970, %s2978
          %s2980 = smul.addr %s95, 2
          %s2981 = smul.addr %s2980, 128
          %s2982 = scalar_lea.hbm %s81, %s2981
          %s2983 = sshll.u32 %s2973, 4
          %s2984 = int_to_ptr.vmem [resolvable:$true] %s2983
          %2989 = dma.vmem_to_hbm [thread:$0]  %s2984, 256, %s2982, %s2970, 128, 128, 8
        $region184: #{tpu_custom_call.1} parent=179 // pred_fallthru
          _
      $region180: #{tpu_custom_call.1} parent=5 // pred_fallthru
        _
      %p2990 = scmp.le.s32.totalorder 2, %s90
      // Predicated region
      $region185: #{tpu_custom_call.1} parent=5 // pred_check
        %p2991 = pneg %p2990
      $region186: #{tpu_custom_call.1} parent=5 // pred_check_branch
        %2993 = sbr.rel (%p2991) target = $region188
      $region187: #{tpu_custom_call.1} parent=5 // pred_region
        %s2994 = ssub.s32 %s90, 2
        // Predicated region
        $region189: #{tpu_custom_call.1} parent=187 // pred_check
          %p2995 = pneg %p969
        $region190: #{tpu_custom_call.1} parent=187 // pred_check_branch
          %2997 = sbr.rel (%p2995) target = $region192
        $region191: #{tpu_custom_call.1} parent=187 // pred_region
          %s2998 = sand.u32 %s954, 1
          %s2999 = scalar_lea.sflag [#allocation3], %s2998
          %s3000 = sand.u32 %s954, 1
          %s3001 = smul.addr %s3000, 16
          %s3002 = scalar_lea.vmem [#allocation2], %s3001
          %3003 = dma.done %s2999, 256
        $region192: #{tpu_custom_call.1} parent=187 // pred_fallthru
          _
      $region188: #{tpu_custom_call.1} parent=5 // pred_fallthru
        _
    $region6: #{tpu_custom_call.1} parent=1 // loop_footer
      %s94 = sadd.s32 1, %s90
    $region7: #{tpu_custom_call.1} parent=1 // loop_footer_branch
      %89 = sbr.rel target = $region3
    $region8: #{tpu_custom_call.1} parent=1 // loop_exit
      _
    %3004 = vsyncpa [#allocation3], 1
    %s3005 = scalar_lea.sflag [#allocation3], 1
    %3006 = vsyncpa %s3005, 1

</llo_original>
